<compile_context>
chip_gen: v6e
topology: v6e:2x2x1
jax: 0.10.0
libtpu: 0.0.40
codegen_flags: <defaults>
</compile_context>

<pallas_src>
import jax
import jax.numpy as jnp
from jax import lax
from jax.experimental import pallas as pl
from jax.experimental.pallas import tpu as pltpu

_LANE = 128
_VMEM_LIMIT = 48 * 1024 * 1024


def _round_up(x, m):
    return ((x + m - 1) // m) * m


# ---------------------------------------------------------------------------
# Pass 1: 3x3 conv (as 9 shifted matmuls) + per-channel sum / sumsq partials.
# ---------------------------------------------------------------------------
def _make_conv_stats_kernel(H, W):
    HW = H * W

    def kernel(xs_ref, w_ref, z_ref, st_ref):
        # xs_ref: (3, (H+2)*W, Cin_p)  bf16   (dx-shifted, row-padded, flat)
        # w_ref : (9, Cin_p, Cout_p)   bf16   (tap dy*3+dx)
        # z_ref : (HW, Cout_p)         f32    pre-BN conv output for this sample
        # st_ref: (2, Cout_p)          f32    [sum ; sum of squares] partials
        cout = z_ref.shape[-1]
        acc = jnp.zeros((HW, cout), jnp.float32)
        for dy in range(3):
            for dx in range(3):
                # aligned slice: offsets 0, W, 2W along the sublane axis
                xk = xs_ref[dx, dy * W:dy * W + HW, :]
                acc = acc + jnp.dot(xk, w_ref[dy * 3 + dx],
                                    preferred_element_type=jnp.float32)
        z_ref[...] = acc
        st_ref[0:1, :] = jnp.sum(acc, axis=0, keepdims=True)
        st_ref[1:2, :] = jnp.sum(acc * acc, axis=0, keepdims=True)

    return kernel


# ---------------------------------------------------------------------------
# Pass 2: folded BatchNorm (scale/shift) + ReLU.
# ---------------------------------------------------------------------------
def _bn_relu_kernel(z_ref, a_ref, c_ref, y_ref):
    # z_ref: (HW, Cout_p) f32, a/c: (1, Cout_p) f32, y_ref: (HW, Cout_p)
    y = z_ref[...] * a_ref[...] + c_ref[...]
    y_ref[...] = jnp.maximum(y, 0.0).astype(y_ref.dtype)


# ---------------------------------------------------------------------------
# JAX glue.
# ---------------------------------------------------------------------------
def _build_shifted(act_nhwc, cin_p):
    """(N,H,W,C) -> (N, 3, (H+2)*W, cin_p): channel-pad, row-pad, dx-shift."""
    N, H, W, C = act_nhwc.shape
    a = jnp.pad(act_nhwc, ((0, 0), (0, 0), (0, 0), (0, cin_p - C)))
    ap = jnp.pad(a, ((0, 0), (1, 1), (1, 1), (0, 0)))            # (N,H+2,W+2,Cp)
    xs = jnp.stack([ap[:, :, dx:dx + W, :] for dx in range(3)], axis=1)
    return xs.reshape(N, 3, (H + 2) * W, cin_p)


def _fold_weight(w_oihw, cin_p, cout_p):
    """(Cout,Cin,3,3) -> (9, cin_p, cout_p) bf16, tap index = dy*3 + dx."""
    cout, cin, kh, kw = w_oihw.shape
    w = jnp.transpose(w_oihw, (2, 3, 1, 0)).reshape(kh * kw, cin, cout)
    w = jnp.pad(w, ((0, 0), (0, cin_p - cin), (0, cout_p - cout)))
    return w.astype(jnp.bfloat16)


def _conv_bn_relu_stage(act_nhwc, w_oihw, gamma, beta, out_dtype, eps=1e-5):
    N, H, W, C = act_nhwc.shape
    c_out = w_oihw.shape[0]
    cin_p = _round_up(max(C, w_oihw.shape[1]), _LANE)
    cout_p = _round_up(c_out, _LANE)
    HW, HPW = H * W, (H + 2) * W

    xs = _build_shifted(act_nhwc, cin_p).astype(jnp.bfloat16)     # (N,3,HPW,Cp)
    wf = _fold_weight(w_oihw, cin_p, cout_p)                      # (9,Cp,Cop)

    cparams = pltpu.CompilerParams(dimension_semantics=("parallel",),
                                   vmem_limit_bytes=_VMEM_LIMIT)

    # ---- pass 1: conv matmuls + per-sample stats ----------------------------
    z, stats = pl.pallas_call(
        _make_conv_stats_kernel(H, W),
        out_shape=(jax.ShapeDtypeStruct((N, HW, cout_p), jnp.float32),
                   jax.ShapeDtypeStruct((N, 2, cout_p), jnp.float32)),
        grid=(N,),
        in_specs=[
            pl.BlockSpec((None, 3, HPW, cin_p), lambda n: (n, 0, 0, 0)),
            pl.BlockSpec((9, cin_p, cout_p), lambda n: (0, 0, 0)),  # resident
        ],
        out_specs=(
            pl.BlockSpec((None, HW, cout_p), lambda n: (n, 0, 0)),
            pl.BlockSpec((None, 2, cout_p), lambda n: (n, 0, 0)),
        ),
        compiler_params=cparams,
        cost_estimate=pl.CostEstimate(
            flops=2 * N * HW * 9 * cin_p * cout_p,
            transcendentals=0,
            bytes_accessed=xs.size * 2 + wf.size * 2
            + N * HW * cout_p * 4 + N * 2 * cout_p * 4),
    )(xs, wf)

    # ---- fold BN into per-channel scale/shift (tiny, plain JAX) -------------
    # Conv bias is omitted: with training-mode BN it cancels exactly.
    M = N * H * W
    mean = jnp.sum(stats[:, 0, :], axis=0) / M
    var = jnp.maximum(jnp.sum(stats[:, 1, :], axis=0) / M - mean * mean, 0.0)
    g_p = jnp.pad(gamma, (0, cout_p - c_out))
    b_p = jnp.pad(beta, (0, cout_p - c_out))
    a = (g_p * lax.rsqrt(var + eps)).reshape(1, cout_p).astype(jnp.float32)
    c = (b_p - mean * a[0]).reshape(1, cout_p).astype(jnp.float32)

    # ---- pass 2: apply scale/shift + ReLU ------------------------------------
    y = pl.pallas_call(
        _bn_relu_kernel,
        out_shape=jax.ShapeDtypeStruct((N, HW, cout_p), out_dtype),
        grid=(N,),
        in_specs=[
            pl.BlockSpec((None, HW, cout_p), lambda n: (n, 0, 0)),
            pl.BlockSpec((1, cout_p), lambda n: (0, 0)),
            pl.BlockSpec((1, cout_p), lambda n: (0, 0)),
        ],
        out_specs=pl.BlockSpec((None, HW, cout_p), lambda n: (n, 0, 0)),
        compiler_params=cparams,
    )(z, a, c)

    return y.reshape(N, H, W, cout_p)


def conv_block_forward(x_nchw, params, ks=3):
    assert ks == 3, "conv_block uses 3x3 convs with padding=1"
    (w1, _b1, g1, be1, w2, _b2, g2, be2) = params
    N, _, H, W = x_nchw.shape
    c_out = w2.shape[0]

    x = jnp.transpose(x_nchw, (0, 2, 3, 1))                      # NCHW -> NHWC
    y1 = _conv_bn_relu_stage(x, w1, g1, be1, out_dtype=jnp.bfloat16)
    y2 = _conv_bn_relu_stage(y1, w2, g2, be2, out_dtype=jnp.float32)
    y2 = y2[..., :c_out]                                         # strip channel pad
    return jnp.transpose(y2, (0, 3, 1, 2))                       # NHWC -> NCHW


def init_params(key, ks, ch_in, ch_out):
    k1, k2, k3, k4 = jax.random.split(key, 4)
    fan1 = ch_in * ks * ks
    fan2 = ch_out * ks * ks
    w1 = jax.random.normal(k1, (ch_out, ch_in, ks, ks), jnp.float32) / jnp.sqrt(fan1)
    b1 = 0.01 * jax.random.normal(k2, (ch_out,), jnp.float32)   # unused: cancels under BN
    w2 = jax.random.normal(k3, (ch_out, ch_out, ks, ks), jnp.float32) / jnp.sqrt(fan2)
    b2 = 0.01 * jax.random.normal(k4, (ch_out,), jnp.float32)   # unused: cancels under BN
    g1 = jnp.ones((ch_out,), jnp.float32)
    be1 = jnp.zeros((ch_out,), jnp.float32)
    g2 = jnp.ones((ch_out,), jnp.float32)
    be2 = jnp.zeros((ch_out,), jnp.float32)
    return (w1, b1, g1, be1, w2, b2, g2, be2)


if __name__ == "__main__":
    key = jax.random.PRNGKey(0)
    kx, kp = jax.random.split(key)

    N, CH_IN, CH_OUT, H, W, KS = 2, 4, 8, 16, 16, 3
    x = jax.random.normal(kx, (N, CH_IN, H, W), jnp.float32)
    params = init_params(kp, KS, CH_IN, CH_OUT)

    out = jax.jit(conv_block_forward, static_argnums=(2,))(x, params, KS)
    jax.block_until_ready(out)
    assert out.shape == (N, CH_OUT, H, W)
    print("KERNEL_OK")
</pallas_src>

<mosaic_0001>
module attributes {stable_mosaic.version = 11 : i64} {
  func.func @kernel(%arg0: i32, %arg1: memref<1x3x288x128xbf16, #tpu.memory_space<vmem>>, %arg2: memref<9x128x128xbf16, #tpu.memory_space<vmem>>, %arg3: memref<1x256x128xf32, #tpu.memory_space<vmem>>, %arg4: memref<1x2x128xf32, #tpu.memory_space<vmem>>) attributes {dimension_semantics = [#tpu.dimension_semantics<parallel>], iteration_bounds = array<i64: 2>, scalar_prefetch = 0 : i64, scratch_operands = 0 : i64, tpu.core_type = #tpu.core_type<tc>, window_params = [{transform_indices = @transform_0, window_bounds = array<i64: 1, 3, 288, 128>}, {pipeline_mode = #tpu.pipeline_mode<synchronous>, transform_indices = @transform_1, window_bounds = array<i64: 9, 128, 128>}, {transform_indices = @transform_2, window_bounds = array<i64: 1, 256, 128>}, {transform_indices = @transform_3, window_bounds = array<i64: 1, 2, 128>}]} {
    %cst = arith.constant 0.000000e+00 : f32
    %0 = vector.broadcast %cst : f32 to vector<256x128xf32>
    %c0 = arith.constant 0 : index
    %c0_0 = arith.constant 0 : index
    %c0_1 = arith.constant 0 : index
    %c0_2 = arith.constant 0 : index
    %1 = vector.load %arg1[%c0, %c0_0, %c0_1, %c0_2] : memref<1x3x288x128xbf16, #tpu.memory_space<vmem>>, vector<1x1x256x128xbf16>
    %2 = vector.shape_cast %1 : vector<1x1x256x128xbf16> to vector<256x128xbf16>
    %c0_3 = arith.constant 0 : index
    %c0_4 = arith.constant 0 : index
    %c0_5 = arith.constant 0 : index
    %3 = vector.load %arg2[%c0_3, %c0_4, %c0_5] : memref<9x128x128xbf16, #tpu.memory_space<vmem>>, vector<1x128x128xbf16>
    %4 = vector.shape_cast %3 : vector<1x128x128xbf16> to vector<128x128xbf16>
    %cst_6 = arith.constant dense<0.000000e+00> : vector<256x128xf32>
    %5 = tpu.matmul %2, %4, %cst_6 {dimension_numbers = #tpu.dot_dimension_numbers<[1], [0], [0], [1], [0, 0, 1, 1], [], []>} : vector<256x128xbf16>, vector<128x128xbf16>, vector<256x128xf32> -> vector<256x128xf32>
    %6 = arith.addf %0, %5 : vector<256x128xf32>
    %c0_7 = arith.constant 0 : index
    %c1 = arith.constant 1 : index
    %c0_8 = arith.constant 0 : index
    %c0_9 = arith.constant 0 : index
    %7 = vector.load %arg1[%c0_7, %c1, %c0_8, %c0_9] : memref<1x3x288x128xbf16, #tpu.memory_space<vmem>>, vector<1x1x256x128xbf16>
    %8 = vector.shape_cast %7 : vector<1x1x256x128xbf16> to vector<256x128xbf16>
    %c1_10 = arith.constant 1 : index
    %c0_11 = arith.constant 0 : index
    %c0_12 = arith.constant 0 : index
    %9 = vector.load %arg2[%c1_10, %c0_11, %c0_12] : memref<9x128x128xbf16, #tpu.memory_space<vmem>>, vector<1x128x128xbf16>
    %10 = vector.shape_cast %9 : vector<1x128x128xbf16> to vector<128x128xbf16>
    %cst_13 = arith.constant dense<0.000000e+00> : vector<256x128xf32>
    %11 = tpu.matmul %8, %10, %cst_13 {dimension_numbers = #tpu.dot_dimension_numbers<[1], [0], [0], [1], [0, 0, 1, 1], [], []>} : vector<256x128xbf16>, vector<128x128xbf16>, vector<256x128xf32> -> vector<256x128xf32>
    %12 = arith.addf %6, %11 : vector<256x128xf32>
    %c0_14 = arith.constant 0 : index
    %c2 = arith.constant 2 : index
    %c0_15 = arith.constant 0 : index
    %c0_16 = arith.constant 0 : index
    %13 = vector.load %arg1[%c0_14, %c2, %c0_15, %c0_16] : memref<1x3x288x128xbf16, #tpu.memory_space<vmem>>, vector<1x1x256x128xbf16>
    %14 = vector.shape_cast %13 : vector<1x1x256x128xbf16> to vector<256x128xbf16>
    %c2_17 = arith.constant 2 : index
    %c0_18 = arith.constant 0 : index
    %c0_19 = arith.constant 0 : index
    %15 = vector.load %arg2[%c2_17, %c0_18, %c0_19] : memref<9x128x128xbf16, #tpu.memory_space<vmem>>, vector<1x128x128xbf16>
    %16 = vector.shape_cast %15 : vector<1x128x128xbf16> to vector<128x128xbf16>
    %cst_20 = arith.constant dense<0.000000e+00> : vector<256x128xf32>
    %17 = tpu.matmul %14, %16, %cst_20 {dimension_numbers = #tpu.dot_dimension_numbers<[1], [0], [0], [1], [0, 0, 1, 1], [], []>} : vector<256x128xbf16>, vector<128x128xbf16>, vector<256x128xf32> -> vector<256x128xf32>
    %18 = arith.addf %12, %17 : vector<256x128xf32>
    %c0_21 = arith.constant 0 : index
    %c0_22 = arith.constant 0 : index
    %c16 = arith.constant 16 : index
    %c0_23 = arith.constant 0 : index
    %19 = vector.load %arg1[%c0_21, %c0_22, %c16, %c0_23] : memref<1x3x288x128xbf16, #tpu.memory_space<vmem>>, vector<1x1x256x128xbf16>
    %20 = vector.shape_cast %19 : vector<1x1x256x128xbf16> to vector<256x128xbf16>
    %c3 = arith.constant 3 : index
    %c0_24 = arith.constant 0 : index
    %c0_25 = arith.constant 0 : index
    %21 = vector.load %arg2[%c3, %c0_24, %c0_25] : memref<9x128x128xbf16, #tpu.memory_space<vmem>>, vector<1x128x128xbf16>
    %22 = vector.shape_cast %21 : vector<1x128x128xbf16> to vector<128x128xbf16>
    %cst_26 = arith.constant dense<0.000000e+00> : vector<256x128xf32>
    %23 = tpu.matmul %20, %22, %cst_26 {dimension_numbers = #tpu.dot_dimension_numbers<[1], [0], [0], [1], [0, 0, 1, 1], [], []>} : vector<256x128xbf16>, vector<128x128xbf16>, vector<256x128xf32> -> vector<256x128xf32>
    %24 = arith.addf %18, %23 : vector<256x128xf32>
    %c0_27 = arith.constant 0 : index
    %c1_28 = arith.constant 1 : index
    %c16_29 = arith.constant 16 : index
    %c0_30 = arith.constant 0 : index
    %25 = vector.load %arg1[%c0_27, %c1_28, %c16_29, %c0_30] : memref<1x3x288x128xbf16, #tpu.memory_space<vmem>>, vector<1x1x256x128xbf16>
    %26 = vector.shape_cast %25 : vector<1x1x256x128xbf16> to vector<256x128xbf16>
    %c4 = arith.constant 4 : index
    %c0_31 = arith.constant 0 : index
    %c0_32 = arith.constant 0 : index
    %27 = vector.load %arg2[%c4, %c0_31, %c0_32] : memref<9x128x128xbf16, #tpu.memory_space<vmem>>, vector<1x128x128xbf16>
    %28 = vector.shape_cast %27 : vector<1x128x128xbf16> to vector<128x128xbf16>
    %cst_33 = arith.constant dense<0.000000e+00> : vector<256x128xf32>
    %29 = tpu.matmul %26, %28, %cst_33 {dimension_numbers = #tpu.dot_dimension_numbers<[1], [0], [0], [1], [0, 0, 1, 1], [], []>} : vector<256x128xbf16>, vector<128x128xbf16>, vector<256x128xf32> -> vector<256x128xf32>
    %30 = arith.addf %24, %29 : vector<256x128xf32>
    %c0_34 = arith.constant 0 : index
    %c2_35 = arith.constant 2 : index
    %c16_36 = arith.constant 16 : index
    %c0_37 = arith.constant 0 : index
    %31 = vector.load %arg1[%c0_34, %c2_35, %c16_36, %c0_37] : memref<1x3x288x128xbf16, #tpu.memory_space<vmem>>, vector<1x1x256x128xbf16>
    %32 = vector.shape_cast %31 : vector<1x1x256x128xbf16> to vector<256x128xbf16>
    %c5 = arith.constant 5 : index
    %c0_38 = arith.constant 0 : index
    %c0_39 = arith.constant 0 : index
    %33 = vector.load %arg2[%c5, %c0_38, %c0_39] : memref<9x128x128xbf16, #tpu.memory_space<vmem>>, vector<1x128x128xbf16>
    %34 = vector.shape_cast %33 : vector<1x128x128xbf16> to vector<128x128xbf16>
    %cst_40 = arith.constant dense<0.000000e+00> : vector<256x128xf32>
    %35 = tpu.matmul %32, %34, %cst_40 {dimension_numbers = #tpu.dot_dimension_numbers<[1], [0], [0], [1], [0, 0, 1, 1], [], []>} : vector<256x128xbf16>, vector<128x128xbf16>, vector<256x128xf32> -> vector<256x128xf32>
    %36 = arith.addf %30, %35 : vector<256x128xf32>
    %c0_41 = arith.constant 0 : index
    %c0_42 = arith.constant 0 : index
    %c32 = arith.constant 32 : index
    %c0_43 = arith.constant 0 : index
    %37 = vector.load %arg1[%c0_41, %c0_42, %c32, %c0_43] : memref<1x3x288x128xbf16, #tpu.memory_space<vmem>>, vector<1x1x256x128xbf16>
    %38 = vector.shape_cast %37 : vector<1x1x256x128xbf16> to vector<256x128xbf16>
    %c6 = arith.constant 6 : index
    %c0_44 = arith.constant 0 : index
    %c0_45 = arith.constant 0 : index
    %39 = vector.load %arg2[%c6, %c0_44, %c0_45] : memref<9x128x128xbf16, #tpu.memory_space<vmem>>, vector<1x128x128xbf16>
    %40 = vector.shape_cast %39 : vector<1x128x128xbf16> to vector<128x128xbf16>
    %cst_46 = arith.constant dense<0.000000e+00> : vector<256x128xf32>
    %41 = tpu.matmul %38, %40, %cst_46 {dimension_numbers = #tpu.dot_dimension_numbers<[1], [0], [0], [1], [0, 0, 1, 1], [], []>} : vector<256x128xbf16>, vector<128x128xbf16>, vector<256x128xf32> -> vector<256x128xf32>
    %42 = arith.addf %36, %41 : vector<256x128xf32>
    %c0_47 = arith.constant 0 : index
    %c1_48 = arith.constant 1 : index
    %c32_49 = arith.constant 32 : index
    %c0_50 = arith.constant 0 : index
    %43 = vector.load %arg1[%c0_47, %c1_48, %c32_49, %c0_50] : memref<1x3x288x128xbf16, #tpu.memory_space<vmem>>, vector<1x1x256x128xbf16>
    %44 = vector.shape_cast %43 : vector<1x1x256x128xbf16> to vector<256x128xbf16>
    %c7 = arith.constant 7 : index
    %c0_51 = arith.constant 0 : index
    %c0_52 = arith.constant 0 : index
    %45 = vector.load %arg2[%c7, %c0_51, %c0_52] : memref<9x128x128xbf16, #tpu.memory_space<vmem>>, vector<1x128x128xbf16>
    %46 = vector.shape_cast %45 : vector<1x128x128xbf16> to vector<128x128xbf16>
    %cst_53 = arith.constant dense<0.000000e+00> : vector<256x128xf32>
    %47 = tpu.matmul %44, %46, %cst_53 {dimension_numbers = #tpu.dot_dimension_numbers<[1], [0], [0], [1], [0, 0, 1, 1], [], []>} : vector<256x128xbf16>, vector<128x128xbf16>, vector<256x128xf32> -> vector<256x128xf32>
    %48 = arith.addf %42, %47 : vector<256x128xf32>
    %c0_54 = arith.constant 0 : index
    %c2_55 = arith.constant 2 : index
    %c32_56 = arith.constant 32 : index
    %c0_57 = arith.constant 0 : index
    %49 = vector.load %arg1[%c0_54, %c2_55, %c32_56, %c0_57] : memref<1x3x288x128xbf16, #tpu.memory_space<vmem>>, vector<1x1x256x128xbf16>
    %50 = vector.shape_cast %49 : vector<1x1x256x128xbf16> to vector<256x128xbf16>
    %c8 = arith.constant 8 : index
    %c0_58 = arith.constant 0 : index
    %c0_59 = arith.constant 0 : index
    %51 = vector.load %arg2[%c8, %c0_58, %c0_59] : memref<9x128x128xbf16, #tpu.memory_space<vmem>>, vector<1x128x128xbf16>
    %52 = vector.shape_cast %51 : vector<1x128x128xbf16> to vector<128x128xbf16>
    %cst_60 = arith.constant dense<0.000000e+00> : vector<256x128xf32>
    %53 = tpu.matmul %50, %52, %cst_60 {dimension_numbers = #tpu.dot_dimension_numbers<[1], [0], [0], [1], [0, 0, 1, 1], [], []>} : vector<256x128xbf16>, vector<128x128xbf16>, vector<256x128xf32> -> vector<256x128xf32>
    %54 = arith.addf %48, %53 : vector<256x128xf32>
    %c0_61 = arith.constant 0 : index
    %c0_62 = arith.constant 0 : index
    %c0_63 = arith.constant 0 : index
    %55 = vector.load %arg3[%c0_61, %c0_62, %c0_63] : memref<1x256x128xf32, #tpu.memory_space<vmem>>, vector<1x256x128xf32>
    %56 = vector.shape_cast %55 : vector<1x256x128xf32> to vector<256x128xf32>
    %57 = vector.shape_cast %54 : vector<256x128xf32> to vector<1x256x128xf32>
    tpu.vector_store %arg3[%c0_61, %c0_62, %c0_63], %57 {strides = array<i32>} : memref<1x256x128xf32, #tpu.memory_space<vmem>>, vector<1x256x128xf32>,
    %cst_64 = arith.constant dense<0.000000e+00> : vector<128xf32>
    %58 = vector.multi_reduction <add>, %54, %cst_64 [0] : vector<256x128xf32> to vector<128xf32>
    %59 = vector.shape_cast %58 : vector<128xf32> to vector<1x128xf32>
    %c0_65 = arith.constant 0 : index
    %c0_66 = arith.constant 0 : index
    %c0_67 = arith.constant 0 : index
    %60 = vector.load %arg4[%c0_65, %c0_66, %c0_67] : memref<1x2x128xf32, #tpu.memory_space<vmem>>, vector<1x1x128xf32>
    %61 = vector.shape_cast %60 : vector<1x1x128xf32> to vector<1x128xf32>
    %62 = vector.shape_cast %59 : vector<1x128xf32> to vector<1x1x128xf32>
    tpu.vector_store %arg4[%c0_65, %c0_66, %c0_67], %62 {strides = array<i32>} : memref<1x2x128xf32, #tpu.memory_space<vmem>>, vector<1x1x128xf32>,
    %63 = arith.mulf %54, %54 : vector<256x128xf32>
    %cst_68 = arith.constant dense<0.000000e+00> : vector<128xf32>
    %64 = vector.multi_reduction <add>, %63, %cst_68 [0] : vector<256x128xf32> to vector<128xf32>
    %65 = vector.shape_cast %64 : vector<128xf32> to vector<1x128xf32>
    %c0_69 = arith.constant 0 : index
    %c1_70 = arith.constant 1 : index
    %c0_71 = arith.constant 0 : index
    %66 = vector.load %arg4[%c0_69, %c1_70, %c0_71] : memref<1x2x128xf32, #tpu.memory_space<vmem>>, vector<1x1x128xf32>
    %67 = vector.shape_cast %66 : vector<1x1x128xf32> to vector<1x128xf32>
    %68 = vector.shape_cast %65 : vector<1x128xf32> to vector<1x1x128xf32>
    tpu.vector_store %arg4[%c0_69, %c1_70, %c0_71], %68 {strides = array<i32>} : memref<1x2x128xf32, #tpu.memory_space<vmem>>, vector<1x1x128xf32>,
    return
  }
  func.func @transform_0(%arg0: i32) -> (i32, i32, i32, i32) {
    %c0_i32 = arith.constant 0 : i32
    %c0_i32_0 = arith.constant 0 : i32
    %c0_i32_1 = arith.constant 0 : i32
    %c0_i32_2 = arith.constant 0 : i32
    return %arg0, %c0_i32, %c0_i32_0, %c0_i32_1 : i32, i32, i32, i32
  }
  func.func @transform_1(%arg0: i32) -> (i32, i32, i32) {
    %c0_i32 = arith.constant 0 : i32
    %c0_i32_0 = arith.constant 0 : i32
    %c0_i32_1 = arith.constant 0 : i32
    %c0_i32_2 = arith.constant 0 : i32
    return %c0_i32, %c0_i32_0, %c0_i32_1 : i32, i32, i32
  }
  func.func @transform_2(%arg0: i32) -> (i32, i32, i32) {
    %c0_i32 = arith.constant 0 : i32
    %c0_i32_0 = arith.constant 0 : i32
    %c0_i32_1 = arith.constant 0 : i32
    return %arg0, %c0_i32, %c0_i32_0 : i32, i32, i32
  }
  func.func @transform_3(%arg0: i32) -> (i32, i32, i32) {
    %c0_i32 = arith.constant 0 : i32
    %c0_i32_0 = arith.constant 0 : i32
    %c0_i32_1 = arith.constant 0 : i32
    return %arg0, %c0_i32, %c0_i32_0 : i32, i32, i32
  }
}

module attributes {stable_mosaic.version = 11 : i64} {
  func.func @_bn_relu_kernel(%arg0: i32, %arg1: memref<1x256x128xf32, #tpu.memory_space<vmem>>, %arg2: memref<1x128xf32, #tpu.memory_space<vmem>>, %arg3: memref<1x128xf32, #tpu.memory_space<vmem>>, %arg4: memref<1x256x128xbf16, #tpu.memory_space<vmem>>) attributes {dimension_semantics = [#tpu.dimension_semantics<parallel>], iteration_bounds = array<i64: 2>, scalar_prefetch = 0 : i64, scratch_operands = 0 : i64, tpu.core_type = #tpu.core_type<tc>, window_params = [{transform_indices = @transform_0, window_bounds = array<i64: 1, 256, 128>}, {pipeline_mode = #tpu.pipeline_mode<synchronous>, transform_indices = @transform_1, window_bounds = array<i64: 1, 128>}, {pipeline_mode = #tpu.pipeline_mode<synchronous>, transform_indices = @transform_2, window_bounds = array<i64: 1, 128>}, {transform_indices = @transform_3, window_bounds = array<i64: 1, 256, 128>}]} {
    %c0 = arith.constant 0 : index
    %c0_0 = arith.constant 0 : index
    %c0_1 = arith.constant 0 : index
    %0 = vector.load %arg1[%c0, %c0_0, %c0_1] : memref<1x256x128xf32, #tpu.memory_space<vmem>>, vector<1x256x128xf32>
    %1 = vector.shape_cast %0 : vector<1x256x128xf32> to vector<256x128xf32>
    %c0_2 = arith.constant 0 : index
    %c0_3 = arith.constant 0 : index
    %2 = vector.load %arg2[%c0_2, %c0_3] : memref<1x128xf32, #tpu.memory_space<vmem>>, vector<1x128xf32>
    %3 = vector.broadcast %2 : vector<1x128xf32> to vector<256x128xf32>
    %4 = arith.mulf %1, %3 : vector<256x128xf32>
    %c0_4 = arith.constant 0 : index
    %c0_5 = arith.constant 0 : index
    %5 = vector.load %arg3[%c0_4, %c0_5] : memref<1x128xf32, #tpu.memory_space<vmem>>, vector<1x128xf32>
    %6 = vector.broadcast %5 : vector<1x128xf32> to vector<256x128xf32>
    %7 = arith.addf %4, %6 : vector<256x128xf32>
    %cst = arith.constant 0.000000e+00 : f32
    %8 = vector.broadcast %cst : f32 to vector<256x128xf32>
    %9 = arith.maximumf %7, %8 : vector<256x128xf32>
    %10 = arith.truncf %9 : vector<256x128xf32> to vector<256x128xbf16>
    %c0_6 = arith.constant 0 : index
    %c0_7 = arith.constant 0 : index
    %c0_8 = arith.constant 0 : index
    %11 = vector.load %arg4[%c0_6, %c0_7, %c0_8] : memref<1x256x128xbf16, #tpu.memory_space<vmem>>, vector<1x256x128xbf16>
    %12 = vector.shape_cast %11 : vector<1x256x128xbf16> to vector<256x128xbf16>
    %13 = vector.shape_cast %10 : vector<256x128xbf16> to vector<1x256x128xbf16>
    tpu.vector_store %arg4[%c0_6, %c0_7, %c0_8], %13 {strides = array<i32>} : memref<1x256x128xbf16, #tpu.memory_space<vmem>>, vector<1x256x128xbf16>,
    return
  }
  func.func @transform_0(%arg0: i32) -> (i32, i32, i32) {
    %c0_i32 = arith.constant 0 : i32
    %c0_i32_0 = arith.constant 0 : i32
    %c0_i32_1 = arith.constant 0 : i32
    return %arg0, %c0_i32, %c0_i32_0 : i32, i32, i32
  }
  func.func @transform_1(%arg0: i32) -> (i32, i32) {
    %c0_i32 = arith.constant 0 : i32
    %c0_i32_0 = arith.constant 0 : i32
    %c0_i32_1 = arith.constant 0 : i32
    return %c0_i32, %c0_i32_0 : i32, i32
  }
  func.func @transform_2(%arg0: i32) -> (i32, i32) {
    %c0_i32 = arith.constant 0 : i32
    %c0_i32_0 = arith.constant 0 : i32
    %c0_i32_1 = arith.constant 0 : i32
    return %c0_i32, %c0_i32_0 : i32, i32
  }
  func.func @transform_3(%arg0: i32) -> (i32, i32, i32) {
    %c0_i32 = arith.constant 0 : i32
    %c0_i32_0 = arith.constant 0 : i32
    %c0_i32_1 = arith.constant 0 : i32
    return %arg0, %c0_i32, %c0_i32_0 : i32, i32, i32
  }
}

module attributes {stable_mosaic.version = 11 : i64} {
  func.func @_bn_relu_kernel(%arg0: i32, %arg1: memref<1x256x128xf32, #tpu.memory_space<vmem>>, %arg2: memref<1x128xf32, #tpu.memory_space<vmem>>, %arg3: memref<1x128xf32, #tpu.memory_space<vmem>>, %arg4: memref<1x256x128xf32, #tpu.memory_space<vmem>>) attributes {dimension_semantics = [#tpu.dimension_semantics<parallel>], iteration_bounds = array<i64: 2>, scalar_prefetch = 0 : i64, scratch_operands = 0 : i64, tpu.core_type = #tpu.core_type<tc>, window_params = [{transform_indices = @transform_0, window_bounds = array<i64: 1, 256, 128>}, {pipeline_mode = #tpu.pipeline_mode<synchronous>, transform_indices = @transform_1, window_bounds = array<i64: 1, 128>}, {pipeline_mode = #tpu.pipeline_mode<synchronous>, transform_indices = @transform_2, window_bounds = array<i64: 1, 128>}, {transform_indices = @transform_3, window_bounds = array<i64: 1, 256, 128>}]} {
    %c0 = arith.constant 0 : index
    %c0_0 = arith.constant 0 : index
    %c0_1 = arith.constant 0 : index
    %0 = vector.load %arg1[%c0, %c0_0, %c0_1] : memref<1x256x128xf32, #tpu.memory_space<vmem>>, vector<1x256x128xf32>
    %1 = vector.shape_cast %0 : vector<1x256x128xf32> to vector<256x128xf32>
    %c0_2 = arith.constant 0 : index
    %c0_3 = arith.constant 0 : index
    %2 = vector.load %arg2[%c0_2, %c0_3] : memref<1x128xf32, #tpu.memory_space<vmem>>, vector<1x128xf32>
    %3 = vector.broadcast %2 : vector<1x128xf32> to vector<256x128xf32>
    %4 = arith.mulf %1, %3 : vector<256x128xf32>
    %c0_4 = arith.constant 0 : index
    %c0_5 = arith.constant 0 : index
    %5 = vector.load %arg3[%c0_4, %c0_5] : memref<1x128xf32, #tpu.memory_space<vmem>>, vector<1x128xf32>
    %6 = vector.broadcast %5 : vector<1x128xf32> to vector<256x128xf32>
    %7 = arith.addf %4, %6 : vector<256x128xf32>
    %cst = arith.constant 0.000000e+00 : f32
    %8 = vector.broadcast %cst : f32 to vector<256x128xf32>
    %9 = arith.maximumf %7, %8 : vector<256x128xf32>
    %c0_6 = arith.constant 0 : index
    %c0_7 = arith.constant 0 : index
    %c0_8 = arith.constant 0 : index
    %10 = vector.load %arg4[%c0_6, %c0_7, %c0_8] : memref<1x256x128xf32, #tpu.memory_space<vmem>>, vector<1x256x128xf32>
    %11 = vector.shape_cast %10 : vector<1x256x128xf32> to vector<256x128xf32>
    %12 = vector.shape_cast %9 : vector<256x128xf32> to vector<1x256x128xf32>
    tpu.vector_store %arg4[%c0_6, %c0_7, %c0_8], %12 {strides = array<i32>} : memref<1x256x128xf32, #tpu.memory_space<vmem>>, vector<1x256x128xf32>,
    return
  }
  func.func @transform_0(%arg0: i32) -> (i32, i32, i32) {
    %c0_i32 = arith.constant 0 : i32
    %c0_i32_0 = arith.constant 0 : i32
    %c0_i32_1 = arith.constant 0 : i32
    return %arg0, %c0_i32, %c0_i32_0 : i32, i32, i32
  }
  func.func @transform_1(%arg0: i32) -> (i32, i32) {
    %c0_i32 = arith.constant 0 : i32
    %c0_i32_0 = arith.constant 0 : i32
    %c0_i32_1 = arith.constant 0 : i32
    return %c0_i32, %c0_i32_0 : i32, i32
  }
  func.func @transform_2(%arg0: i32) -> (i32, i32) {
    %c0_i32 = arith.constant 0 : i32
    %c0_i32_0 = arith.constant 0 : i32
    %c0_i32_1 = arith.constant 0 : i32
    return %c0_i32, %c0_i32_0 : i32, i32
  }
  func.func @transform_3(%arg0: i32) -> (i32, i32, i32) {
    %c0_i32 = arith.constant 0 : i32
    %c0_i32_0 = arith.constant 0 : i32
    %c0_i32_1 = arith.constant 0 : i32
    return %arg0, %c0_i32, %c0_i32_0 : i32, i32, i32
  }
}

</mosaic_0001>

<llo_original>
// kernel: conv_block_forward.5
$region0: #{conv_block_forward.5}
  #allocation0 [shape = 'u32[]', space=smem, size = 0x4, offset = 0x4, fixed_abs, tag = 'smem constant byte address 0x4 - core index']
  #allocation1 [shape = 'u32[144,128]{1,0:T(1,128)}', space=vmem, size = 0x12000, scoped, tag = 'internal scratch']
  %s0 = inlined_call_operand.vmem [shape: f32[2,256,128], index: 0, kind: input, shape index: {}]
  %s1 = inlined_call_operand.vmem [shape: f32[1,128], index: 1, kind: input, shape index: {}]
  %s2 = inlined_call_operand.vmem [shape: f32[1,128], index: 2, kind: input, shape index: {}]
  %s3 = inlined_call_operand.vmem [shape: bf16[2,256,128], index: 3, kind: output, shape index: {}]
  %s4 = sld [smem:[#allocation0]]
  $region45: #{conv_block_forward.5} parent=0
    _
  %s6 = ssub.s32 1, %s4
  %s7 = scalar_select 0, %s6, %s4
  loop: start=0, step=1, limit=4
  $region2: #{conv_block_forward.5} parent=0 // loop_pre_header
    _
  $region3: #{conv_block_forward.5} parent=0 // loop_header
    %s9 = sphi 0, %s13
    %p10 = scmp.ge.s32.totalorder %s9, 4
    %s19 = sphi 0, %s21
    %s22 = sphi 0, %s19
    %s23 = sphi 0, %s22
    %s39 = sphi 0, %s23
    %s43 = sphi 0, %s43
    %s45 = sphi 0, %s43
    %s46 = sphi 0, %s45
    %s60 = sphi 0, %s46
    %s64 = sphi 0, %s64
    %s66 = sphi 0, %s64
    %s67 = sphi 0, %s66
    %s81 = sphi 0, %s67
    %s87 = sphi 0, %s89
    %s90 = sphi 0, %s87
    %s91 = sphi 0, %s90
    %s107 = sphi 0, %s91
  $region4: #{conv_block_forward.5} parent=0 // loop_header_branch
    %12 = sbr.rel (%p10) target = $region8
  $region5: #{conv_block_forward.5} parent=0 // loop_body
    %s14 = ssub.s32 %s9, 1
    %s15 = ssub.s32 %s9, 2
    %s16 = sadd.s32 %s9, 1
    %s17 = ssub.s32 %s9, %s16
    %p18 = scmp.eq.s32.totalorder %s17, 0
    %s20 = sadd.s32 %s19, 1
    %s21 = scalar_select %p18, %s19, %s20
    %p24 = pneg %p18
    %p25 = scmp.eq.s32.totalorder %s9, 1
    %p26 = por %p24, %p25
    %p27 = scmp.ne.s32.totalorder %s19, %s22
    %p28 = scmp.eq.s32.totalorder %s9, 0
    %p29 = por %p27, %p28
    %p30 = scmp.ne.s32.totalorder %s19, %s22
    %p31 = scmp.eq.s32.totalorder %s14, 1
    %p32 = por %p30, %p31
    %p33 = scmp.ne.s32.totalorder %s22, %s23
    %p34 = scmp.eq.s32.totalorder %s14, 0
    %p35 = por %p33, %p34
    %p36 = scmp.ne.s32.totalorder %s22, %s23
    %p37 = scmp.eq.s32.totalorder %s15, 1
    %p38 = por %p36, %p37
    %p40 = scmp.ne.s32.totalorder %s23, %s39
    %p41 = scmp.eq.s32.totalorder %s15, 0
    %p42 = por %p40, %p41
    %s44 = sadd.s32 %s43, 1
    %p47 = scmp.eq.s32.totalorder %s9, 1
    %p48 = scmp.ne.s32.totalorder %s43, %s45
    %p49 = scmp.eq.s32.totalorder %s9, 0
    %p50 = por %p48, %p49
    %p51 = scmp.ne.s32.totalorder %s43, %s45
    %p52 = scmp.eq.s32.totalorder %s14, 1
    %p53 = por %p51, %p52
    %p54 = scmp.ne.s32.totalorder %s45, %s46
    %p55 = scmp.eq.s32.totalorder %s14, 0
    %p56 = por %p54, %p55
    %p57 = scmp.ne.s32.totalorder %s45, %s46
    %p58 = scmp.eq.s32.totalorder %s15, 1
    %p59 = por %p57, %p58
    %p61 = scmp.ne.s32.totalorder %s46, %s60
    %p62 = scmp.eq.s32.totalorder %s15, 0
    %p63 = por %p61, %p62
    %s65 = sadd.s32 %s64, 1
    %p68 = scmp.eq.s32.totalorder %s9, 1
    %p69 = scmp.ne.s32.totalorder %s64, %s66
    %p70 = scmp.eq.s32.totalorder %s9, 0
    %p71 = por %p69, %p70
    %p72 = scmp.ne.s32.totalorder %s64, %s66
    %p73 = scmp.eq.s32.totalorder %s14, 1
    %p74 = por %p72, %p73
    %p75 = scmp.ne.s32.totalorder %s66, %s67
    %p76 = scmp.eq.s32.totalorder %s14, 0
    %p77 = por %p75, %p76
    %p78 = scmp.ne.s32.totalorder %s66, %s67
    %p79 = scmp.eq.s32.totalorder %s15, 1
    %p80 = por %p78, %p79
    %p82 = scmp.ne.s32.totalorder %s67, %s81
    %p83 = scmp.eq.s32.totalorder %s15, 0
    %p84 = por %p82, %p83
    %s85 = ssub.s32 %s9, %s16
    %p86 = scmp.eq.s32.totalorder %s85, 0
    %s88 = sadd.s32 %s87, 1
    %s89 = scalar_select %p86, %s87, %s88
    %p92 = pneg %p86
    %p93 = scmp.eq.s32.totalorder %s9, 1
    %p94 = por %p92, %p93
    %p95 = scmp.ne.s32.totalorder %s87, %s90
    %p96 = scmp.eq.s32.totalorder %s9, 0
    %p97 = por %p95, %p96
    %p98 = scmp.ne.s32.totalorder %s87, %s90
    %p99 = scmp.eq.s32.totalorder %s14, 1
    %p100 = por %p98, %p99
    %p101 = scmp.ne.s32.totalorder %s90, %s91
    %p102 = scmp.eq.s32.totalorder %s14, 0
    %p103 = por %p101, %p102
    %p104 = scmp.ne.s32.totalorder %s90, %s91
    %p105 = scmp.eq.s32.totalorder %s15, 1
    %p106 = por %p104, %p105
    %p108 = scmp.ne.s32.totalorder %s91, %s107
    %p109 = scmp.eq.s32.totalorder %s15, 0
    %p110 = por %p108, %p109
    %p111 = scmp.le.s32.totalorder 1, %s9
    %p112 = scmp.lt.s32.totalorder %s9, 3
    %p113 = pnand %p111, %p112
    %p114 = pneg %p113
    // Predicated region
    $region9: #{conv_block_forward.5} parent=5 // pred_check
      _
    $region10: #{conv_block_forward.5} parent=5 // pred_check_branch
      %116 = sbr.rel (%p113) target = $region12
    $region11: #{conv_block_forward.5} parent=5 // pred_region
      %s117 = ssub.s32 %s9, 1
      // Predicated region
      $region13: #{conv_block_forward.5} parent=11 // pred_check
        %p118 = pneg %p56
      $region14: #{conv_block_forward.5} parent=11 // pred_check_branch
        %120 = sbr.rel (%p118) target = $region16
      $region15: #{conv_block_forward.5} parent=11 // pred_region
        _
      $region16: #{conv_block_forward.5} parent=11 // pred_fallthru
        _
      // Predicated region
      $region17: #{conv_block_forward.5} parent=11 // pred_check
        %p121 = pneg %p77
      $region18: #{conv_block_forward.5} parent=11 // pred_check_branch
        %123 = sbr.rel (%p121) target = $region20
      $region19: #{conv_block_forward.5} parent=11 // pred_region
        _
      $region20: #{conv_block_forward.5} parent=11 // pred_fallthru
        _
    $region12: #{conv_block_forward.5} parent=5 // pred_fallthru
      _
    %p124 = scmp.lt.s32.totalorder %s9, 2
    // Predicated region
    $region21: #{conv_block_forward.5} parent=5 // pred_check
      %p125 = pneg %p124
    $region22: #{conv_block_forward.5} parent=5 // pred_check_branch
      %127 = sbr.rel (%p125) target = $region24
    $region23: #{conv_block_forward.5} parent=5 // pred_region
      // Predicated region
      $region25: #{conv_block_forward.5} parent=23 // pred_check
        %p128 = pneg %p29
      $region26: #{conv_block_forward.5} parent=23 // pred_check_branch
        %130 = sbr.rel (%p128) target = $region28
      $region27: #{conv_block_forward.5} parent=23 // pred_region
        %p131 = scmp.lt.s32.totalorder %s9, 1
        %s132 = scalar_select %p131, %s9, 1
        %s133 = smul.addr %s132, 32
        %s134 = smul.addr %s133, 8
        %s135 = scalar_lea.vmem %s0, %s134
      $region28: #{conv_block_forward.5} parent=23 // pred_fallthru
        _
    $region24: #{conv_block_forward.5} parent=5 // pred_fallthru
      _
    %p136 = scmp.le.s32.totalorder 1, %s9
    %p137 = scmp.lt.s32.totalorder %s9, 3
    %p138 = pnand %p136, %p137
    %p139 = pneg %p138
    // Predicated region
    $region29: #{conv_block_forward.5} parent=5 // pred_check
      _
    $region30: #{conv_block_forward.5} parent=5 // pred_check_branch
      %141 = sbr.rel (%p138) target = $region32
    $region31: #{conv_block_forward.5} parent=5 // pred_region
      %s142 = ssub.s32 %s9, 1
      %p143 = scmp.lt.s32.totalorder %s14, 1
      %s144 = scalar_select %p143, %s14, 1
      %s145 = smul.addr %s144, 32
      %s146 = smul.addr %s145, 8
      %s147 = scalar_lea.vmem %s0, %s146
      %p148 = pneg %p35
      %p149 = pneg %p32
      %p150 = pneg %p56
      %p151 = pneg %p53
      %p152 = pneg %p77
      %p153 = pneg %p74
      %p154 = pneg %p103
      %p155 = pneg %p100
      %p156 = scmp.lt.s32.totalorder %s14, 1
      %s157 = scalar_select %p156, %s14, 1
      %s158 = smul.addr %s157, 32
      %s159 = smul.addr %s158, 4
      %s160 = scalar_lea.vmem %s3, %s159
      %p161 = scmp.lt.s32.totalorder %s14, 1
      %s162 = scalar_select %p161, %s14, 1
      %s163 = smul.addr %s162, 32
      %s164 = smul.addr %s163, 8
      %s165 = scalar_lea.vmem %s0, %s164
      %p166 = scmp.lt.s32.totalorder %s14, 1
      %s167 = scalar_select %p166, %s14, 1
      %s168 = smul.addr %s167, 32
      %s169 = smul.addr %s168, 4
      %s170 = scalar_lea.vmem %s3, %s169
      %v171 = vld [vmem:[%s165] sm:$0xff]
      %v172 = vld [vmem:[%s165 + $0x8] sm:$0xff]
      %v173 = vld [vmem:[%s165 + $0x10] sm:$0xff]
      %v174 = vld [vmem:[%s165 + $0x18] sm:$0xff]
      %v175 = vld [vmem:[%s165 + $0x20] sm:$0xff]
      %v176 = vld [vmem:[%s165 + $0x28] sm:$0xff]
      %v177 = vld [vmem:[%s165 + $0x30] sm:$0xff]
      %v178 = vld [vmem:[%s165 + $0x38] sm:$0xff]
      %v179 = vld [vmem:[%s165 + $0x40] sm:$0xff]
      %v180 = vld [vmem:[%s165 + $0x48] sm:$0xff]
      %v181 = vld [vmem:[%s165 + $0x50] sm:$0xff]
      %v182 = vld [vmem:[%s165 + $0x58] sm:$0xff]
      %v183 = vld [vmem:[%s165 + $0x60] sm:$0xff]
      %v184 = vld [vmem:[%s165 + $0x68] sm:$0xff]
      %v185 = vld [vmem:[%s165 + $0x70] sm:$0xff]
      %v186 = vld [vmem:[%s165 + $0x78] sm:$0xff]
      %v187 = vld [vmem:[%s165 + $0x80] sm:$0xff]
      %v188 = vld [vmem:[%s165 + $0x88] sm:$0xff]
      %v189 = vld [vmem:[%s165 + $0x90] sm:$0xff]
      %v190 = vld [vmem:[%s165 + $0x98] sm:$0xff]
      %v191 = vld [vmem:[%s165 + $0xa0] sm:$0xff]
      %v192 = vld [vmem:[%s165 + $0xa8] sm:$0xff]
      %v193 = vld [vmem:[%s165 + $0xb0] sm:$0xff]
      %v194 = vld [vmem:[%s165 + $0xb8] sm:$0xff]
      %v195 = vld [vmem:[%s165 + $0xc0] sm:$0xff]
      %v196 = vld [vmem:[%s165 + $0xc8] sm:$0xff]
      %v197 = vld [vmem:[%s165 + $0xd0] sm:$0xff]
      %v198 = vld [vmem:[%s165 + $0xd8] sm:$0xff]
      %v199 = vld [vmem:[%s165 + $0xe0] sm:$0xff]
      %v200 = vld [vmem:[%s165 + $0xe8] sm:$0xff]
      %v201 = vld [vmem:[%s165 + $0xf0] sm:$0xff]
      %v202 = vld [vmem:[%s165 + $0xf8] sm:$0xff]
      %v203 = vld [vmem:[%s1] sm:$0x1]
      %v205 = vlaneseq
      %v206 = vshrl.u32 %v205, 7
      %v207 = vsub.s32 0, %v206
      %v208 = vrot.slane %v203, %v207
      %v210 = vmul.f32 %v171, %v208
      %v211 = vmul.f32 %v172, %v208
      %v212 = vmul.f32 %v173, %v208
      %v213 = vmul.f32 %v174, %v208
      %v214 = vmul.f32 %v175, %v208
      %v215 = vmul.f32 %v176, %v208
      %v216 = vmul.f32 %v177, %v208
      %v217 = vmul.f32 %v178, %v208
      %v218 = vmul.f32 %v179, %v208
      %v219 = vmul.f32 %v180, %v208
      %v220 = vmul.f32 %v181, %v208
      %v221 = vmul.f32 %v182, %v208
      %v222 = vmul.f32 %v183, %v208
      %v223 = vmul.f32 %v184, %v208
      %v224 = vmul.f32 %v185, %v208
      %v225 = vmul.f32 %v186, %v208
      %v226 = vmul.f32 %v187, %v208
      %v227 = vmul.f32 %v188, %v208
      %v228 = vmul.f32 %v189, %v208
      %v229 = vmul.f32 %v190, %v208
      %v230 = vmul.f32 %v191, %v208
      %v231 = vmul.f32 %v192, %v208
      %v232 = vmul.f32 %v193, %v208
      %v233 = vmul.f32 %v194, %v208
      %v234 = vmul.f32 %v195, %v208
      %v235 = vmul.f32 %v196, %v208
      %v236 = vmul.f32 %v197, %v208
      %v237 = vmul.f32 %v198, %v208
      %v238 = vmul.f32 %v199, %v208
      %v239 = vmul.f32 %v200, %v208
      %v240 = vmul.f32 %v201, %v208
      %v241 = vmul.f32 %v202, %v208
      %v242 = vld [vmem:[%s2] sm:$0x1]
      %v244 = vlaneseq
      %v245 = vshrl.u32 %v244, 7
      %v246 = vsub.s32 0, %v245
      %v247 = vrot.slane %v242, %v246
      %v249 = vadd.f32 %v210, %v247
      %v250 = vadd.f32 %v211, %v247
      %v251 = vadd.f32 %v212, %v247
      %v252 = vadd.f32 %v213, %v247
      %v253 = vadd.f32 %v214, %v247
      %v254 = vadd.f32 %v215, %v247
      %v255 = vadd.f32 %v216, %v247
      %v256 = vadd.f32 %v217, %v247
      %v257 = vadd.f32 %v218, %v247
      %v258 = vadd.f32 %v219, %v247
      %v259 = vadd.f32 %v220, %v247
      %v260 = vadd.f32 %v221, %v247
      %v261 = vadd.f32 %v222, %v247
      %v262 = vadd.f32 %v223, %v247
      %v263 = vadd.f32 %v224, %v247
      %v264 = vadd.f32 %v225, %v247
      %v265 = vadd.f32 %v226, %v247
      %v266 = vadd.f32 %v227, %v247
      %v267 = vadd.f32 %v228, %v247
      %v268 = vadd.f32 %v229, %v247
      %v269 = vadd.f32 %v230, %v247
      %v270 = vadd.f32 %v231, %v247
      %v271 = vadd.f32 %v232, %v247
      %v272 = vadd.f32 %v233, %v247
      %v273 = vadd.f32 %v234, %v247
      %v274 = vadd.f32 %v235, %v247
      %v275 = vadd.f32 %v236, %v247
      %v276 = vadd.f32 %v237, %v247
      %v277 = vadd.f32 %v238, %v247
      %v278 = vadd.f32 %v239, %v247
      %v279 = vadd.f32 %v240, %v247
      %v280 = vadd.f32 %v241, %v247
      %v281 = vmax.f32 %v249, 0.0
      %v282 = vmax.f32 %v250, 0.0
      %v283 = vmax.f32 %v251, 0.0
      %v284 = vmax.f32 %v252, 0.0
      %v285 = vmax.f32 %v253, 0.0
      %v286 = vmax.f32 %v254, 0.0
      %v287 = vmax.f32 %v255, 0.0
      %v288 = vmax.f32 %v256, 0.0
      %v289 = vmax.f32 %v257, 0.0
      %v290 = vmax.f32 %v258, 0.0
      %v291 = vmax.f32 %v259, 0.0
      %v292 = vmax.f32 %v260, 0.0
      %v293 = vmax.f32 %v261, 0.0
      %v294 = vmax.f32 %v262, 0.0
      %v295 = vmax.f32 %v263, 0.0
      %v296 = vmax.f32 %v264, 0.0
      %v297 = vmax.f32 %v265, 0.0
      %v298 = vmax.f32 %v266, 0.0
      %v299 = vmax.f32 %v267, 0.0
      %v300 = vmax.f32 %v268, 0.0
      %v301 = vmax.f32 %v269, 0.0
      %v302 = vmax.f32 %v270, 0.0
      %v303 = vmax.f32 %v271, 0.0
      %v304 = vmax.f32 %v272, 0.0
      %v305 = vmax.f32 %v273, 0.0
      %v306 = vmax.f32 %v274, 0.0
      %v307 = vmax.f32 %v275, 0.0
      %v308 = vmax.f32 %v276, 0.0
      %v309 = vmax.f32 %v277, 0.0
      %v310 = vmax.f32 %v278, 0.0
      %v311 = vmax.f32 %v279, 0.0
      %v312 = vmax.f32 %v280, 0.0
      %v313 = vpack.c.bf16 %v282, %v281
      %v314 = vpack.c.bf16 %v284, %v283
      %v315 = vpack.c.bf16 %v286, %v285
      %v316 = vpack.c.bf16 %v288, %v287
      %v317 = vpack.c.bf16 %v290, %v289
      %v318 = vpack.c.bf16 %v292, %v291
      %v319 = vpack.c.bf16 %v294, %v293
      %v320 = vpack.c.bf16 %v296, %v295
      %v321 = vpack.c.bf16 %v298, %v297
      %v322 = vpack.c.bf16 %v300, %v299
      %v323 = vpack.c.bf16 %v302, %v301
      %v324 = vpack.c.bf16 %v304, %v303
      %v325 = vpack.c.bf16 %v306, %v305
      %v326 = vpack.c.bf16 %v308, %v307
      %v327 = vpack.c.bf16 %v310, %v309
      %v328 = vpack.c.bf16 %v312, %v311
      %v345 = vunpack.c.l.b16 %v313
      %v346 = vunpack.c.h.b16 %v313
      %v347 = vunpack.c.l.b16 %v314
      %v348 = vunpack.c.h.b16 %v314
      %v349 = vunpack.c.l.b16 %v315
      %v350 = vunpack.c.h.b16 %v315
      %v351 = vunpack.c.l.b16 %v316
      %v352 = vunpack.c.h.b16 %v316
      %v353 = vunpack.c.l.b16 %v317
      %v354 = vunpack.c.h.b16 %v317
      %v355 = vunpack.c.l.b16 %v318
      %v356 = vunpack.c.h.b16 %v318
      %v357 = vunpack.c.l.b16 %v319
      %v358 = vunpack.c.h.b16 %v319
      %v359 = vunpack.c.l.b16 %v320
      %v360 = vunpack.c.h.b16 %v320
      %v361 = vunpack.c.l.b16 %v321
      %v362 = vunpack.c.h.b16 %v321
      %v363 = vunpack.c.l.b16 %v322
      %v364 = vunpack.c.h.b16 %v322
      %v365 = vunpack.c.l.b16 %v323
      %v366 = vunpack.c.h.b16 %v323
      %v367 = vunpack.c.l.b16 %v324
      %v368 = vunpack.c.h.b16 %v324
      %v369 = vunpack.c.l.b16 %v325
      %v370 = vunpack.c.h.b16 %v325
      %v371 = vunpack.c.l.b16 %v326
      %v372 = vunpack.c.h.b16 %v326
      %v373 = vunpack.c.l.b16 %v327
      %v374 = vunpack.c.h.b16 %v327
      %v375 = vunpack.c.l.b16 %v328
      %v376 = vunpack.c.h.b16 %v328
      %v377 = vpack.c.b16 %v345, %v345
      %v378 = vpack.c.b16 %v346, %v346
      %v379 = vpack.c.b16 %v347, %v347
      %v380 = vpack.c.b16 %v348, %v348
      %v381 = vpack.c.b16 %v349, %v349
      %v382 = vpack.c.b16 %v350, %v350
      %v383 = vpack.c.b16 %v351, %v351
      %v384 = vpack.c.b16 %v352, %v352
      %v385 = vpack.c.b16 %v353, %v353
      %v386 = vpack.c.b16 %v354, %v354
      %v387 = vpack.c.b16 %v355, %v355
      %v388 = vpack.c.b16 %v356, %v356
      %v389 = vpack.c.b16 %v357, %v357
      %v390 = vpack.c.b16 %v358, %v358
      %v391 = vpack.c.b16 %v359, %v359
      %v392 = vpack.c.b16 %v360, %v360
      %v393 = vpack.c.b16 %v361, %v361
      %v394 = vpack.c.b16 %v362, %v362
      %v395 = vpack.c.b16 %v363, %v363
      %v396 = vpack.c.b16 %v364, %v364
      %v397 = vpack.c.b16 %v365, %v365
      %v398 = vpack.c.b16 %v366, %v366
      %v399 = vpack.c.b16 %v367, %v367
      %v400 = vpack.c.b16 %v368, %v368
      %v401 = vpack.c.b16 %v369, %v369
      %v402 = vpack.c.b16 %v370, %v370
      %v403 = vpack.c.b16 %v371, %v371
      %v404 = vpack.c.b16 %v372, %v372
      %v405 = vpack.c.b16 %v373, %v373
      %v406 = vpack.c.b16 %v374, %v374
      %v407 = vpack.c.b16 %v375, %v375
      %v408 = vpack.c.b16 %v376, %v376
      %441 = vst [vmem:[%s170] sm:$0xf] %v377
      %442 = vst [vmem:[%s170 + $0x4] sm:$0xf] %v378
      %443 = vst [vmem:[%s170 + $0x8] sm:$0xf] %v379
      %444 = vst [vmem:[%s170 + $0xc] sm:$0xf] %v380
      %445 = vst [vmem:[%s170 + $0x10] sm:$0xf] %v381
      %446 = vst [vmem:[%s170 + $0x14] sm:$0xf] %v382
      %447 = vst [vmem:[%s170 + $0x18] sm:$0xf] %v383
      %448 = vst [vmem:[%s170 + $0x1c] sm:$0xf] %v384
      %449 = vst [vmem:[%s170 + $0x20] sm:$0xf] %v385
      %450 = vst [vmem:[%s170 + $0x24] sm:$0xf] %v386
      %451 = vst [vmem:[%s170 + $0x28] sm:$0xf] %v387
      %452 = vst [vmem:[%s170 + $0x2c] sm:$0xf] %v388
      %453 = vst [vmem:[%s170 + $0x30] sm:$0xf] %v389
      %454 = vst [vmem:[%s170 + $0x34] sm:$0xf] %v390
      %455 = vst [vmem:[%s170 + $0x38] sm:$0xf] %v391
      %456 = vst [vmem:[%s170 + $0x3c] sm:$0xf] %v392
      %457 = vst [vmem:[%s170 + $0x40] sm:$0xf] %v393
      %458 = vst [vmem:[%s170 + $0x44] sm:$0xf] %v394
      %459 = vst [vmem:[%s170 + $0x48] sm:$0xf] %v395
      %460 = vst [vmem:[%s170 + $0x4c] sm:$0xf] %v396
      %461 = vst [vmem:[%s170 + $0x50] sm:$0xf] %v397
      %462 = vst [vmem:[%s170 + $0x54] sm:$0xf] %v398
      %463 = vst [vmem:[%s170 + $0x58] sm:$0xf] %v399
      %464 = vst [vmem:[%s170 + $0x5c] sm:$0xf] %v400
      %465 = vst [vmem:[%s170 + $0x60] sm:$0xf] %v401
      %466 = vst [vmem:[%s170 + $0x64] sm:$0xf] %v402
      %467 = vst [vmem:[%s170 + $0x68] sm:$0xf] %v403
      %468 = vst [vmem:[%s170 + $0x6c] sm:$0xf] %v404
      %469 = vst [vmem:[%s170 + $0x70] sm:$0xf] %v405
      %470 = vst [vmem:[%s170 + $0x74] sm:$0xf] %v406
      %471 = vst [vmem:[%s170 + $0x78] sm:$0xf] %v407
      %472 = vst [vmem:[%s170 + $0x7c] sm:$0xf] %v408
      %p473 = scmp.lt.s32.totalorder %s14, 1
      %s474 = scalar_select %p473, %s14, 1
      %s475 = smul.addr %s474, 32
      %s476 = smul.addr %s475, 4
      %s477 = scalar_lea.vmem %s3, %s476
      // Predicated region
      $region33: #{conv_block_forward.5} parent=31 // pred_check
        %p478 = pneg %p100
      $region34: #{conv_block_forward.5} parent=31 // pred_check_branch
        %480 = sbr.rel (%p478) target = $region36
      $region35: #{conv_block_forward.5} parent=31 // pred_region
        _
      $region36: #{conv_block_forward.5} parent=31 // pred_fallthru
        _
    $region32: #{conv_block_forward.5} parent=5 // pred_fallthru
      _
    %p481 = scmp.le.s32.totalorder 2, %s9
    // Predicated region
    $region37: #{conv_block_forward.5} parent=5 // pred_check
      %p482 = pneg %p481
    $region38: #{conv_block_forward.5} parent=5 // pred_check_branch
      %484 = sbr.rel (%p482) target = $region40
    $region39: #{conv_block_forward.5} parent=5 // pred_region
      %s485 = ssub.s32 %s9, 2
      // Predicated region
      $region41: #{conv_block_forward.5} parent=39 // pred_check
        %p486 = pneg %p106
      $region42: #{conv_block_forward.5} parent=39 // pred_check_branch
        %488 = sbr.rel (%p486) target = $region44
      $region43: #{conv_block_forward.5} parent=39 // pred_region
        %p489 = scmp.lt.s32.totalorder %s15, 1
        %s490 = scalar_select %p489, %s15, 1
        %s491 = smul.addr %s490, 32
        %s492 = smul.addr %s491, 4
        %s493 = scalar_lea.vmem %s3, %s492
      $region44: #{conv_block_forward.5} parent=39 // pred_fallthru
        _
    $region40: #{conv_block_forward.5} parent=5 // pred_fallthru
      _
  $region6: #{conv_block_forward.5} parent=0 // loop_footer
    %s13 = sadd.s32 1, %s9
  $region7: #{conv_block_forward.5} parent=0 // loop_footer_branch
    %8 = sbr.rel target = $region3
  $region8: #{conv_block_forward.5} parent=0 // loop_exit
    _

// kernel: conv_block_forward.4
$region0: #{conv_block_forward.4}
  #allocation0 [shape = 'u32[]', space=smem, size = 0x4, offset = 0x4, fixed_abs, tag = 'smem constant byte address 0x4 - core index']
  #allocation1 [shape = 'u32[144,128]{1,0:T(1,128)}', space=vmem, size = 0x12000, scoped, tag = 'internal scratch']
  %s0 = inlined_call_operand.vmem [shape: bf16[2,3,288,128], index: 0, kind: input, shape index: {}]
  %s1 = inlined_call_operand.vmem [shape: bf16[9,128,128], index: 1, kind: input, shape index: {}]
  %s2 = inlined_call_operand.vmem [shape: f32[2,256,128], index: 2, kind: output, shape index: {0}]
  %s3 = inlined_call_operand.vmem [shape: f32[2,2,128], index: 3, kind: output, shape index: {1}]
  %4 = xla_tuple %s2, %s3
  %s5 = sld [smem:[#allocation0]]
  $region49: #{conv_block_forward.4} parent=0
    _
  %s7 = ssub.s32 1, %s5
  %s8 = scalar_select 0, %s7, %s5
  loop: start=0, step=1, limit=4
  $region2: #{conv_block_forward.4} parent=0 // loop_pre_header
    _
  $region3: #{conv_block_forward.4} parent=0 // loop_header
    %s10 = sphi 0, %s14
    %p11 = scmp.ge.s32.totalorder %s10, 4
    %s20 = sphi 0, %s22
    %s23 = sphi 0, %s20
    %s24 = sphi 0, %s23
    %s40 = sphi 0, %s24
    %s44 = sphi 0, %s44
    %s46 = sphi 0, %s44
    %s47 = sphi 0, %s46
    %s61 = sphi 0, %s47
    %s67 = sphi 0, %s69
    %s70 = sphi 0, %s67
    %s71 = sphi 0, %s70
    %s87 = sphi 0, %s71
    %s93 = sphi 0, %s95
    %s96 = sphi 0, %s93
    %s97 = sphi 0, %s96
    %s113 = sphi 0, %s97
  $region4: #{conv_block_forward.4} parent=0 // loop_header_branch
    %13 = sbr.rel (%p11) target = $region8
  $region5: #{conv_block_forward.4} parent=0 // loop_body
    %s15 = ssub.s32 %s10, 1
    %s16 = ssub.s32 %s10, 2
    %s17 = sadd.s32 %s10, 1
    %s18 = ssub.s32 %s10, %s17
    %p19 = scmp.eq.s32.totalorder %s18, 0
    %s21 = sadd.s32 %s20, 1
    %s22 = scalar_select %p19, %s20, %s21
    %p25 = pneg %p19
    %p26 = scmp.eq.s32.totalorder %s10, 1
    %p27 = por %p25, %p26
    %p28 = scmp.ne.s32.totalorder %s20, %s23
    %p29 = scmp.eq.s32.totalorder %s10, 0
    %p30 = por %p28, %p29
    %p31 = scmp.ne.s32.totalorder %s20, %s23
    %p32 = scmp.eq.s32.totalorder %s15, 1
    %p33 = por %p31, %p32
    %p34 = scmp.ne.s32.totalorder %s23, %s24
    %p35 = scmp.eq.s32.totalorder %s15, 0
    %p36 = por %p34, %p35
    %p37 = scmp.ne.s32.totalorder %s23, %s24
    %p38 = scmp.eq.s32.totalorder %s16, 1
    %p39 = por %p37, %p38
    %p41 = scmp.ne.s32.totalorder %s24, %s40
    %p42 = scmp.eq.s32.totalorder %s16, 0
    %p43 = por %p41, %p42
    %s45 = sadd.s32 %s44, 1
    %p48 = scmp.eq.s32.totalorder %s10, 1
    %p49 = scmp.ne.s32.totalorder %s44, %s46
    %p50 = scmp.eq.s32.totalorder %s10, 0
    %p51 = por %p49, %p50
    %p52 = scmp.ne.s32.totalorder %s44, %s46
    %p53 = scmp.eq.s32.totalorder %s15, 1
    %p54 = por %p52, %p53
    %p55 = scmp.ne.s32.totalorder %s46, %s47
    %p56 = scmp.eq.s32.totalorder %s15, 0
    %p57 = por %p55, %p56
    %p58 = scmp.ne.s32.totalorder %s46, %s47
    %p59 = scmp.eq.s32.totalorder %s16, 1
    %p60 = por %p58, %p59
    %p62 = scmp.ne.s32.totalorder %s47, %s61
    %p63 = scmp.eq.s32.totalorder %s16, 0
    %p64 = por %p62, %p63
    %s65 = ssub.s32 %s10, %s17
    %p66 = scmp.eq.s32.totalorder %s65, 0
    %s68 = sadd.s32 %s67, 1
    %s69 = scalar_select %p66, %s67, %s68
    %p72 = pneg %p66
    %p73 = scmp.eq.s32.totalorder %s10, 1
    %p74 = por %p72, %p73
    %p75 = scmp.ne.s32.totalorder %s67, %s70
    %p76 = scmp.eq.s32.totalorder %s10, 0
    %p77 = por %p75, %p76
    %p78 = scmp.ne.s32.totalorder %s67, %s70
    %p79 = scmp.eq.s32.totalorder %s15, 1
    %p80 = por %p78, %p79
    %p81 = scmp.ne.s32.totalorder %s70, %s71
    %p82 = scmp.eq.s32.totalorder %s15, 0
    %p83 = por %p81, %p82
    %p84 = scmp.ne.s32.totalorder %s70, %s71
    %p85 = scmp.eq.s32.totalorder %s16, 1
    %p86 = por %p84, %p85
    %p88 = scmp.ne.s32.totalorder %s71, %s87
    %p89 = scmp.eq.s32.totalorder %s16, 0
    %p90 = por %p88, %p89
    %s91 = ssub.s32 %s10, %s17
    %p92 = scmp.eq.s32.totalorder %s91, 0
    %s94 = sadd.s32 %s93, 1
    %s95 = scalar_select %p92, %s93, %s94
    %p98 = pneg %p92
    %p99 = scmp.eq.s32.totalorder %s10, 1
    %p100 = por %p98, %p99
    %p101 = scmp.ne.s32.totalorder %s93, %s96
    %p102 = scmp.eq.s32.totalorder %s10, 0
    %p103 = por %p101, %p102
    %p104 = scmp.ne.s32.totalorder %s93, %s96
    %p105 = scmp.eq.s32.totalorder %s15, 1
    %p106 = por %p104, %p105
    %p107 = scmp.ne.s32.totalorder %s96, %s97
    %p108 = scmp.eq.s32.totalorder %s15, 0
    %p109 = por %p107, %p108
    %p110 = scmp.ne.s32.totalorder %s96, %s97
    %p111 = scmp.eq.s32.totalorder %s16, 1
    %p112 = por %p110, %p111
    %p114 = scmp.ne.s32.totalorder %s97, %s113
    %p115 = scmp.eq.s32.totalorder %s16, 0
    %p116 = por %p114, %p115
    %p117 = scmp.le.s32.totalorder 1, %s10
    %p118 = scmp.lt.s32.totalorder %s10, 3
    %p119 = pnand %p117, %p118
    %p120 = pneg %p119
    // Predicated region
    $region9: #{conv_block_forward.4} parent=5 // pred_check
      _
    $region10: #{conv_block_forward.4} parent=5 // pred_check_branch
      %122 = sbr.rel (%p119) target = $region12
    $region11: #{conv_block_forward.4} parent=5 // pred_region
      %s123 = ssub.s32 %s10, 1
      // Predicated region
      $region13: #{conv_block_forward.4} parent=11 // pred_check
        %p124 = pneg %p57
      $region14: #{conv_block_forward.4} parent=11 // pred_check_branch
        %126 = sbr.rel (%p124) target = $region16
      $region15: #{conv_block_forward.4} parent=11 // pred_region
        _
      $region16: #{conv_block_forward.4} parent=11 // pred_fallthru
        _
    $region12: #{conv_block_forward.4} parent=5 // pred_fallthru
      _
    %p127 = scmp.lt.s32.totalorder %s10, 2
    // Predicated region
    $region17: #{conv_block_forward.4} parent=5 // pred_check
      %p128 = pneg %p127
    $region18: #{conv_block_forward.4} parent=5 // pred_check_branch
      %130 = sbr.rel (%p128) target = $region20
    $region19: #{conv_block_forward.4} parent=5 // pred_region
      // Predicated region
      $region21: #{conv_block_forward.4} parent=19 // pred_check
        %p131 = pneg %p30
      $region22: #{conv_block_forward.4} parent=19 // pred_check_branch
        %133 = sbr.rel (%p131) target = $region24
      $region23: #{conv_block_forward.4} parent=19 // pred_region
        %p134 = scmp.lt.s32.totalorder %s10, 1
        %s135 = scalar_select %p134, %s10, 1
        %s136 = smul.addr %s135, 108
        %s137 = smul.addr %s136, 4
        %s138 = scalar_lea.vmem %s0, %s137
      $region24: #{conv_block_forward.4} parent=19 // pred_fallthru
        _
    $region20: #{conv_block_forward.4} parent=5 // pred_fallthru
      _
    %p139 = scmp.le.s32.totalorder 1, %s10
    %p140 = scmp.lt.s32.totalorder %s10, 3
    %p141 = pnand %p139, %p140
    %p142 = pneg %p141
    // Predicated region
    $region25: #{conv_block_forward.4} parent=5 // pred_check
      _
    $region26: #{conv_block_forward.4} parent=5 // pred_check_branch
      %144 = sbr.rel (%p141) target = $region28
    $region27: #{conv_block_forward.4} parent=5 // pred_region
      %s145 = ssub.s32 %s10, 1
      %p146 = scmp.lt.s32.totalorder %s15, 1
      %s147 = scalar_select %p146, %s15, 1
      %s148 = smul.addr %s147, 108
      %s149 = smul.addr %s148, 4
      %s150 = scalar_lea.vmem %s0, %s149
      %p151 = pneg %p36
      %p152 = pneg %p33
      %p153 = pneg %p57
      %p154 = pneg %p54
      %p155 = pneg %p83
      %p156 = pneg %p80
      %p157 = scmp.lt.s32.totalorder %s15, 1
      %s158 = scalar_select %p157, %s15, 1
      %s159 = smul.addr %s158, 32
      %s160 = smul.addr %s159, 8
      %s161 = scalar_lea.vmem %s2, %s160
      %p162 = pneg %p109
      %p163 = pneg %p106
      %p164 = scmp.lt.s32.totalorder %s15, 1
      %s165 = scalar_select %p164, %s15, 1
      %s166 = smul.addr %s165, 2
      %s167 = scalar_lea.vmem %s3, %s166
      %p168 = scmp.lt.s32.totalorder %s15, 1
      %s169 = scalar_select %p168, %s15, 1
      %s170 = smul.addr %s169, 108
      %s171 = smul.addr %s170, 4
      %s172 = scalar_lea.vmem %s0, %s171
      %p173 = scmp.lt.s32.totalorder %s15, 1
      %s174 = scalar_select %p173, %s15, 1
      %s175 = smul.addr %s174, 32
      %s176 = smul.addr %s175, 8
      %s177 = scalar_lea.vmem %s2, %s176
      %p178 = scmp.lt.s32.totalorder %s15, 1
      %s179 = scalar_select %p178, %s15, 1
      %s180 = smul.addr %s179, 2
      %s181 = scalar_lea.vmem %s3, %s180
      %v183 = vld [vmem:[%s172] sm:$0xf]
      %v184 = vld [vmem:[%s172 + $0x4] sm:$0xf]
      %v185 = vld [vmem:[%s172 + $0x8] sm:$0xf]
      %v186 = vld [vmem:[%s172 + $0xc] sm:$0xf]
      %v187 = vld [vmem:[%s172 + $0x10] sm:$0xf]
      %v188 = vld [vmem:[%s172 + $0x14] sm:$0xf]
      %v189 = vld [vmem:[%s172 + $0x18] sm:$0xf]
      %v190 = vld [vmem:[%s172 + $0x1c] sm:$0xf]
      %v191 = vld [vmem:[%s172 + $0x20] sm:$0xf]
      %v192 = vld [vmem:[%s172 + $0x24] sm:$0xf]
      %v193 = vld [vmem:[%s172 + $0x28] sm:$0xf]
      %v194 = vld [vmem:[%s172 + $0x2c] sm:$0xf]
      %v195 = vld [vmem:[%s172 + $0x30] sm:$0xf]
      %v196 = vld [vmem:[%s172 + $0x34] sm:$0xf]
      %v197 = vld [vmem:[%s172 + $0x38] sm:$0xf]
      %v198 = vld [vmem:[%s172 + $0x3c] sm:$0xf]
      %v199 = vld [vmem:[%s172 + $0x40] sm:$0xf]
      %v200 = vld [vmem:[%s172 + $0x44] sm:$0xf]
      %v201 = vld [vmem:[%s172 + $0x48] sm:$0xf]
      %v202 = vld [vmem:[%s172 + $0x4c] sm:$0xf]
      %v203 = vld [vmem:[%s172 + $0x50] sm:$0xf]
      %v204 = vld [vmem:[%s172 + $0x54] sm:$0xf]
      %v205 = vld [vmem:[%s172 + $0x58] sm:$0xf]
      %v206 = vld [vmem:[%s172 + $0x5c] sm:$0xf]
      %v207 = vld [vmem:[%s172 + $0x60] sm:$0xf]
      %v208 = vld [vmem:[%s172 + $0x64] sm:$0xf]
      %v209 = vld [vmem:[%s172 + $0x68] sm:$0xf]
      %v210 = vld [vmem:[%s172 + $0x6c] sm:$0xf]
      %v211 = vld [vmem:[%s172 + $0x70] sm:$0xf]
      %v212 = vld [vmem:[%s172 + $0x74] sm:$0xf]
      %v213 = vld [vmem:[%s172 + $0x78] sm:$0xf]
      %v214 = vld [vmem:[%s172 + $0x7c] sm:$0xf]
      %v215 = vld [vmem:[%s1] sm:$0xf]
      %v216 = vld [vmem:[%s1 + $0x4] sm:$0xf]
      %v217 = vld [vmem:[%s1 + $0x8] sm:$0xf]
      %v218 = vld [vmem:[%s1 + $0xc] sm:$0xf]
      %v219 = vld [vmem:[%s1 + $0x10] sm:$0xf]
      %v220 = vld [vmem:[%s1 + $0x14] sm:$0xf]
      %v221 = vld [vmem:[%s1 + $0x18] sm:$0xf]
      %v222 = vld [vmem:[%s1 + $0x1c] sm:$0xf]
      %v223 = vld [vmem:[%s1 + $0x20] sm:$0xf]
      %v224 = vld [vmem:[%s1 + $0x24] sm:$0xf]
      %v225 = vld [vmem:[%s1 + $0x28] sm:$0xf]
      %v226 = vld [vmem:[%s1 + $0x2c] sm:$0xf]
      %v227 = vld [vmem:[%s1 + $0x30] sm:$0xf]
      %v228 = vld [vmem:[%s1 + $0x34] sm:$0xf]
      %v229 = vld [vmem:[%s1 + $0x38] sm:$0xf]
      %v230 = vld [vmem:[%s1 + $0x3c] sm:$0xf]
      %s231 = scalar_lea.vmem %s172, 144
      %v232 = vld [vmem:[%s231] sm:$0xf]
      %v233 = vld [vmem:[%s231 + $0x4] sm:$0xf]
      %v234 = vld [vmem:[%s231 + $0x8] sm:$0xf]
      %v235 = vld [vmem:[%s231 + $0xc] sm:$0xf]
      %v236 = vld [vmem:[%s231 + $0x10] sm:$0xf]
      %v237 = vld [vmem:[%s231 + $0x14] sm:$0xf]
      %v238 = vld [vmem:[%s231 + $0x18] sm:$0xf]
      %v239 = vld [vmem:[%s231 + $0x1c] sm:$0xf]
      %v240 = vld [vmem:[%s231 + $0x20] sm:$0xf]
      %v241 = vld [vmem:[%s231 + $0x24] sm:$0xf]
      %v242 = vld [vmem:[%s231 + $0x28] sm:$0xf]
      %v243 = vld [vmem:[%s231 + $0x2c] sm:$0xf]
      %v244 = vld [vmem:[%s231 + $0x30] sm:$0xf]
      %v245 = vld [vmem:[%s231 + $0x34] sm:$0xf]
      %v246 = vld [vmem:[%s231 + $0x38] sm:$0xf]
      %v247 = vld [vmem:[%s231 + $0x3c] sm:$0xf]
      %v248 = vld [vmem:[%s231 + $0x40] sm:$0xf]
      %v249 = vld [vmem:[%s231 + $0x44] sm:$0xf]
      %v250 = vld [vmem:[%s231 + $0x48] sm:$0xf]
      %v251 = vld [vmem:[%s231 + $0x4c] sm:$0xf]
      %v252 = vld [vmem:[%s231 + $0x50] sm:$0xf]
      %v253 = vld [vmem:[%s231 + $0x54] sm:$0xf]
      %v254 = vld [vmem:[%s231 + $0x58] sm:$0xf]
      %v255 = vld [vmem:[%s231 + $0x5c] sm:$0xf]
      %v256 = vld [vmem:[%s231 + $0x60] sm:$0xf]
      %v257 = vld [vmem:[%s231 + $0x64] sm:$0xf]
      %v258 = vld [vmem:[%s231 + $0x68] sm:$0xf]
      %v259 = vld [vmem:[%s231 + $0x6c] sm:$0xf]
      %v260 = vld [vmem:[%s231 + $0x70] sm:$0xf]
      %v261 = vld [vmem:[%s231 + $0x74] sm:$0xf]
      %v262 = vld [vmem:[%s231 + $0x78] sm:$0xf]
      %v263 = vld [vmem:[%s231 + $0x7c] sm:$0xf]
      %s264 = scalar_lea.vmem %s1, 64
      %v265 = vld [vmem:[%s264] sm:$0xf]
      %v266 = vld [vmem:[%s264 + $0x4] sm:$0xf]
      %v267 = vld [vmem:[%s264 + $0x8] sm:$0xf]
      %v268 = vld [vmem:[%s264 + $0xc] sm:$0xf]
      %v269 = vld [vmem:[%s264 + $0x10] sm:$0xf]
      %v270 = vld [vmem:[%s264 + $0x14] sm:$0xf]
      %v271 = vld [vmem:[%s264 + $0x18] sm:$0xf]
      %v272 = vld [vmem:[%s264 + $0x1c] sm:$0xf]
      %v273 = vld [vmem:[%s264 + $0x20] sm:$0xf]
      %v274 = vld [vmem:[%s264 + $0x24] sm:$0xf]
      %v275 = vld [vmem:[%s264 + $0x28] sm:$0xf]
      %v276 = vld [vmem:[%s264 + $0x2c] sm:$0xf]
      %v277 = vld [vmem:[%s264 + $0x30] sm:$0xf]
      %v278 = vld [vmem:[%s264 + $0x34] sm:$0xf]
      %v279 = vld [vmem:[%s264 + $0x38] sm:$0xf]
      %v280 = vld [vmem:[%s264 + $0x3c] sm:$0xf]
      %v313 = vunpack.c.l.b16 %v232
      %v314 = vunpack.c.l.b16 %v233
      %v315 = vunpack.c.l.b16 %v234
      %v316 = vunpack.c.l.b16 %v235
      %v317 = vunpack.c.l.b16 %v236
      %v318 = vunpack.c.l.b16 %v237
      %v319 = vunpack.c.l.b16 %v238
      %v320 = vunpack.c.l.b16 %v239
      %v321 = vunpack.c.l.b16 %v240
      %v322 = vunpack.c.l.b16 %v241
      %v323 = vunpack.c.l.b16 %v242
      %v324 = vunpack.c.l.b16 %v243
      %v325 = vunpack.c.l.b16 %v244
      %v326 = vunpack.c.l.b16 %v245
      %v327 = vunpack.c.l.b16 %v246
      %v328 = vunpack.c.l.b16 %v247
      %v329 = vunpack.c.l.b16 %v248
      %v330 = vunpack.c.l.b16 %v249
      %v331 = vunpack.c.l.b16 %v250
      %v332 = vunpack.c.l.b16 %v251
      %v333 = vunpack.c.l.b16 %v252
      %v334 = vunpack.c.l.b16 %v253
      %v335 = vunpack.c.l.b16 %v254
      %v336 = vunpack.c.l.b16 %v255
      %v337 = vunpack.c.l.b16 %v256
      %v338 = vunpack.c.l.b16 %v257
      %v339 = vunpack.c.l.b16 %v258
      %v340 = vunpack.c.l.b16 %v259
      %v341 = vunpack.c.l.b16 %v260
      %v342 = vunpack.c.l.b16 %v261
      %v343 = vunpack.c.l.b16 %v262
      %v344 = vunpack.c.l.b16 %v263
      %v345 = vpack.c.b16 %v314, %v313
      %v346 = vpack.c.b16 %v316, %v315
      %v347 = vpack.c.b16 %v318, %v317
      %v348 = vpack.c.b16 %v320, %v319
      %v349 = vpack.c.b16 %v322, %v321
      %v350 = vpack.c.b16 %v324, %v323
      %v351 = vpack.c.b16 %v326, %v325
      %v352 = vpack.c.b16 %v328, %v327
      %v353 = vpack.c.b16 %v330, %v329
      %v354 = vpack.c.b16 %v332, %v331
      %v355 = vpack.c.b16 %v334, %v333
      %v356 = vpack.c.b16 %v336, %v335
      %v357 = vpack.c.b16 %v338, %v337
      %v358 = vpack.c.b16 %v340, %v339
      %v359 = vpack.c.b16 %v342, %v341
      %v360 = vpack.c.b16 %v344, %v343
      %v393 = vunpack.c.l.b16 %v265
      %v394 = vunpack.c.l.b16 %v266
      %v395 = vunpack.c.l.b16 %v267
      %v396 = vunpack.c.l.b16 %v268
      %v397 = vunpack.c.l.b16 %v269
      %v398 = vunpack.c.l.b16 %v270
      %v399 = vunpack.c.l.b16 %v271
      %v400 = vunpack.c.l.b16 %v272
      %v401 = vunpack.c.l.b16 %v273
      %v402 = vunpack.c.l.b16 %v274
      %v403 = vunpack.c.l.b16 %v275
      %v404 = vunpack.c.l.b16 %v276
      %v405 = vunpack.c.l.b16 %v277
      %v406 = vunpack.c.l.b16 %v278
      %v407 = vunpack.c.l.b16 %v279
      %v408 = vunpack.c.l.b16 %v280
      %v409 = vpack.c.b16 %v394, %v393
      %v410 = vpack.c.b16 %v396, %v395
      %v411 = vpack.c.b16 %v398, %v397
      %v412 = vpack.c.b16 %v400, %v399
      %v413 = vpack.c.b16 %v402, %v401
      %v414 = vpack.c.b16 %v404, %v403
      %v415 = vpack.c.b16 %v406, %v405
      %v416 = vpack.c.b16 %v408, %v407
      %425 = vmatprep.subr.bf16.mxu0 0
      %426 = vmatpush1.bf16.msra.mxu0 %v416
      %427 = vmatprep.subr.bf16.mxu0 0
      %428 = vmatpush1.bf16.msra.mxu0 %v415
      %429 = vmatprep.subr.bf16.mxu0 0
      %430 = vmatpush1.bf16.msra.mxu0 %v414
      %431 = vmatprep.subr.bf16.mxu0 0
      %432 = vmatpush1.bf16.msra.mxu0 %v413
      %433 = vmatprep.subr.bf16.mxu0 0
      %434 = vmatpush1.bf16.msra.mxu0 %v412
      %435 = vmatprep.subr.bf16.mxu0 0
      %436 = vmatpush1.bf16.msra.mxu0 %v411
      %437 = vmatprep.subr.bf16.mxu0 0
      %438 = vmatpush1.bf16.msra.mxu0 %v410
      %439 = vmatprep.subr.bf16.mxu0 0
      %440 = vmatpush1.bf16.msra.mxu0 %v409
      %441 = vmatprep.subr.bf16.mxu0 0
      %442 = vmatpush2.bf16.msra.mxu0 0
      %443 = vmatprep.subr.bf16.mxu0 0
      %444 = vmatpush2.bf16.msra.mxu0 0
      %445 = vmatprep.subr.bf16.mxu0 0
      %446 = vmatpush2.bf16.msra.mxu0 0
      %447 = vmatprep.subr.bf16.mxu0 0
      %448 = vmatpush2.bf16.msra.mxu0 0
      %449 = vmatprep.subr.bf16.mxu0 0
      %450 = vmatpush2.bf16.msra.mxu0 0
      %451 = vmatprep.subr.bf16.mxu0 0
      %452 = vmatpush2.bf16.msra.mxu0 0
      %453 = vmatprep.subr.bf16.mxu0 0
      %454 = vmatpush2.bf16.msra.mxu0 0
      %455 = vmatprep.subr.bf16.mxu0 0
      %456 = vmatpush2.bf16.msra.mxu0 0
      %457 = vmatprep.mubr.bf16.mxu0 0
      %458 = vmatmul.mubr.bf16.gmra.mxu0 %v345
      %v459 = vpop.f32.mrf.mxu0
      %v460 = vadd.f32 0.0, %v459
      %v461 = vpop.f32.mrf.mxu0
      %v462 = vpop.f32.mrf.mxu0
      %v463 = vadd.f32 0.0, %v462
      %v464 = vpop.f32.mrf.mxu0
      %465 = vmatprep.mubr.bf16.mxu0 0
      %466 = vmatmul.mubr.bf16.gmra.mxu0 %v346
      %v467 = vpop.f32.mrf.mxu0
      %v468 = vadd.f32 0.0, %v467
      %v469 = vpop.f32.mrf.mxu0
      %v470 = vpop.f32.mrf.mxu0
      %v471 = vadd.f32 0.0, %v470
      %v472 = vpop.f32.mrf.mxu0
      %473 = vmatprep.mubr.bf16.mxu0 0
      %474 = vmatmul.mubr.bf16.gmra.mxu0 %v347
      %v475 = vpop.f32.mrf.mxu0
      %v476 = vadd.f32 0.0, %v475
      %v477 = vpop.f32.mrf.mxu0
      %v478 = vpop.f32.mrf.mxu0
      %v479 = vadd.f32 0.0, %v478
      %v480 = vpop.f32.mrf.mxu0
      %481 = vmatprep.mubr.bf16.mxu0 0
      %482 = vmatmul.mubr.bf16.gmra.mxu0 %v348
      %v483 = vpop.f32.mrf.mxu0
      %v484 = vadd.f32 0.0, %v483
      %v485 = vpop.f32.mrf.mxu0
      %v486 = vpop.f32.mrf.mxu0
      %v487 = vadd.f32 0.0, %v486
      %v488 = vpop.f32.mrf.mxu0
      %489 = vmatprep.mubr.bf16.mxu0 0
      %490 = vmatmul.mubr.bf16.gmra.mxu0 %v349
      %v491 = vpop.f32.mrf.mxu0
      %v492 = vadd.f32 0.0, %v491
      %v493 = vpop.f32.mrf.mxu0
      %v494 = vpop.f32.mrf.mxu0
      %v495 = vadd.f32 0.0, %v494
      %v496 = vpop.f32.mrf.mxu0
      %497 = vmatprep.mubr.bf16.mxu0 0
      %498 = vmatmul.mubr.bf16.gmra.mxu0 %v350
      %v499 = vpop.f32.mrf.mxu0
      %v500 = vadd.f32 0.0, %v499
      %v501 = vpop.f32.mrf.mxu0
      %v502 = vpop.f32.mrf.mxu0
      %v503 = vadd.f32 0.0, %v502
      %v504 = vpop.f32.mrf.mxu0
      %505 = vmatprep.mubr.bf16.mxu0 0
      %506 = vmatmul.mubr.bf16.gmra.mxu0 %v351
      %v507 = vpop.f32.mrf.mxu0
      %v508 = vadd.f32 0.0, %v507
      %v509 = vpop.f32.mrf.mxu0
      %v510 = vpop.f32.mrf.mxu0
      %v511 = vadd.f32 0.0, %v510
      %v512 = vpop.f32.mrf.mxu0
      %513 = vmatprep.mubr.bf16.mxu0 0
      %514 = vmatmul.mubr.bf16.gmra.mxu0 %v352
      %v515 = vpop.f32.mrf.mxu0
      %v516 = vadd.f32 0.0, %v515
      %v517 = vpop.f32.mrf.mxu0
      %v518 = vpop.f32.mrf.mxu0
      %v519 = vadd.f32 0.0, %v518
      %v520 = vpop.f32.mrf.mxu0
      %521 = vmatprep.mubr.bf16.mxu0 0
      %522 = vmatmul.mubr.bf16.gmra.mxu0 %v353
      %v523 = vpop.f32.mrf.mxu0
      %v524 = vadd.f32 0.0, %v523
      %v525 = vpop.f32.mrf.mxu0
      %v526 = vpop.f32.mrf.mxu0
      %v527 = vadd.f32 0.0, %v526
      %v528 = vpop.f32.mrf.mxu0
      %529 = vmatprep.mubr.bf16.mxu0 0
      %530 = vmatmul.mubr.bf16.gmra.mxu0 %v354
      %v531 = vpop.f32.mrf.mxu0
      %v532 = vadd.f32 0.0, %v531
      %v533 = vpop.f32.mrf.mxu0
      %v534 = vpop.f32.mrf.mxu0
      %v535 = vadd.f32 0.0, %v534
      %v536 = vpop.f32.mrf.mxu0
      %537 = vmatprep.mubr.bf16.mxu0 0
      %538 = vmatmul.mubr.bf16.gmra.mxu0 %v355
      %v539 = vpop.f32.mrf.mxu0
      %v540 = vadd.f32 0.0, %v539
      %v541 = vpop.f32.mrf.mxu0
      %v542 = vpop.f32.mrf.mxu0
      %v543 = vadd.f32 0.0, %v542
      %v544 = vpop.f32.mrf.mxu0
      %545 = vmatprep.mubr.bf16.mxu0 0
      %546 = vmatmul.mubr.bf16.gmra.mxu0 %v356
      %v547 = vpop.f32.mrf.mxu0
      %v548 = vadd.f32 0.0, %v547
      %v549 = vpop.f32.mrf.mxu0
      %v550 = vpop.f32.mrf.mxu0
      %v551 = vadd.f32 0.0, %v550
      %v552 = vpop.f32.mrf.mxu0
      %553 = vmatprep.mubr.bf16.mxu0 0
      %554 = vmatmul.mubr.bf16.gmra.mxu0 %v357
      %v555 = vpop.f32.mrf.mxu0
      %v556 = vadd.f32 0.0, %v555
      %v557 = vpop.f32.mrf.mxu0
      %v558 = vpop.f32.mrf.mxu0
      %v559 = vadd.f32 0.0, %v558
      %v560 = vpop.f32.mrf.mxu0
      %561 = vmatprep.mubr.bf16.mxu0 0
      %562 = vmatmul.mubr.bf16.gmra.mxu0 %v358
      %v563 = vpop.f32.mrf.mxu0
      %v564 = vadd.f32 0.0, %v563
      %v565 = vpop.f32.mrf.mxu0
      %v566 = vpop.f32.mrf.mxu0
      %v567 = vadd.f32 0.0, %v566
      %v568 = vpop.f32.mrf.mxu0
      %569 = vmatprep.mubr.bf16.mxu0 0
      %570 = vmatmul.mubr.bf16.gmra.mxu0 %v359
      %v571 = vpop.f32.mrf.mxu0
      %v572 = vadd.f32 0.0, %v571
      %v573 = vpop.f32.mrf.mxu0
      %v574 = vpop.f32.mrf.mxu0
      %v575 = vadd.f32 0.0, %v574
      %v576 = vpop.f32.mrf.mxu0
      %577 = vmatprep.mubr.bf16.mxu0 0
      %578 = vmatmul.mubr.bf16.gmra.mxu0 %v360
      %v579 = vpop.f32.mrf.mxu0
      %v580 = vadd.f32 0.0, %v579
      %v581 = vpop.f32.mrf.mxu0
      %v582 = vpop.f32.mrf.mxu0
      %v583 = vadd.f32 0.0, %v582
      %v584 = vpop.f32.mrf.mxu0
      %585 = vdwg.mxu0
      %v618 = vunpack.c.l.b16 %v183
      %v619 = vunpack.c.l.b16 %v184
      %v620 = vunpack.c.l.b16 %v185
      %v621 = vunpack.c.l.b16 %v186
      %v622 = vunpack.c.l.b16 %v187
      %v623 = vunpack.c.l.b16 %v188
      %v624 = vunpack.c.l.b16 %v189
      %v625 = vunpack.c.l.b16 %v190
      %v626 = vunpack.c.l.b16 %v191
      %v627 = vunpack.c.l.b16 %v192
      %v628 = vunpack.c.l.b16 %v193
      %v629 = vunpack.c.l.b16 %v194
      %v630 = vunpack.c.l.b16 %v195
      %v631 = vunpack.c.l.b16 %v196
      %v632 = vunpack.c.l.b16 %v197
      %v633 = vunpack.c.l.b16 %v198
      %v634 = vunpack.c.l.b16 %v199
      %v635 = vunpack.c.l.b16 %v200
      %v636 = vunpack.c.l.b16 %v201
      %v637 = vunpack.c.l.b16 %v202
      %v638 = vunpack.c.l.b16 %v203
      %v639 = vunpack.c.l.b16 %v204
      %v640 = vunpack.c.l.b16 %v205
      %v641 = vunpack.c.l.b16 %v206
      %v642 = vunpack.c.l.b16 %v207
      %v643 = vunpack.c.l.b16 %v208
      %v644 = vunpack.c.l.b16 %v209
      %v645 = vunpack.c.l.b16 %v210
      %v646 = vunpack.c.l.b16 %v211
      %v647 = vunpack.c.l.b16 %v212
      %v648 = vunpack.c.l.b16 %v213
      %v649 = vunpack.c.l.b16 %v214
      %v650 = vpack.c.b16 %v619, %v618
      %v651 = vpack.c.b16 %v621, %v620
      %v652 = vpack.c.b16 %v623, %v622
      %v653 = vpack.c.b16 %v625, %v624
      %v654 = vpack.c.b16 %v627, %v626
      %v655 = vpack.c.b16 %v629, %v628
      %v656 = vpack.c.b16 %v631, %v630
      %v657 = vpack.c.b16 %v633, %v632
      %v658 = vpack.c.b16 %v635, %v634
      %v659 = vpack.c.b16 %v637, %v636
      %v660 = vpack.c.b16 %v639, %v638
      %v661 = vpack.c.b16 %v641, %v640
      %v662 = vpack.c.b16 %v643, %v642
      %v663 = vpack.c.b16 %v645, %v644
      %v664 = vpack.c.b16 %v647, %v646
      %v665 = vpack.c.b16 %v649, %v648
      %v698 = vunpack.c.l.b16 %v215
      %v699 = vunpack.c.l.b16 %v216
      %v700 = vunpack.c.l.b16 %v217
      %v701 = vunpack.c.l.b16 %v218
      %v702 = vunpack.c.l.b16 %v219
      %v703 = vunpack.c.l.b16 %v220
      %v704 = vunpack.c.l.b16 %v221
      %v705 = vunpack.c.l.b16 %v222
      %v706 = vunpack.c.l.b16 %v223
      %v707 = vunpack.c.l.b16 %v224
      %v708 = vunpack.c.l.b16 %v225
      %v709 = vunpack.c.l.b16 %v226
      %v710 = vunpack.c.l.b16 %v227
      %v711 = vunpack.c.l.b16 %v228
      %v712 = vunpack.c.l.b16 %v229
      %v713 = vunpack.c.l.b16 %v230
      %v714 = vpack.c.b16 %v699, %v698
      %v715 = vpack.c.b16 %v701, %v700
      %v716 = vpack.c.b16 %v703, %v702
      %v717 = vpack.c.b16 %v705, %v704
      %v718 = vpack.c.b16 %v707, %v706
      %v719 = vpack.c.b16 %v709, %v708
      %v720 = vpack.c.b16 %v711, %v710
      %v721 = vpack.c.b16 %v713, %v712
      %730 = vmatprep.subr.bf16.mxu0 0
      %731 = vmatpush1.bf16.msra.mxu0 %v721
      %732 = vmatprep.subr.bf16.mxu0 0
      %733 = vmatpush1.bf16.msra.mxu0 %v720
      %734 = vmatprep.subr.bf16.mxu0 0
      %735 = vmatpush1.bf16.msra.mxu0 %v719
      %736 = vmatprep.subr.bf16.mxu0 0
      %737 = vmatpush1.bf16.msra.mxu0 %v718
      %738 = vmatprep.subr.bf16.mxu0 0
      %739 = vmatpush1.bf16.msra.mxu0 %v717
      %740 = vmatprep.subr.bf16.mxu0 0
      %741 = vmatpush1.bf16.msra.mxu0 %v716
      %742 = vmatprep.subr.bf16.mxu0 0
      %743 = vmatpush1.bf16.msra.mxu0 %v715
      %744 = vmatprep.subr.bf16.mxu0 0
      %745 = vmatpush1.bf16.msra.mxu0 %v714
      %746 = vmatprep.subr.bf16.mxu0 0
      %747 = vmatpush2.bf16.msra.mxu0 0
      %748 = vmatprep.subr.bf16.mxu0 0
      %749 = vmatpush2.bf16.msra.mxu0 0
      %750 = vmatprep.subr.bf16.mxu0 0
      %751 = vmatpush2.bf16.msra.mxu0 0
      %752 = vmatprep.subr.bf16.mxu0 0
      %753 = vmatpush2.bf16.msra.mxu0 0
      %754 = vmatprep.subr.bf16.mxu0 0
      %755 = vmatpush2.bf16.msra.mxu0 0
      %756 = vmatprep.subr.bf16.mxu0 0
      %757 = vmatpush2.bf16.msra.mxu0 0
      %758 = vmatprep.subr.bf16.mxu0 0
      %759 = vmatpush2.bf16.msra.mxu0 0
      %760 = vmatprep.subr.bf16.mxu0 0
      %761 = vmatpush2.bf16.msra.mxu0 0
      %762 = vmatprep.mubr.bf16.mxu0 0
      %763 = vmatmul.mubr.bf16.gmra.mxu0 %v650
      %v764 = vpop.f32.mrf.mxu0
      %v765 = vadd.f32 %v460, %v764
      %v766 = vpop.f32.mrf.mxu0
      %v767 = vpop.f32.mrf.mxu0
      %v768 = vadd.f32 %v463, %v767
      %v769 = vpop.f32.mrf.mxu0
      %770 = vmatprep.mubr.bf16.mxu0 0
      %771 = vmatmul.mubr.bf16.gmra.mxu0 %v651
      %v772 = vpop.f32.mrf.mxu0
      %v773 = vadd.f32 %v468, %v772
      %v774 = vpop.f32.mrf.mxu0
      %v775 = vpop.f32.mrf.mxu0
      %v776 = vadd.f32 %v471, %v775
      %v777 = vpop.f32.mrf.mxu0
      %778 = vmatprep.mubr.bf16.mxu0 0
      %779 = vmatmul.mubr.bf16.gmra.mxu0 %v652
      %v780 = vpop.f32.mrf.mxu0
      %v781 = vadd.f32 %v476, %v780
      %v782 = vpop.f32.mrf.mxu0
      %v783 = vpop.f32.mrf.mxu0
      %v784 = vadd.f32 %v479, %v783
      %v785 = vpop.f32.mrf.mxu0
      %786 = vmatprep.mubr.bf16.mxu0 0
      %787 = vmatmul.mubr.bf16.gmra.mxu0 %v653
      %v788 = vpop.f32.mrf.mxu0
      %v789 = vadd.f32 %v484, %v788
      %v790 = vpop.f32.mrf.mxu0
      %v791 = vpop.f32.mrf.mxu0
      %v792 = vadd.f32 %v487, %v791
      %v793 = vpop.f32.mrf.mxu0
      %794 = vmatprep.mubr.bf16.mxu0 0
      %795 = vmatmul.mubr.bf16.gmra.mxu0 %v654
      %v796 = vpop.f32.mrf.mxu0
      %v797 = vadd.f32 %v492, %v796
      %v798 = vpop.f32.mrf.mxu0
      %v799 = vpop.f32.mrf.mxu0
      %v800 = vadd.f32 %v495, %v799
      %v801 = vpop.f32.mrf.mxu0
      %802 = vmatprep.mubr.bf16.mxu0 0
      %803 = vmatmul.mubr.bf16.gmra.mxu0 %v655
      %v804 = vpop.f32.mrf.mxu0
      %v805 = vadd.f32 %v500, %v804
      %v806 = vpop.f32.mrf.mxu0
      %v807 = vpop.f32.mrf.mxu0
      %v808 = vadd.f32 %v503, %v807
      %v809 = vpop.f32.mrf.mxu0
      %810 = vmatprep.mubr.bf16.mxu0 0
      %811 = vmatmul.mubr.bf16.gmra.mxu0 %v656
      %v812 = vpop.f32.mrf.mxu0
      %v813 = vadd.f32 %v508, %v812
      %v814 = vpop.f32.mrf.mxu0
      %v815 = vpop.f32.mrf.mxu0
      %v816 = vadd.f32 %v511, %v815
      %v817 = vpop.f32.mrf.mxu0
      %818 = vmatprep.mubr.bf16.mxu0 0
      %819 = vmatmul.mubr.bf16.gmra.mxu0 %v657
      %v820 = vpop.f32.mrf.mxu0
      %v821 = vadd.f32 %v516, %v820
      %v822 = vpop.f32.mrf.mxu0
      %v823 = vpop.f32.mrf.mxu0
      %v824 = vadd.f32 %v519, %v823
      %v825 = vpop.f32.mrf.mxu0
      %826 = vmatprep.mubr.bf16.mxu0 0
      %827 = vmatmul.mubr.bf16.gmra.mxu0 %v658
      %v828 = vpop.f32.mrf.mxu0
      %v829 = vadd.f32 %v524, %v828
      %v830 = vpop.f32.mrf.mxu0
      %v831 = vpop.f32.mrf.mxu0
      %v832 = vadd.f32 %v527, %v831
      %v833 = vpop.f32.mrf.mxu0
      %834 = vmatprep.mubr.bf16.mxu0 0
      %835 = vmatmul.mubr.bf16.gmra.mxu0 %v659
      %v836 = vpop.f32.mrf.mxu0
      %v837 = vadd.f32 %v532, %v836
      %v838 = vpop.f32.mrf.mxu0
      %v839 = vpop.f32.mrf.mxu0
      %v840 = vadd.f32 %v535, %v839
      %v841 = vpop.f32.mrf.mxu0
      %842 = vmatprep.mubr.bf16.mxu0 0
      %843 = vmatmul.mubr.bf16.gmra.mxu0 %v660
      %v844 = vpop.f32.mrf.mxu0
      %v845 = vadd.f32 %v540, %v844
      %v846 = vpop.f32.mrf.mxu0
      %v847 = vpop.f32.mrf.mxu0
      %v848 = vadd.f32 %v543, %v847
      %v849 = vpop.f32.mrf.mxu0
      %850 = vmatprep.mubr.bf16.mxu0 0
      %851 = vmatmul.mubr.bf16.gmra.mxu0 %v661
      %v852 = vpop.f32.mrf.mxu0
      %v853 = vadd.f32 %v548, %v852
      %v854 = vpop.f32.mrf.mxu0
      %v855 = vpop.f32.mrf.mxu0
      %v856 = vadd.f32 %v551, %v855
      %v857 = vpop.f32.mrf.mxu0
      %858 = vmatprep.mubr.bf16.mxu0 0
      %859 = vmatmul.mubr.bf16.gmra.mxu0 %v662
      %v860 = vpop.f32.mrf.mxu0
      %v861 = vadd.f32 %v556, %v860
      %v862 = vpop.f32.mrf.mxu0
      %v863 = vpop.f32.mrf.mxu0
      %v864 = vadd.f32 %v559, %v863
      %v865 = vpop.f32.mrf.mxu0
      %866 = vmatprep.mubr.bf16.mxu0 0
      %867 = vmatmul.mubr.bf16.gmra.mxu0 %v663
      %v868 = vpop.f32.mrf.mxu0
      %v869 = vadd.f32 %v564, %v868
      %v870 = vpop.f32.mrf.mxu0
      %v871 = vpop.f32.mrf.mxu0
      %v872 = vadd.f32 %v567, %v871
      %v873 = vpop.f32.mrf.mxu0
      %874 = vmatprep.mubr.bf16.mxu0 0
      %875 = vmatmul.mubr.bf16.gmra.mxu0 %v664
      %v876 = vpop.f32.mrf.mxu0
      %v877 = vadd.f32 %v572, %v876
      %v878 = vpop.f32.mrf.mxu0
      %v879 = vpop.f32.mrf.mxu0
      %v880 = vadd.f32 %v575, %v879
      %v881 = vpop.f32.mrf.mxu0
      %882 = vmatprep.mubr.bf16.mxu0 0
      %883 = vmatmul.mubr.bf16.gmra.mxu0 %v665
      %v884 = vpop.f32.mrf.mxu0
      %v885 = vadd.f32 %v580, %v884
      %v886 = vpop.f32.mrf.mxu0
      %v887 = vpop.f32.mrf.mxu0
      %v888 = vadd.f32 %v583, %v887
      %v889 = vpop.f32.mrf.mxu0
      %890 = vdwg.mxu0
      %s891 = scalar_lea.vmem %s172, 288
      %v892 = vld [vmem:[%s891] sm:$0xf]
      %v893 = vld [vmem:[%s891 + $0x4] sm:$0xf]
      %v894 = vld [vmem:[%s891 + $0x8] sm:$0xf]
      %v895 = vld [vmem:[%s891 + $0xc] sm:$0xf]
      %v896 = vld [vmem:[%s891 + $0x10] sm:$0xf]
      %v897 = vld [vmem:[%s891 + $0x14] sm:$0xf]
      %v898 = vld [vmem:[%s891 + $0x18] sm:$0xf]
      %v899 = vld [vmem:[%s891 + $0x1c] sm:$0xf]
      %v900 = vld [vmem:[%s891 + $0x20] sm:$0xf]
      %v901 = vld [vmem:[%s891 + $0x24] sm:$0xf]
      %v902 = vld [vmem:[%s891 + $0x28] sm:$0xf]
      %v903 = vld [vmem:[%s891 + $0x2c] sm:$0xf]
      %v904 = vld [vmem:[%s891 + $0x30] sm:$0xf]
      %v905 = vld [vmem:[%s891 + $0x34] sm:$0xf]
      %v906 = vld [vmem:[%s891 + $0x38] sm:$0xf]
      %v907 = vld [vmem:[%s891 + $0x3c] sm:$0xf]
      %v908 = vld [vmem:[%s891 + $0x40] sm:$0xf]
      %v909 = vld [vmem:[%s891 + $0x44] sm:$0xf]
      %v910 = vld [vmem:[%s891 + $0x48] sm:$0xf]
      %v911 = vld [vmem:[%s891 + $0x4c] sm:$0xf]
      %v912 = vld [vmem:[%s891 + $0x50] sm:$0xf]
      %v913 = vld [vmem:[%s891 + $0x54] sm:$0xf]
      %v914 = vld [vmem:[%s891 + $0x58] sm:$0xf]
      %v915 = vld [vmem:[%s891 + $0x5c] sm:$0xf]
      %v916 = vld [vmem:[%s891 + $0x60] sm:$0xf]
      %v917 = vld [vmem:[%s891 + $0x64] sm:$0xf]
      %v918 = vld [vmem:[%s891 + $0x68] sm:$0xf]
      %v919 = vld [vmem:[%s891 + $0x6c] sm:$0xf]
      %v920 = vld [vmem:[%s891 + $0x70] sm:$0xf]
      %v921 = vld [vmem:[%s891 + $0x74] sm:$0xf]
      %v922 = vld [vmem:[%s891 + $0x78] sm:$0xf]
      %v923 = vld [vmem:[%s891 + $0x7c] sm:$0xf]
      %s924 = scalar_lea.vmem %s1, 128
      %v925 = vld [vmem:[%s924] sm:$0xf]
      %v926 = vld [vmem:[%s924 + $0x4] sm:$0xf]
      %v927 = vld [vmem:[%s924 + $0x8] sm:$0xf]
      %v928 = vld [vmem:[%s924 + $0xc] sm:$0xf]
      %v929 = vld [vmem:[%s924 + $0x10] sm:$0xf]
      %v930 = vld [vmem:[%s924 + $0x14] sm:$0xf]
      %v931 = vld [vmem:[%s924 + $0x18] sm:$0xf]
      %v932 = vld [vmem:[%s924 + $0x1c] sm:$0xf]
      %v933 = vld [vmem:[%s924 + $0x20] sm:$0xf]
      %v934 = vld [vmem:[%s924 + $0x24] sm:$0xf]
      %v935 = vld [vmem:[%s924 + $0x28] sm:$0xf]
      %v936 = vld [vmem:[%s924 + $0x2c] sm:$0xf]
      %v937 = vld [vmem:[%s924 + $0x30] sm:$0xf]
      %v938 = vld [vmem:[%s924 + $0x34] sm:$0xf]
      %v939 = vld [vmem:[%s924 + $0x38] sm:$0xf]
      %v940 = vld [vmem:[%s924 + $0x3c] sm:$0xf]
      %v973 = vunpack.c.l.b16 %v892
      %v974 = vunpack.c.l.b16 %v893
      %v975 = vunpack.c.l.b16 %v894
      %v976 = vunpack.c.l.b16 %v895
      %v977 = vunpack.c.l.b16 %v896
      %v978 = vunpack.c.l.b16 %v897
      %v979 = vunpack.c.l.b16 %v898
      %v980 = vunpack.c.l.b16 %v899
      %v981 = vunpack.c.l.b16 %v900
      %v982 = vunpack.c.l.b16 %v901
      %v983 = vunpack.c.l.b16 %v902
      %v984 = vunpack.c.l.b16 %v903
      %v985 = vunpack.c.l.b16 %v904
      %v986 = vunpack.c.l.b16 %v905
      %v987 = vunpack.c.l.b16 %v906
      %v988 = vunpack.c.l.b16 %v907
      %v989 = vunpack.c.l.b16 %v908
      %v990 = vunpack.c.l.b16 %v909
      %v991 = vunpack.c.l.b16 %v910
      %v992 = vunpack.c.l.b16 %v911
      %v993 = vunpack.c.l.b16 %v912
      %v994 = vunpack.c.l.b16 %v913
      %v995 = vunpack.c.l.b16 %v914
      %v996 = vunpack.c.l.b16 %v915
      %v997 = vunpack.c.l.b16 %v916
      %v998 = vunpack.c.l.b16 %v917
      %v999 = vunpack.c.l.b16 %v918
      %v1000 = vunpack.c.l.b16 %v919
      %v1001 = vunpack.c.l.b16 %v920
      %v1002 = vunpack.c.l.b16 %v921
      %v1003 = vunpack.c.l.b16 %v922
      %v1004 = vunpack.c.l.b16 %v923
      %v1005 = vpack.c.b16 %v974, %v973
      %v1006 = vpack.c.b16 %v976, %v975
      %v1007 = vpack.c.b16 %v978, %v977
      %v1008 = vpack.c.b16 %v980, %v979
      %v1009 = vpack.c.b16 %v982, %v981
      %v1010 = vpack.c.b16 %v984, %v983
      %v1011 = vpack.c.b16 %v986, %v985
      %v1012 = vpack.c.b16 %v988, %v987
      %v1013 = vpack.c.b16 %v990, %v989
      %v1014 = vpack.c.b16 %v992, %v991
      %v1015 = vpack.c.b16 %v994, %v993
      %v1016 = vpack.c.b16 %v996, %v995
      %v1017 = vpack.c.b16 %v998, %v997
      %v1018 = vpack.c.b16 %v1000, %v999
      %v1019 = vpack.c.b16 %v1002, %v1001
      %v1020 = vpack.c.b16 %v1004, %v1003
      %v1053 = vunpack.c.l.b16 %v925
      %v1054 = vunpack.c.l.b16 %v926
      %v1055 = vunpack.c.l.b16 %v927
      %v1056 = vunpack.c.l.b16 %v928
      %v1057 = vunpack.c.l.b16 %v929
      %v1058 = vunpack.c.l.b16 %v930
      %v1059 = vunpack.c.l.b16 %v931
      %v1060 = vunpack.c.l.b16 %v932
      %v1061 = vunpack.c.l.b16 %v933
      %v1062 = vunpack.c.l.b16 %v934
      %v1063 = vunpack.c.l.b16 %v935
      %v1064 = vunpack.c.l.b16 %v936
      %v1065 = vunpack.c.l.b16 %v937
      %v1066 = vunpack.c.l.b16 %v938
      %v1067 = vunpack.c.l.b16 %v939
      %v1068 = vunpack.c.l.b16 %v940
      %v1069 = vpack.c.b16 %v1054, %v1053
      %v1070 = vpack.c.b16 %v1056, %v1055
      %v1071 = vpack.c.b16 %v1058, %v1057
      %v1072 = vpack.c.b16 %v1060, %v1059
      %v1073 = vpack.c.b16 %v1062, %v1061
      %v1074 = vpack.c.b16 %v1064, %v1063
      %v1075 = vpack.c.b16 %v1066, %v1065
      %v1076 = vpack.c.b16 %v1068, %v1067
      %1085 = vmatprep.subr.bf16.mxu0 0
      %1086 = vmatpush1.bf16.msra.mxu0 %v1076
      %1087 = vmatprep.subr.bf16.mxu0 0
      %1088 = vmatpush1.bf16.msra.mxu0 %v1075
      %1089 = vmatprep.subr.bf16.mxu0 0
      %1090 = vmatpush1.bf16.msra.mxu0 %v1074
      %1091 = vmatprep.subr.bf16.mxu0 0
      %1092 = vmatpush1.bf16.msra.mxu0 %v1073
      %1093 = vmatprep.subr.bf16.mxu0 0
      %1094 = vmatpush1.bf16.msra.mxu0 %v1072
      %1095 = vmatprep.subr.bf16.mxu0 0
      %1096 = vmatpush1.bf16.msra.mxu0 %v1071
      %1097 = vmatprep.subr.bf16.mxu0 0
      %1098 = vmatpush1.bf16.msra.mxu0 %v1070
      %1099 = vmatprep.subr.bf16.mxu0 0
      %1100 = vmatpush1.bf16.msra.mxu0 %v1069
      %1101 = vmatprep.subr.bf16.mxu0 0
      %1102 = vmatpush2.bf16.msra.mxu0 0
      %1103 = vmatprep.subr.bf16.mxu0 0
      %1104 = vmatpush2.bf16.msra.mxu0 0
      %1105 = vmatprep.subr.bf16.mxu0 0
      %1106 = vmatpush2.bf16.msra.mxu0 0
      %1107 = vmatprep.subr.bf16.mxu0 0
      %1108 = vmatpush2.bf16.msra.mxu0 0
      %1109 = vmatprep.subr.bf16.mxu0 0
      %1110 = vmatpush2.bf16.msra.mxu0 0
      %1111 = vmatprep.subr.bf16.mxu0 0
      %1112 = vmatpush2.bf16.msra.mxu0 0
      %1113 = vmatprep.subr.bf16.mxu0 0
      %1114 = vmatpush2.bf16.msra.mxu0 0
      %1115 = vmatprep.subr.bf16.mxu0 0
      %1116 = vmatpush2.bf16.msra.mxu0 0
      %1117 = vmatprep.mubr.bf16.mxu0 0
      %1118 = vmatmul.mubr.bf16.gmra.mxu0 %v1005
      %v1119 = vpop.f32.mrf.mxu0
      %v1120 = vadd.f32 0.0, %v1119
      %v1121 = vpop.f32.mrf.mxu0
      %v1122 = vpop.f32.mrf.mxu0
      %v1123 = vadd.f32 0.0, %v1122
      %v1124 = vpop.f32.mrf.mxu0
      %1125 = vmatprep.mubr.bf16.mxu0 0
      %1126 = vmatmul.mubr.bf16.gmra.mxu0 %v1006
      %v1127 = vpop.f32.mrf.mxu0
      %v1128 = vadd.f32 0.0, %v1127
      %v1129 = vpop.f32.mrf.mxu0
      %v1130 = vpop.f32.mrf.mxu0
      %v1131 = vadd.f32 0.0, %v1130
      %v1132 = vpop.f32.mrf.mxu0
      %1133 = vmatprep.mubr.bf16.mxu0 0
      %1134 = vmatmul.mubr.bf16.gmra.mxu0 %v1007
      %v1135 = vpop.f32.mrf.mxu0
      %v1136 = vadd.f32 0.0, %v1135
      %v1137 = vpop.f32.mrf.mxu0
      %v1138 = vpop.f32.mrf.mxu0
      %v1139 = vadd.f32 0.0, %v1138
      %v1140 = vpop.f32.mrf.mxu0
      %1141 = vmatprep.mubr.bf16.mxu0 0
      %1142 = vmatmul.mubr.bf16.gmra.mxu0 %v1008
      %v1143 = vpop.f32.mrf.mxu0
      %v1144 = vadd.f32 0.0, %v1143
      %v1145 = vpop.f32.mrf.mxu0
      %v1146 = vpop.f32.mrf.mxu0
      %v1147 = vadd.f32 0.0, %v1146
      %v1148 = vpop.f32.mrf.mxu0
      %1149 = vmatprep.mubr.bf16.mxu0 0
      %1150 = vmatmul.mubr.bf16.gmra.mxu0 %v1009
      %v1151 = vpop.f32.mrf.mxu0
      %v1152 = vadd.f32 0.0, %v1151
      %v1153 = vpop.f32.mrf.mxu0
      %v1154 = vpop.f32.mrf.mxu0
      %v1155 = vadd.f32 0.0, %v1154
      %v1156 = vpop.f32.mrf.mxu0
      %1157 = vmatprep.mubr.bf16.mxu0 0
      %1158 = vmatmul.mubr.bf16.gmra.mxu0 %v1010
      %v1159 = vpop.f32.mrf.mxu0
      %v1160 = vadd.f32 0.0, %v1159
      %v1161 = vpop.f32.mrf.mxu0
      %v1162 = vpop.f32.mrf.mxu0
      %v1163 = vadd.f32 0.0, %v1162
      %v1164 = vpop.f32.mrf.mxu0
      %1165 = vmatprep.mubr.bf16.mxu0 0
      %1166 = vmatmul.mubr.bf16.gmra.mxu0 %v1011
      %v1167 = vpop.f32.mrf.mxu0
      %v1168 = vadd.f32 0.0, %v1167
      %v1169 = vpop.f32.mrf.mxu0
      %v1170 = vpop.f32.mrf.mxu0
      %v1171 = vadd.f32 0.0, %v1170
      %v1172 = vpop.f32.mrf.mxu0
      %1173 = vmatprep.mubr.bf16.mxu0 0
      %1174 = vmatmul.mubr.bf16.gmra.mxu0 %v1012
      %v1175 = vpop.f32.mrf.mxu0
      %v1176 = vadd.f32 0.0, %v1175
      %v1177 = vpop.f32.mrf.mxu0
      %v1178 = vpop.f32.mrf.mxu0
      %v1179 = vadd.f32 0.0, %v1178
      %v1180 = vpop.f32.mrf.mxu0
      %1181 = vmatprep.mubr.bf16.mxu0 0
      %1182 = vmatmul.mubr.bf16.gmra.mxu0 %v1013
      %v1183 = vpop.f32.mrf.mxu0
      %v1184 = vadd.f32 0.0, %v1183
      %v1185 = vpop.f32.mrf.mxu0
      %v1186 = vpop.f32.mrf.mxu0
      %v1187 = vadd.f32 0.0, %v1186
      %v1188 = vpop.f32.mrf.mxu0
      %1189 = vmatprep.mubr.bf16.mxu0 0
      %1190 = vmatmul.mubr.bf16.gmra.mxu0 %v1014
      %v1191 = vpop.f32.mrf.mxu0
      %v1192 = vadd.f32 0.0, %v1191
      %v1193 = vpop.f32.mrf.mxu0
      %v1194 = vpop.f32.mrf.mxu0
      %v1195 = vadd.f32 0.0, %v1194
      %v1196 = vpop.f32.mrf.mxu0
      %1197 = vmatprep.mubr.bf16.mxu0 0
      %1198 = vmatmul.mubr.bf16.gmra.mxu0 %v1015
      %v1199 = vpop.f32.mrf.mxu0
      %v1200 = vadd.f32 0.0, %v1199
      %v1201 = vpop.f32.mrf.mxu0
      %v1202 = vpop.f32.mrf.mxu0
      %v1203 = vadd.f32 0.0, %v1202
      %v1204 = vpop.f32.mrf.mxu0
      %1205 = vmatprep.mubr.bf16.mxu0 0
      %1206 = vmatmul.mubr.bf16.gmra.mxu0 %v1016
      %v1207 = vpop.f32.mrf.mxu0
      %v1208 = vadd.f32 0.0, %v1207
      %v1209 = vpop.f32.mrf.mxu0
      %v1210 = vpop.f32.mrf.mxu0
      %v1211 = vadd.f32 0.0, %v1210
      %v1212 = vpop.f32.mrf.mxu0
      %1213 = vmatprep.mubr.bf16.mxu0 0
      %1214 = vmatmul.mubr.bf16.gmra.mxu0 %v1017
      %v1215 = vpop.f32.mrf.mxu0
      %v1216 = vadd.f32 0.0, %v1215
      %v1217 = vpop.f32.mrf.mxu0
      %v1218 = vpop.f32.mrf.mxu0
      %v1219 = vadd.f32 0.0, %v1218
      %v1220 = vpop.f32.mrf.mxu0
      %1221 = vmatprep.mubr.bf16.mxu0 0
      %1222 = vmatmul.mubr.bf16.gmra.mxu0 %v1018
      %v1223 = vpop.f32.mrf.mxu0
      %v1224 = vadd.f32 0.0, %v1223
      %v1225 = vpop.f32.mrf.mxu0
      %v1226 = vpop.f32.mrf.mxu0
      %v1227 = vadd.f32 0.0, %v1226
      %v1228 = vpop.f32.mrf.mxu0
      %1229 = vmatprep.mubr.bf16.mxu0 0
      %1230 = vmatmul.mubr.bf16.gmra.mxu0 %v1019
      %v1231 = vpop.f32.mrf.mxu0
      %v1232 = vadd.f32 0.0, %v1231
      %v1233 = vpop.f32.mrf.mxu0
      %v1234 = vpop.f32.mrf.mxu0
      %v1235 = vadd.f32 0.0, %v1234
      %v1236 = vpop.f32.mrf.mxu0
      %1237 = vmatprep.mubr.bf16.mxu0 0
      %1238 = vmatmul.mubr.bf16.gmra.mxu0 %v1020
      %v1239 = vpop.f32.mrf.mxu0
      %v1240 = vadd.f32 0.0, %v1239
      %v1241 = vpop.f32.mrf.mxu0
      %v1242 = vpop.f32.mrf.mxu0
      %v1243 = vadd.f32 0.0, %v1242
      %v1244 = vpop.f32.mrf.mxu0
      %1245 = vdwg.mxu0
      %v1246 = vadd.f32 %v765, %v1120
      %v1247 = vadd.f32 %v768, %v1123
      %v1248 = vadd.f32 %v773, %v1128
      %v1249 = vadd.f32 %v776, %v1131
      %v1250 = vadd.f32 %v781, %v1136
      %v1251 = vadd.f32 %v784, %v1139
      %v1252 = vadd.f32 %v789, %v1144
      %v1253 = vadd.f32 %v792, %v1147
      %v1254 = vadd.f32 %v797, %v1152
      %v1255 = vadd.f32 %v800, %v1155
      %v1256 = vadd.f32 %v805, %v1160
      %v1257 = vadd.f32 %v808, %v1163
      %v1258 = vadd.f32 %v813, %v1168
      %v1259 = vadd.f32 %v816, %v1171
      %v1260 = vadd.f32 %v821, %v1176
      %v1261 = vadd.f32 %v824, %v1179
      %v1262 = vadd.f32 %v829, %v1184
      %v1263 = vadd.f32 %v832, %v1187
      %v1264 = vadd.f32 %v837, %v1192
      %v1265 = vadd.f32 %v840, %v1195
      %v1266 = vadd.f32 %v845, %v1200
      %v1267 = vadd.f32 %v848, %v1203
      %v1268 = vadd.f32 %v853, %v1208
      %v1269 = vadd.f32 %v856, %v1211
      %v1270 = vadd.f32 %v861, %v1216
      %v1271 = vadd.f32 %v864, %v1219
      %v1272 = vadd.f32 %v869, %v1224
      %v1273 = vadd.f32 %v872, %v1227
      %v1274 = vadd.f32 %v877, %v1232
      %v1275 = vadd.f32 %v880, %v1235
      %v1276 = vadd.f32 %v885, %v1240
      %v1277 = vadd.f32 %v888, %v1243
      %v1278 = vld [vmem:[%s172 + $0x8] sm:$0xf]
      %v1279 = vld [vmem:[%s172 + $0xc] sm:$0xf]
      %v1280 = vld [vmem:[%s172 + $0x10] sm:$0xf]
      %v1281 = vld [vmem:[%s172 + $0x14] sm:$0xf]
      %v1282 = vld [vmem:[%s172 + $0x18] sm:$0xf]
      %v1283 = vld [vmem:[%s172 + $0x1c] sm:$0xf]
      %v1284 = vld [vmem:[%s172 + $0x20] sm:$0xf]
      %v1285 = vld [vmem:[%s172 + $0x24] sm:$0xf]
      %v1286 = vld [vmem:[%s172 + $0x28] sm:$0xf]
      %v1287 = vld [vmem:[%s172 + $0x2c] sm:$0xf]
      %v1288 = vld [vmem:[%s172 + $0x30] sm:$0xf]
      %v1289 = vld [vmem:[%s172 + $0x34] sm:$0xf]
      %v1290 = vld [vmem:[%s172 + $0x38] sm:$0xf]
      %v1291 = vld [vmem:[%s172 + $0x3c] sm:$0xf]
      %v1292 = vld [vmem:[%s172 + $0x40] sm:$0xf]
      %v1293 = vld [vmem:[%s172 + $0x44] sm:$0xf]
      %v1294 = vld [vmem:[%s172 + $0x48] sm:$0xf]
      %v1295 = vld [vmem:[%s172 + $0x4c] sm:$0xf]
      %v1296 = vld [vmem:[%s172 + $0x50] sm:$0xf]
      %v1297 = vld [vmem:[%s172 + $0x54] sm:$0xf]
      %v1298 = vld [vmem:[%s172 + $0x58] sm:$0xf]
      %v1299 = vld [vmem:[%s172 + $0x5c] sm:$0xf]
      %v1300 = vld [vmem:[%s172 + $0x60] sm:$0xf]
      %v1301 = vld [vmem:[%s172 + $0x64] sm:$0xf]
      %v1302 = vld [vmem:[%s172 + $0x68] sm:$0xf]
      %v1303 = vld [vmem:[%s172 + $0x6c] sm:$0xf]
      %v1304 = vld [vmem:[%s172 + $0x70] sm:$0xf]
      %v1305 = vld [vmem:[%s172 + $0x74] sm:$0xf]
      %v1306 = vld [vmem:[%s172 + $0x78] sm:$0xf]
      %v1307 = vld [vmem:[%s172 + $0x7c] sm:$0xf]
      %v1308 = vld [vmem:[%s172 + $0x80] sm:$0xf]
      %v1309 = vld [vmem:[%s172 + $0x84] sm:$0xf]
      %s1310 = scalar_lea.vmem %s1, 192
      %v1311 = vld [vmem:[%s1310] sm:$0xf]
      %v1312 = vld [vmem:[%s1310 + $0x4] sm:$0xf]
      %v1313 = vld [vmem:[%s1310 + $0x8] sm:$0xf]
      %v1314 = vld [vmem:[%s1310 + $0xc] sm:$0xf]
      %v1315 = vld [vmem:[%s1310 + $0x10] sm:$0xf]
      %v1316 = vld [vmem:[%s1310 + $0x14] sm:$0xf]
      %v1317 = vld [vmem:[%s1310 + $0x18] sm:$0xf]
      %v1318 = vld [vmem:[%s1310 + $0x1c] sm:$0xf]
      %v1319 = vld [vmem:[%s1310 + $0x20] sm:$0xf]
      %v1320 = vld [vmem:[%s1310 + $0x24] sm:$0xf]
      %v1321 = vld [vmem:[%s1310 + $0x28] sm:$0xf]
      %v1322 = vld [vmem:[%s1310 + $0x2c] sm:$0xf]
      %v1323 = vld [vmem:[%s1310 + $0x30] sm:$0xf]
      %v1324 = vld [vmem:[%s1310 + $0x34] sm:$0xf]
      %v1325 = vld [vmem:[%s1310 + $0x38] sm:$0xf]
      %v1326 = vld [vmem:[%s1310 + $0x3c] sm:$0xf]
      %v1359 = vunpack.c.l.b16 %v1278
      %v1360 = vunpack.c.l.b16 %v1279
      %v1361 = vunpack.c.l.b16 %v1280
      %v1362 = vunpack.c.l.b16 %v1281
      %v1363 = vunpack.c.l.b16 %v1282
      %v1364 = vunpack.c.l.b16 %v1283
      %v1365 = vunpack.c.l.b16 %v1284
      %v1366 = vunpack.c.l.b16 %v1285
      %v1367 = vunpack.c.l.b16 %v1286
      %v1368 = vunpack.c.l.b16 %v1287
      %v1369 = vunpack.c.l.b16 %v1288
      %v1370 = vunpack.c.l.b16 %v1289
      %v1371 = vunpack.c.l.b16 %v1290
      %v1372 = vunpack.c.l.b16 %v1291
      %v1373 = vunpack.c.l.b16 %v1292
      %v1374 = vunpack.c.l.b16 %v1293
      %v1375 = vunpack.c.l.b16 %v1294
      %v1376 = vunpack.c.l.b16 %v1295
      %v1377 = vunpack.c.l.b16 %v1296
      %v1378 = vunpack.c.l.b16 %v1297
      %v1379 = vunpack.c.l.b16 %v1298
      %v1380 = vunpack.c.l.b16 %v1299
      %v1381 = vunpack.c.l.b16 %v1300
      %v1382 = vunpack.c.l.b16 %v1301
      %v1383 = vunpack.c.l.b16 %v1302
      %v1384 = vunpack.c.l.b16 %v1303
      %v1385 = vunpack.c.l.b16 %v1304
      %v1386 = vunpack.c.l.b16 %v1305
      %v1387 = vunpack.c.l.b16 %v1306
      %v1388 = vunpack.c.l.b16 %v1307
      %v1389 = vunpack.c.l.b16 %v1308
      %v1390 = vunpack.c.l.b16 %v1309
      %v1391 = vpack.c.b16 %v1360, %v1359
      %v1392 = vpack.c.b16 %v1362, %v1361
      %v1393 = vpack.c.b16 %v1364, %v1363
      %v1394 = vpack.c.b16 %v1366, %v1365
      %v1395 = vpack.c.b16 %v1368, %v1367
      %v1396 = vpack.c.b16 %v1370, %v1369
      %v1397 = vpack.c.b16 %v1372, %v1371
      %v1398 = vpack.c.b16 %v1374, %v1373
      %v1399 = vpack.c.b16 %v1376, %v1375
      %v1400 = vpack.c.b16 %v1378, %v1377
      %v1401 = vpack.c.b16 %v1380, %v1379
      %v1402 = vpack.c.b16 %v1382, %v1381
      %v1403 = vpack.c.b16 %v1384, %v1383
      %v1404 = vpack.c.b16 %v1386, %v1385
      %v1405 = vpack.c.b16 %v1388, %v1387
      %v1406 = vpack.c.b16 %v1390, %v1389
      %v1439 = vunpack.c.l.b16 %v1311
      %v1440 = vunpack.c.l.b16 %v1312
      %v1441 = vunpack.c.l.b16 %v1313
      %v1442 = vunpack.c.l.b16 %v1314
      %v1443 = vunpack.c.l.b16 %v1315
      %v1444 = vunpack.c.l.b16 %v1316
      %v1445 = vunpack.c.l.b16 %v1317
      %v1446 = vunpack.c.l.b16 %v1318
      %v1447 = vunpack.c.l.b16 %v1319
      %v1448 = vunpack.c.l.b16 %v1320
      %v1449 = vunpack.c.l.b16 %v1321
      %v1450 = vunpack.c.l.b16 %v1322
      %v1451 = vunpack.c.l.b16 %v1323
      %v1452 = vunpack.c.l.b16 %v1324
      %v1453 = vunpack.c.l.b16 %v1325
      %v1454 = vunpack.c.l.b16 %v1326
      %v1455 = vpack.c.b16 %v1440, %v1439
      %v1456 = vpack.c.b16 %v1442, %v1441
      %v1457 = vpack.c.b16 %v1444, %v1443
      %v1458 = vpack.c.b16 %v1446, %v1445
      %v1459 = vpack.c.b16 %v1448, %v1447
      %v1460 = vpack.c.b16 %v1450, %v1449
      %v1461 = vpack.c.b16 %v1452, %v1451
      %v1462 = vpack.c.b16 %v1454, %v1453
      %1471 = vmatprep.subr.bf16.mxu0 0
      %1472 = vmatpush1.bf16.msra.mxu0 %v1462
      %1473 = vmatprep.subr.bf16.mxu0 0
      %1474 = vmatpush1.bf16.msra.mxu0 %v1461
      %1475 = vmatprep.subr.bf16.mxu0 0
      %1476 = vmatpush1.bf16.msra.mxu0 %v1460
      %1477 = vmatprep.subr.bf16.mxu0 0
      %1478 = vmatpush1.bf16.msra.mxu0 %v1459
      %1479 = vmatprep.subr.bf16.mxu0 0
      %1480 = vmatpush1.bf16.msra.mxu0 %v1458
      %1481 = vmatprep.subr.bf16.mxu0 0
      %1482 = vmatpush1.bf16.msra.mxu0 %v1457
      %1483 = vmatprep.subr.bf16.mxu0 0
      %1484 = vmatpush1.bf16.msra.mxu0 %v1456
      %1485 = vmatprep.subr.bf16.mxu0 0
      %1486 = vmatpush1.bf16.msra.mxu0 %v1455
      %1487 = vmatprep.subr.bf16.mxu0 0
      %1488 = vmatpush2.bf16.msra.mxu0 0
      %1489 = vmatprep.subr.bf16.mxu0 0
      %1490 = vmatpush2.bf16.msra.mxu0 0
      %1491 = vmatprep.subr.bf16.mxu0 0
      %1492 = vmatpush2.bf16.msra.mxu0 0
      %1493 = vmatprep.subr.bf16.mxu0 0
      %1494 = vmatpush2.bf16.msra.mxu0 0
      %1495 = vmatprep.subr.bf16.mxu0 0
      %1496 = vmatpush2.bf16.msra.mxu0 0
      %1497 = vmatprep.subr.bf16.mxu0 0
      %1498 = vmatpush2.bf16.msra.mxu0 0
      %1499 = vmatprep.subr.bf16.mxu0 0
      %1500 = vmatpush2.bf16.msra.mxu0 0
      %1501 = vmatprep.subr.bf16.mxu0 0
      %1502 = vmatpush2.bf16.msra.mxu0 0
      %1503 = vmatprep.mubr.bf16.mxu0 0
      %1504 = vmatmul.mubr.bf16.gmra.mxu0 %v1391
      %v1505 = vpop.f32.mrf.mxu0
      %v1506 = vadd.f32 0.0, %v1505
      %v1507 = vpop.f32.mrf.mxu0
      %v1508 = vpop.f32.mrf.mxu0
      %v1509 = vadd.f32 0.0, %v1508
      %v1510 = vpop.f32.mrf.mxu0
      %1511 = vmatprep.mubr.bf16.mxu0 0
      %1512 = vmatmul.mubr.bf16.gmra.mxu0 %v1392
      %v1513 = vpop.f32.mrf.mxu0
      %v1514 = vadd.f32 0.0, %v1513
      %v1515 = vpop.f32.mrf.mxu0
      %v1516 = vpop.f32.mrf.mxu0
      %v1517 = vadd.f32 0.0, %v1516
      %v1518 = vpop.f32.mrf.mxu0
      %1519 = vmatprep.mubr.bf16.mxu0 0
      %1520 = vmatmul.mubr.bf16.gmra.mxu0 %v1393
      %v1521 = vpop.f32.mrf.mxu0
      %v1522 = vadd.f32 0.0, %v1521
      %v1523 = vpop.f32.mrf.mxu0
      %v1524 = vpop.f32.mrf.mxu0
      %v1525 = vadd.f32 0.0, %v1524
      %v1526 = vpop.f32.mrf.mxu0
      %1527 = vmatprep.mubr.bf16.mxu0 0
      %1528 = vmatmul.mubr.bf16.gmra.mxu0 %v1394
      %v1529 = vpop.f32.mrf.mxu0
      %v1530 = vadd.f32 0.0, %v1529
      %v1531 = vpop.f32.mrf.mxu0
      %v1532 = vpop.f32.mrf.mxu0
      %v1533 = vadd.f32 0.0, %v1532
      %v1534 = vpop.f32.mrf.mxu0
      %1535 = vmatprep.mubr.bf16.mxu0 0
      %1536 = vmatmul.mubr.bf16.gmra.mxu0 %v1395
      %v1537 = vpop.f32.mrf.mxu0
      %v1538 = vadd.f32 0.0, %v1537
      %v1539 = vpop.f32.mrf.mxu0
      %v1540 = vpop.f32.mrf.mxu0
      %v1541 = vadd.f32 0.0, %v1540
      %v1542 = vpop.f32.mrf.mxu0
      %1543 = vmatprep.mubr.bf16.mxu0 0
      %1544 = vmatmul.mubr.bf16.gmra.mxu0 %v1396
      %v1545 = vpop.f32.mrf.mxu0
      %v1546 = vadd.f32 0.0, %v1545
      %v1547 = vpop.f32.mrf.mxu0
      %v1548 = vpop.f32.mrf.mxu0
      %v1549 = vadd.f32 0.0, %v1548
      %v1550 = vpop.f32.mrf.mxu0
      %1551 = vmatprep.mubr.bf16.mxu0 0
      %1552 = vmatmul.mubr.bf16.gmra.mxu0 %v1397
      %v1553 = vpop.f32.mrf.mxu0
      %v1554 = vadd.f32 0.0, %v1553
      %v1555 = vpop.f32.mrf.mxu0
      %v1556 = vpop.f32.mrf.mxu0
      %v1557 = vadd.f32 0.0, %v1556
      %v1558 = vpop.f32.mrf.mxu0
      %1559 = vmatprep.mubr.bf16.mxu0 0
      %1560 = vmatmul.mubr.bf16.gmra.mxu0 %v1398
      %v1561 = vpop.f32.mrf.mxu0
      %v1562 = vadd.f32 0.0, %v1561
      %v1563 = vpop.f32.mrf.mxu0
      %v1564 = vpop.f32.mrf.mxu0
      %v1565 = vadd.f32 0.0, %v1564
      %v1566 = vpop.f32.mrf.mxu0
      %1567 = vmatprep.mubr.bf16.mxu0 0
      %1568 = vmatmul.mubr.bf16.gmra.mxu0 %v1399
      %v1569 = vpop.f32.mrf.mxu0
      %v1570 = vadd.f32 0.0, %v1569
      %v1571 = vpop.f32.mrf.mxu0
      %v1572 = vpop.f32.mrf.mxu0
      %v1573 = vadd.f32 0.0, %v1572
      %v1574 = vpop.f32.mrf.mxu0
      %1575 = vmatprep.mubr.bf16.mxu0 0
      %1576 = vmatmul.mubr.bf16.gmra.mxu0 %v1400
      %v1577 = vpop.f32.mrf.mxu0
      %v1578 = vadd.f32 0.0, %v1577
      %v1579 = vpop.f32.mrf.mxu0
      %v1580 = vpop.f32.mrf.mxu0
      %v1581 = vadd.f32 0.0, %v1580
      %v1582 = vpop.f32.mrf.mxu0
      %1583 = vmatprep.mubr.bf16.mxu0 0
      %1584 = vmatmul.mubr.bf16.gmra.mxu0 %v1401
      %v1585 = vpop.f32.mrf.mxu0
      %v1586 = vadd.f32 0.0, %v1585
      %v1587 = vpop.f32.mrf.mxu0
      %v1588 = vpop.f32.mrf.mxu0
      %v1589 = vadd.f32 0.0, %v1588
      %v1590 = vpop.f32.mrf.mxu0
      %1591 = vmatprep.mubr.bf16.mxu0 0
      %1592 = vmatmul.mubr.bf16.gmra.mxu0 %v1402
      %v1593 = vpop.f32.mrf.mxu0
      %v1594 = vadd.f32 0.0, %v1593
      %v1595 = vpop.f32.mrf.mxu0
      %v1596 = vpop.f32.mrf.mxu0
      %v1597 = vadd.f32 0.0, %v1596
      %v1598 = vpop.f32.mrf.mxu0
      %1599 = vmatprep.mubr.bf16.mxu0 0
      %1600 = vmatmul.mubr.bf16.gmra.mxu0 %v1403
      %v1601 = vpop.f32.mrf.mxu0
      %v1602 = vadd.f32 0.0, %v1601
      %v1603 = vpop.f32.mrf.mxu0
      %v1604 = vpop.f32.mrf.mxu0
      %v1605 = vadd.f32 0.0, %v1604
      %v1606 = vpop.f32.mrf.mxu0
      %1607 = vmatprep.mubr.bf16.mxu0 0
      %1608 = vmatmul.mubr.bf16.gmra.mxu0 %v1404
      %v1609 = vpop.f32.mrf.mxu0
      %v1610 = vadd.f32 0.0, %v1609
      %v1611 = vpop.f32.mrf.mxu0
      %v1612 = vpop.f32.mrf.mxu0
      %v1613 = vadd.f32 0.0, %v1612
      %v1614 = vpop.f32.mrf.mxu0
      %1615 = vmatprep.mubr.bf16.mxu0 0
      %1616 = vmatmul.mubr.bf16.gmra.mxu0 %v1405
      %v1617 = vpop.f32.mrf.mxu0
      %v1618 = vadd.f32 0.0, %v1617
      %v1619 = vpop.f32.mrf.mxu0
      %v1620 = vpop.f32.mrf.mxu0
      %v1621 = vadd.f32 0.0, %v1620
      %v1622 = vpop.f32.mrf.mxu0
      %1623 = vmatprep.mubr.bf16.mxu0 0
      %1624 = vmatmul.mubr.bf16.gmra.mxu0 %v1406
      %v1625 = vpop.f32.mrf.mxu0
      %v1626 = vadd.f32 0.0, %v1625
      %v1627 = vpop.f32.mrf.mxu0
      %v1628 = vpop.f32.mrf.mxu0
      %v1629 = vadd.f32 0.0, %v1628
      %v1630 = vpop.f32.mrf.mxu0
      %1631 = vdwg.mxu0
      %v1632 = vadd.f32 %v1246, %v1506
      %v1633 = vadd.f32 %v1247, %v1509
      %v1634 = vadd.f32 %v1248, %v1514
      %v1635 = vadd.f32 %v1249, %v1517
      %v1636 = vadd.f32 %v1250, %v1522
      %v1637 = vadd.f32 %v1251, %v1525
      %v1638 = vadd.f32 %v1252, %v1530
      %v1639 = vadd.f32 %v1253, %v1533
      %v1640 = vadd.f32 %v1254, %v1538
      %v1641 = vadd.f32 %v1255, %v1541
      %v1642 = vadd.f32 %v1256, %v1546
      %v1643 = vadd.f32 %v1257, %v1549
      %v1644 = vadd.f32 %v1258, %v1554
      %v1645 = vadd.f32 %v1259, %v1557
      %v1646 = vadd.f32 %v1260, %v1562
      %v1647 = vadd.f32 %v1261, %v1565
      %v1648 = vadd.f32 %v1262, %v1570
      %v1649 = vadd.f32 %v1263, %v1573
      %v1650 = vadd.f32 %v1264, %v1578
      %v1651 = vadd.f32 %v1265, %v1581
      %v1652 = vadd.f32 %v1266, %v1586
      %v1653 = vadd.f32 %v1267, %v1589
      %v1654 = vadd.f32 %v1268, %v1594
      %v1655 = vadd.f32 %v1269, %v1597
      %v1656 = vadd.f32 %v1270, %v1602
      %v1657 = vadd.f32 %v1271, %v1605
      %v1658 = vadd.f32 %v1272, %v1610
      %v1659 = vadd.f32 %v1273, %v1613
      %v1660 = vadd.f32 %v1274, %v1618
      %v1661 = vadd.f32 %v1275, %v1621
      %v1662 = vadd.f32 %v1276, %v1626
      %v1663 = vadd.f32 %v1277, %v1629
      %v1664 = vld [vmem:[%s231 + $0x8] sm:$0xf]
      %v1665 = vld [vmem:[%s231 + $0xc] sm:$0xf]
      %v1666 = vld [vmem:[%s231 + $0x10] sm:$0xf]
      %v1667 = vld [vmem:[%s231 + $0x14] sm:$0xf]
      %v1668 = vld [vmem:[%s231 + $0x18] sm:$0xf]
      %v1669 = vld [vmem:[%s231 + $0x1c] sm:$0xf]
      %v1670 = vld [vmem:[%s231 + $0x20] sm:$0xf]
      %v1671 = vld [vmem:[%s231 + $0x24] sm:$0xf]
      %v1672 = vld [vmem:[%s231 + $0x28] sm:$0xf]
      %v1673 = vld [vmem:[%s231 + $0x2c] sm:$0xf]
      %v1674 = vld [vmem:[%s231 + $0x30] sm:$0xf]
      %v1675 = vld [vmem:[%s231 + $0x34] sm:$0xf]
      %v1676 = vld [vmem:[%s231 + $0x38] sm:$0xf]
      %v1677 = vld [vmem:[%s231 + $0x3c] sm:$0xf]
      %v1678 = vld [vmem:[%s231 + $0x40] sm:$0xf]
      %v1679 = vld [vmem:[%s231 + $0x44] sm:$0xf]
      %v1680 = vld [vmem:[%s231 + $0x48] sm:$0xf]
      %v1681 = vld [vmem:[%s231 + $0x4c] sm:$0xf]
      %v1682 = vld [vmem:[%s231 + $0x50] sm:$0xf]
      %v1683 = vld [vmem:[%s231 + $0x54] sm:$0xf]
      %v1684 = vld [vmem:[%s231 + $0x58] sm:$0xf]
      %v1685 = vld [vmem:[%s231 + $0x5c] sm:$0xf]
      %v1686 = vld [vmem:[%s231 + $0x60] sm:$0xf]
      %v1687 = vld [vmem:[%s231 + $0x64] sm:$0xf]
      %v1688 = vld [vmem:[%s231 + $0x68] sm:$0xf]
      %v1689 = vld [vmem:[%s231 + $0x6c] sm:$0xf]
      %v1690 = vld [vmem:[%s231 + $0x70] sm:$0xf]
      %v1691 = vld [vmem:[%s231 + $0x74] sm:$0xf]
      %v1692 = vld [vmem:[%s231 + $0x78] sm:$0xf]
      %v1693 = vld [vmem:[%s231 + $0x7c] sm:$0xf]
      %v1694 = vld [vmem:[%s231 + $0x80] sm:$0xf]
      %v1695 = vld [vmem:[%s231 + $0x84] sm:$0xf]
      %s1696 = scalar_lea.vmem %s1, 256
      %v1697 = vld [vmem:[%s1696] sm:$0xf]
      %v1698 = vld [vmem:[%s1696 + $0x4] sm:$0xf]
      %v1699 = vld [vmem:[%s1696 + $0x8] sm:$0xf]
      %v1700 = vld [vmem:[%s1696 + $0xc] sm:$0xf]
      %v1701 = vld [vmem:[%s1696 + $0x10] sm:$0xf]
      %v1702 = vld [vmem:[%s1696 + $0x14] sm:$0xf]
      %v1703 = vld [vmem:[%s1696 + $0x18] sm:$0xf]
      %v1704 = vld [vmem:[%s1696 + $0x1c] sm:$0xf]
      %v1705 = vld [vmem:[%s1696 + $0x20] sm:$0xf]
      %v1706 = vld [vmem:[%s1696 + $0x24] sm:$0xf]
      %v1707 = vld [vmem:[%s1696 + $0x28] sm:$0xf]
      %v1708 = vld [vmem:[%s1696 + $0x2c] sm:$0xf]
      %v1709 = vld [vmem:[%s1696 + $0x30] sm:$0xf]
      %v1710 = vld [vmem:[%s1696 + $0x34] sm:$0xf]
      %v1711 = vld [vmem:[%s1696 + $0x38] sm:$0xf]
      %v1712 = vld [vmem:[%s1696 + $0x3c] sm:$0xf]
      %v1745 = vunpack.c.l.b16 %v1664
      %v1746 = vunpack.c.l.b16 %v1665
      %v1747 = vunpack.c.l.b16 %v1666
      %v1748 = vunpack.c.l.b16 %v1667
      %v1749 = vunpack.c.l.b16 %v1668
      %v1750 = vunpack.c.l.b16 %v1669
      %v1751 = vunpack.c.l.b16 %v1670
      %v1752 = vunpack.c.l.b16 %v1671
      %v1753 = vunpack.c.l.b16 %v1672
      %v1754 = vunpack.c.l.b16 %v1673
      %v1755 = vunpack.c.l.b16 %v1674
      %v1756 = vunpack.c.l.b16 %v1675
      %v1757 = vunpack.c.l.b16 %v1676
      %v1758 = vunpack.c.l.b16 %v1677
      %v1759 = vunpack.c.l.b16 %v1678
      %v1760 = vunpack.c.l.b16 %v1679
      %v1761 = vunpack.c.l.b16 %v1680
      %v1762 = vunpack.c.l.b16 %v1681
      %v1763 = vunpack.c.l.b16 %v1682
      %v1764 = vunpack.c.l.b16 %v1683
      %v1765 = vunpack.c.l.b16 %v1684
      %v1766 = vunpack.c.l.b16 %v1685
      %v1767 = vunpack.c.l.b16 %v1686
      %v1768 = vunpack.c.l.b16 %v1687
      %v1769 = vunpack.c.l.b16 %v1688
      %v1770 = vunpack.c.l.b16 %v1689
      %v1771 = vunpack.c.l.b16 %v1690
      %v1772 = vunpack.c.l.b16 %v1691
      %v1773 = vunpack.c.l.b16 %v1692
      %v1774 = vunpack.c.l.b16 %v1693
      %v1775 = vunpack.c.l.b16 %v1694
      %v1776 = vunpack.c.l.b16 %v1695
      %v1777 = vpack.c.b16 %v1746, %v1745
      %v1778 = vpack.c.b16 %v1748, %v1747
      %v1779 = vpack.c.b16 %v1750, %v1749
      %v1780 = vpack.c.b16 %v1752, %v1751
      %v1781 = vpack.c.b16 %v1754, %v1753
      %v1782 = vpack.c.b16 %v1756, %v1755
      %v1783 = vpack.c.b16 %v1758, %v1757
      %v1784 = vpack.c.b16 %v1760, %v1759
      %v1785 = vpack.c.b16 %v1762, %v1761
      %v1786 = vpack.c.b16 %v1764, %v1763
      %v1787 = vpack.c.b16 %v1766, %v1765
      %v1788 = vpack.c.b16 %v1768, %v1767
      %v1789 = vpack.c.b16 %v1770, %v1769
      %v1790 = vpack.c.b16 %v1772, %v1771
      %v1791 = vpack.c.b16 %v1774, %v1773
      %v1792 = vpack.c.b16 %v1776, %v1775
      %v1825 = vunpack.c.l.b16 %v1697
      %v1826 = vunpack.c.l.b16 %v1698
      %v1827 = vunpack.c.l.b16 %v1699
      %v1828 = vunpack.c.l.b16 %v1700
      %v1829 = vunpack.c.l.b16 %v1701
      %v1830 = vunpack.c.l.b16 %v1702
      %v1831 = vunpack.c.l.b16 %v1703
      %v1832 = vunpack.c.l.b16 %v1704
      %v1833 = vunpack.c.l.b16 %v1705
      %v1834 = vunpack.c.l.b16 %v1706
      %v1835 = vunpack.c.l.b16 %v1707
      %v1836 = vunpack.c.l.b16 %v1708
      %v1837 = vunpack.c.l.b16 %v1709
      %v1838 = vunpack.c.l.b16 %v1710
      %v1839 = vunpack.c.l.b16 %v1711
      %v1840 = vunpack.c.l.b16 %v1712
      %v1841 = vpack.c.b16 %v1826, %v1825
      %v1842 = vpack.c.b16 %v1828, %v1827
      %v1843 = vpack.c.b16 %v1830, %v1829
      %v1844 = vpack.c.b16 %v1832, %v1831
      %v1845 = vpack.c.b16 %v1834, %v1833
      %v1846 = vpack.c.b16 %v1836, %v1835
      %v1847 = vpack.c.b16 %v1838, %v1837
      %v1848 = vpack.c.b16 %v1840, %v1839
      %1857 = vmatprep.subr.bf16.mxu0 0
      %1858 = vmatpush1.bf16.msra.mxu0 %v1848
      %1859 = vmatprep.subr.bf16.mxu0 0
      %1860 = vmatpush1.bf16.msra.mxu0 %v1847
      %1861 = vmatprep.subr.bf16.mxu0 0
      %1862 = vmatpush1.bf16.msra.mxu0 %v1846
      %1863 = vmatprep.subr.bf16.mxu0 0
      %1864 = vmatpush1.bf16.msra.mxu0 %v1845
      %1865 = vmatprep.subr.bf16.mxu0 0
      %1866 = vmatpush1.bf16.msra.mxu0 %v1844
      %1867 = vmatprep.subr.bf16.mxu0 0
      %1868 = vmatpush1.bf16.msra.mxu0 %v1843
      %1869 = vmatprep.subr.bf16.mxu0 0
      %1870 = vmatpush1.bf16.msra.mxu0 %v1842
      %1871 = vmatprep.subr.bf16.mxu0 0
      %1872 = vmatpush1.bf16.msra.mxu0 %v1841
      %1873 = vmatprep.subr.bf16.mxu0 0
      %1874 = vmatpush2.bf16.msra.mxu0 0
      %1875 = vmatprep.subr.bf16.mxu0 0
      %1876 = vmatpush2.bf16.msra.mxu0 0
      %1877 = vmatprep.subr.bf16.mxu0 0
      %1878 = vmatpush2.bf16.msra.mxu0 0
      %1879 = vmatprep.subr.bf16.mxu0 0
      %1880 = vmatpush2.bf16.msra.mxu0 0
      %1881 = vmatprep.subr.bf16.mxu0 0
      %1882 = vmatpush2.bf16.msra.mxu0 0
      %1883 = vmatprep.subr.bf16.mxu0 0
      %1884 = vmatpush2.bf16.msra.mxu0 0
      %1885 = vmatprep.subr.bf16.mxu0 0
      %1886 = vmatpush2.bf16.msra.mxu0 0
      %1887 = vmatprep.subr.bf16.mxu0 0
      %1888 = vmatpush2.bf16.msra.mxu0 0
      %1889 = vmatprep.mubr.bf16.mxu0 0
      %1890 = vmatmul.mubr.bf16.gmra.mxu0 %v1777
      %v1891 = vpop.f32.mrf.mxu0
      %v1892 = vadd.f32 0.0, %v1891
      %v1893 = vpop.f32.mrf.mxu0
      %v1894 = vpop.f32.mrf.mxu0
      %v1895 = vadd.f32 0.0, %v1894
      %v1896 = vpop.f32.mrf.mxu0
      %1897 = vmatprep.mubr.bf16.mxu0 0
      %1898 = vmatmul.mubr.bf16.gmra.mxu0 %v1778
      %v1899 = vpop.f32.mrf.mxu0
      %v1900 = vadd.f32 0.0, %v1899
      %v1901 = vpop.f32.mrf.mxu0
      %v1902 = vpop.f32.mrf.mxu0
      %v1903 = vadd.f32 0.0, %v1902
      %v1904 = vpop.f32.mrf.mxu0
      %1905 = vmatprep.mubr.bf16.mxu0 0
      %1906 = vmatmul.mubr.bf16.gmra.mxu0 %v1779
      %v1907 = vpop.f32.mrf.mxu0
      %v1908 = vadd.f32 0.0, %v1907
      %v1909 = vpop.f32.mrf.mxu0
      %v1910 = vpop.f32.mrf.mxu0
      %v1911 = vadd.f32 0.0, %v1910
      %v1912 = vpop.f32.mrf.mxu0
      %1913 = vmatprep.mubr.bf16.mxu0 0
      %1914 = vmatmul.mubr.bf16.gmra.mxu0 %v1780
      %v1915 = vpop.f32.mrf.mxu0
      %v1916 = vadd.f32 0.0, %v1915
      %v1917 = vpop.f32.mrf.mxu0
      %v1918 = vpop.f32.mrf.mxu0
      %v1919 = vadd.f32 0.0, %v1918
      %v1920 = vpop.f32.mrf.mxu0
      %1921 = vmatprep.mubr.bf16.mxu0 0
      %1922 = vmatmul.mubr.bf16.gmra.mxu0 %v1781
      %v1923 = vpop.f32.mrf.mxu0
      %v1924 = vadd.f32 0.0, %v1923
      %v1925 = vpop.f32.mrf.mxu0
      %v1926 = vpop.f32.mrf.mxu0
      %v1927 = vadd.f32 0.0, %v1926
      %v1928 = vpop.f32.mrf.mxu0
      %1929 = vmatprep.mubr.bf16.mxu0 0
      %1930 = vmatmul.mubr.bf16.gmra.mxu0 %v1782
      %v1931 = vpop.f32.mrf.mxu0
      %v1932 = vadd.f32 0.0, %v1931
      %v1933 = vpop.f32.mrf.mxu0
      %v1934 = vpop.f32.mrf.mxu0
      %v1935 = vadd.f32 0.0, %v1934
      %v1936 = vpop.f32.mrf.mxu0
      %1937 = vmatprep.mubr.bf16.mxu0 0
      %1938 = vmatmul.mubr.bf16.gmra.mxu0 %v1783
      %v1939 = vpop.f32.mrf.mxu0
      %v1940 = vadd.f32 0.0, %v1939
      %v1941 = vpop.f32.mrf.mxu0
      %v1942 = vpop.f32.mrf.mxu0
      %v1943 = vadd.f32 0.0, %v1942
      %v1944 = vpop.f32.mrf.mxu0
      %1945 = vmatprep.mubr.bf16.mxu0 0
      %1946 = vmatmul.mubr.bf16.gmra.mxu0 %v1784
      %v1947 = vpop.f32.mrf.mxu0
      %v1948 = vadd.f32 0.0, %v1947
      %v1949 = vpop.f32.mrf.mxu0
      %v1950 = vpop.f32.mrf.mxu0
      %v1951 = vadd.f32 0.0, %v1950
      %v1952 = vpop.f32.mrf.mxu0
      %1953 = vmatprep.mubr.bf16.mxu0 0
      %1954 = vmatmul.mubr.bf16.gmra.mxu0 %v1785
      %v1955 = vpop.f32.mrf.mxu0
      %v1956 = vadd.f32 0.0, %v1955
      %v1957 = vpop.f32.mrf.mxu0
      %v1958 = vpop.f32.mrf.mxu0
      %v1959 = vadd.f32 0.0, %v1958
      %v1960 = vpop.f32.mrf.mxu0
      %1961 = vmatprep.mubr.bf16.mxu0 0
      %1962 = vmatmul.mubr.bf16.gmra.mxu0 %v1786
      %v1963 = vpop.f32.mrf.mxu0
      %v1964 = vadd.f32 0.0, %v1963
      %v1965 = vpop.f32.mrf.mxu0
      %v1966 = vpop.f32.mrf.mxu0
      %v1967 = vadd.f32 0.0, %v1966
      %v1968 = vpop.f32.mrf.mxu0
      %1969 = vmatprep.mubr.bf16.mxu0 0
      %1970 = vmatmul.mubr.bf16.gmra.mxu0 %v1787
      %v1971 = vpop.f32.mrf.mxu0
      %v1972 = vadd.f32 0.0, %v1971
      %v1973 = vpop.f32.mrf.mxu0
      %v1974 = vpop.f32.mrf.mxu0
      %v1975 = vadd.f32 0.0, %v1974
      %v1976 = vpop.f32.mrf.mxu0
      %1977 = vmatprep.mubr.bf16.mxu0 0
      %1978 = vmatmul.mubr.bf16.gmra.mxu0 %v1788
      %v1979 = vpop.f32.mrf.mxu0
      %v1980 = vadd.f32 0.0, %v1979
      %v1981 = vpop.f32.mrf.mxu0
      %v1982 = vpop.f32.mrf.mxu0
      %v1983 = vadd.f32 0.0, %v1982
      %v1984 = vpop.f32.mrf.mxu0
      %1985 = vmatprep.mubr.bf16.mxu0 0
      %1986 = vmatmul.mubr.bf16.gmra.mxu0 %v1789
      %v1987 = vpop.f32.mrf.mxu0
      %v1988 = vadd.f32 0.0, %v1987
      %v1989 = vpop.f32.mrf.mxu0
      %v1990 = vpop.f32.mrf.mxu0
      %v1991 = vadd.f32 0.0, %v1990
      %v1992 = vpop.f32.mrf.mxu0
      %1993 = vmatprep.mubr.bf16.mxu0 0
      %1994 = vmatmul.mubr.bf16.gmra.mxu0 %v1790
      %v1995 = vpop.f32.mrf.mxu0
      %v1996 = vadd.f32 0.0, %v1995
      %v1997 = vpop.f32.mrf.mxu0
      %v1998 = vpop.f32.mrf.mxu0
      %v1999 = vadd.f32 0.0, %v1998
      %v2000 = vpop.f32.mrf.mxu0
      %2001 = vmatprep.mubr.bf16.mxu0 0
      %2002 = vmatmul.mubr.bf16.gmra.mxu0 %v1791
      %v2003 = vpop.f32.mrf.mxu0
      %v2004 = vadd.f32 0.0, %v2003
      %v2005 = vpop.f32.mrf.mxu0
      %v2006 = vpop.f32.mrf.mxu0
      %v2007 = vadd.f32 0.0, %v2006
      %v2008 = vpop.f32.mrf.mxu0
      %2009 = vmatprep.mubr.bf16.mxu0 0
      %2010 = vmatmul.mubr.bf16.gmra.mxu0 %v1792
      %v2011 = vpop.f32.mrf.mxu0
      %v2012 = vadd.f32 0.0, %v2011
      %v2013 = vpop.f32.mrf.mxu0
      %v2014 = vpop.f32.mrf.mxu0
      %v2015 = vadd.f32 0.0, %v2014
      %v2016 = vpop.f32.mrf.mxu0
      %2017 = vdwg.mxu0
      %v2018 = vadd.f32 %v1632, %v1892
      %v2019 = vadd.f32 %v1633, %v1895
      %v2020 = vadd.f32 %v1634, %v1900
      %v2021 = vadd.f32 %v1635, %v1903
      %v2022 = vadd.f32 %v1636, %v1908
      %v2023 = vadd.f32 %v1637, %v1911
      %v2024 = vadd.f32 %v1638, %v1916
      %v2025 = vadd.f32 %v1639, %v1919
      %v2026 = vadd.f32 %v1640, %v1924
      %v2027 = vadd.f32 %v1641, %v1927
      %v2028 = vadd.f32 %v1642, %v1932
      %v2029 = vadd.f32 %v1643, %v1935
      %v2030 = vadd.f32 %v1644, %v1940
      %v2031 = vadd.f32 %v1645, %v1943
      %v2032 = vadd.f32 %v1646, %v1948
      %v2033 = vadd.f32 %v1647, %v1951
      %v2034 = vadd.f32 %v1648, %v1956
      %v2035 = vadd.f32 %v1649, %v1959
      %v2036 = vadd.f32 %v1650, %v1964
      %v2037 = vadd.f32 %v1651, %v1967
      %v2038 = vadd.f32 %v1652, %v1972
      %v2039 = vadd.f32 %v1653, %v1975
      %v2040 = vadd.f32 %v1654, %v1980
      %v2041 = vadd.f32 %v1655, %v1983
      %v2042 = vadd.f32 %v1656, %v1988
      %v2043 = vadd.f32 %v1657, %v1991
      %v2044 = vadd.f32 %v1658, %v1996
      %v2045 = vadd.f32 %v1659, %v1999
      %v2046 = vadd.f32 %v1660, %v2004
      %v2047 = vadd.f32 %v1661, %v2007
      %v2048 = vadd.f32 %v1662, %v2012
      %v2049 = vadd.f32 %v1663, %v2015
      %v2050 = vld [vmem:[%s891 + $0x8] sm:$0xf]
      %v2051 = vld [vmem:[%s891 + $0xc] sm:$0xf]
      %v2052 = vld [vmem:[%s891 + $0x10] sm:$0xf]
      %v2053 = vld [vmem:[%s891 + $0x14] sm:$0xf]
      %v2054 = vld [vmem:[%s891 + $0x18] sm:$0xf]
      %v2055 = vld [vmem:[%s891 + $0x1c] sm:$0xf]
      %v2056 = vld [vmem:[%s891 + $0x20] sm:$0xf]
      %v2057 = vld [vmem:[%s891 + $0x24] sm:$0xf]
      %v2058 = vld [vmem:[%s891 + $0x28] sm:$0xf]
      %v2059 = vld [vmem:[%s891 + $0x2c] sm:$0xf]
      %v2060 = vld [vmem:[%s891 + $0x30] sm:$0xf]
      %v2061 = vld [vmem:[%s891 + $0x34] sm:$0xf]
      %v2062 = vld [vmem:[%s891 + $0x38] sm:$0xf]
      %v2063 = vld [vmem:[%s891 + $0x3c] sm:$0xf]
      %v2064 = vld [vmem:[%s891 + $0x40] sm:$0xf]
      %v2065 = vld [vmem:[%s891 + $0x44] sm:$0xf]
      %v2066 = vld [vmem:[%s891 + $0x48] sm:$0xf]
      %v2067 = vld [vmem:[%s891 + $0x4c] sm:$0xf]
      %v2068 = vld [vmem:[%s891 + $0x50] sm:$0xf]
      %v2069 = vld [vmem:[%s891 + $0x54] sm:$0xf]
      %v2070 = vld [vmem:[%s891 + $0x58] sm:$0xf]
      %v2071 = vld [vmem:[%s891 + $0x5c] sm:$0xf]
      %v2072 = vld [vmem:[%s891 + $0x60] sm:$0xf]
      %v2073 = vld [vmem:[%s891 + $0x64] sm:$0xf]
      %v2074 = vld [vmem:[%s891 + $0x68] sm:$0xf]
      %v2075 = vld [vmem:[%s891 + $0x6c] sm:$0xf]
      %v2076 = vld [vmem:[%s891 + $0x70] sm:$0xf]
      %v2077 = vld [vmem:[%s891 + $0x74] sm:$0xf]
      %v2078 = vld [vmem:[%s891 + $0x78] sm:$0xf]
      %v2079 = vld [vmem:[%s891 + $0x7c] sm:$0xf]
      %v2080 = vld [vmem:[%s891 + $0x80] sm:$0xf]
      %v2081 = vld [vmem:[%s891 + $0x84] sm:$0xf]
      %s2082 = scalar_lea.vmem %s1, 320
      %v2083 = vld [vmem:[%s2082] sm:$0xf]
      %v2084 = vld [vmem:[%s2082 + $0x4] sm:$0xf]
      %v2085 = vld [vmem:[%s2082 + $0x8] sm:$0xf]
      %v2086 = vld [vmem:[%s2082 + $0xc] sm:$0xf]
      %v2087 = vld [vmem:[%s2082 + $0x10] sm:$0xf]
      %v2088 = vld [vmem:[%s2082 + $0x14] sm:$0xf]
      %v2089 = vld [vmem:[%s2082 + $0x18] sm:$0xf]
      %v2090 = vld [vmem:[%s2082 + $0x1c] sm:$0xf]
      %v2091 = vld [vmem:[%s2082 + $0x20] sm:$0xf]
      %v2092 = vld [vmem:[%s2082 + $0x24] sm:$0xf]
      %v2093 = vld [vmem:[%s2082 + $0x28] sm:$0xf]
      %v2094 = vld [vmem:[%s2082 + $0x2c] sm:$0xf]
      %v2095 = vld [vmem:[%s2082 + $0x30] sm:$0xf]
      %v2096 = vld [vmem:[%s2082 + $0x34] sm:$0xf]
      %v2097 = vld [vmem:[%s2082 + $0x38] sm:$0xf]
      %v2098 = vld [vmem:[%s2082 + $0x3c] sm:$0xf]
      %v2131 = vunpack.c.l.b16 %v2050
      %v2132 = vunpack.c.l.b16 %v2051
      %v2133 = vunpack.c.l.b16 %v2052
      %v2134 = vunpack.c.l.b16 %v2053
      %v2135 = vunpack.c.l.b16 %v2054
      %v2136 = vunpack.c.l.b16 %v2055
      %v2137 = vunpack.c.l.b16 %v2056
      %v2138 = vunpack.c.l.b16 %v2057
      %v2139 = vunpack.c.l.b16 %v2058
      %v2140 = vunpack.c.l.b16 %v2059
      %v2141 = vunpack.c.l.b16 %v2060
      %v2142 = vunpack.c.l.b16 %v2061
      %v2143 = vunpack.c.l.b16 %v2062
      %v2144 = vunpack.c.l.b16 %v2063
      %v2145 = vunpack.c.l.b16 %v2064
      %v2146 = vunpack.c.l.b16 %v2065
      %v2147 = vunpack.c.l.b16 %v2066
      %v2148 = vunpack.c.l.b16 %v2067
      %v2149 = vunpack.c.l.b16 %v2068
      %v2150 = vunpack.c.l.b16 %v2069
      %v2151 = vunpack.c.l.b16 %v2070
      %v2152 = vunpack.c.l.b16 %v2071
      %v2153 = vunpack.c.l.b16 %v2072
      %v2154 = vunpack.c.l.b16 %v2073
      %v2155 = vunpack.c.l.b16 %v2074
      %v2156 = vunpack.c.l.b16 %v2075
      %v2157 = vunpack.c.l.b16 %v2076
      %v2158 = vunpack.c.l.b16 %v2077
      %v2159 = vunpack.c.l.b16 %v2078
      %v2160 = vunpack.c.l.b16 %v2079
      %v2161 = vunpack.c.l.b16 %v2080
      %v2162 = vunpack.c.l.b16 %v2081
      %v2163 = vpack.c.b16 %v2132, %v2131
      %v2164 = vpack.c.b16 %v2134, %v2133
      %v2165 = vpack.c.b16 %v2136, %v2135
      %v2166 = vpack.c.b16 %v2138, %v2137
      %v2167 = vpack.c.b16 %v2140, %v2139
      %v2168 = vpack.c.b16 %v2142, %v2141
      %v2169 = vpack.c.b16 %v2144, %v2143
      %v2170 = vpack.c.b16 %v2146, %v2145
      %v2171 = vpack.c.b16 %v2148, %v2147
      %v2172 = vpack.c.b16 %v2150, %v2149
      %v2173 = vpack.c.b16 %v2152, %v2151
      %v2174 = vpack.c.b16 %v2154, %v2153
      %v2175 = vpack.c.b16 %v2156, %v2155
      %v2176 = vpack.c.b16 %v2158, %v2157
      %v2177 = vpack.c.b16 %v2160, %v2159
      %v2178 = vpack.c.b16 %v2162, %v2161
      %v2211 = vunpack.c.l.b16 %v2083
      %v2212 = vunpack.c.l.b16 %v2084
      %v2213 = vunpack.c.l.b16 %v2085
      %v2214 = vunpack.c.l.b16 %v2086
      %v2215 = vunpack.c.l.b16 %v2087
      %v2216 = vunpack.c.l.b16 %v2088
      %v2217 = vunpack.c.l.b16 %v2089
      %v2218 = vunpack.c.l.b16 %v2090
      %v2219 = vunpack.c.l.b16 %v2091
      %v2220 = vunpack.c.l.b16 %v2092
      %v2221 = vunpack.c.l.b16 %v2093
      %v2222 = vunpack.c.l.b16 %v2094
      %v2223 = vunpack.c.l.b16 %v2095
      %v2224 = vunpack.c.l.b16 %v2096
      %v2225 = vunpack.c.l.b16 %v2097
      %v2226 = vunpack.c.l.b16 %v2098
      %v2227 = vpack.c.b16 %v2212, %v2211
      %v2228 = vpack.c.b16 %v2214, %v2213
      %v2229 = vpack.c.b16 %v2216, %v2215
      %v2230 = vpack.c.b16 %v2218, %v2217
      %v2231 = vpack.c.b16 %v2220, %v2219
      %v2232 = vpack.c.b16 %v2222, %v2221
      %v2233 = vpack.c.b16 %v2224, %v2223
      %v2234 = vpack.c.b16 %v2226, %v2225
      %2243 = vmatprep.subr.bf16.mxu0 0
      %2244 = vmatpush1.bf16.msra.mxu0 %v2234
      %2245 = vmatprep.subr.bf16.mxu0 0
      %2246 = vmatpush1.bf16.msra.mxu0 %v2233
      %2247 = vmatprep.subr.bf16.mxu0 0
      %2248 = vmatpush1.bf16.msra.mxu0 %v2232
      %2249 = vmatprep.subr.bf16.mxu0 0
      %2250 = vmatpush1.bf16.msra.mxu0 %v2231
      %2251 = vmatprep.subr.bf16.mxu0 0
      %2252 = vmatpush1.bf16.msra.mxu0 %v2230
      %2253 = vmatprep.subr.bf16.mxu0 0
      %2254 = vmatpush1.bf16.msra.mxu0 %v2229
      %2255 = vmatprep.subr.bf16.mxu0 0
      %2256 = vmatpush1.bf16.msra.mxu0 %v2228
      %2257 = vmatprep.subr.bf16.mxu0 0
      %2258 = vmatpush1.bf16.msra.mxu0 %v2227
      %2259 = vmatprep.subr.bf16.mxu0 0
      %2260 = vmatpush2.bf16.msra.mxu0 0
      %2261 = vmatprep.subr.bf16.mxu0 0
      %2262 = vmatpush2.bf16.msra.mxu0 0
      %2263 = vmatprep.subr.bf16.mxu0 0
      %2264 = vmatpush2.bf16.msra.mxu0 0
      %2265 = vmatprep.subr.bf16.mxu0 0
      %2266 = vmatpush2.bf16.msra.mxu0 0
      %2267 = vmatprep.subr.bf16.mxu0 0
      %2268 = vmatpush2.bf16.msra.mxu0 0
      %2269 = vmatprep.subr.bf16.mxu0 0
      %2270 = vmatpush2.bf16.msra.mxu0 0
      %2271 = vmatprep.subr.bf16.mxu0 0
      %2272 = vmatpush2.bf16.msra.mxu0 0
      %2273 = vmatprep.subr.bf16.mxu0 0
      %2274 = vmatpush2.bf16.msra.mxu0 0
      %2275 = vmatprep.mubr.bf16.mxu0 0
      %2276 = vmatmul.mubr.bf16.gmra.mxu0 %v2163
      %v2277 = vpop.f32.mrf.mxu0
      %v2278 = vadd.f32 0.0, %v2277
      %v2279 = vpop.f32.mrf.mxu0
      %v2280 = vpop.f32.mrf.mxu0
      %v2281 = vadd.f32 0.0, %v2280
      %v2282 = vpop.f32.mrf.mxu0
      %2283 = vmatprep.mubr.bf16.mxu0 0
      %2284 = vmatmul.mubr.bf16.gmra.mxu0 %v2164
      %v2285 = vpop.f32.mrf.mxu0
      %v2286 = vadd.f32 0.0, %v2285
      %v2287 = vpop.f32.mrf.mxu0
      %v2288 = vpop.f32.mrf.mxu0
      %v2289 = vadd.f32 0.0, %v2288
      %v2290 = vpop.f32.mrf.mxu0
      %2291 = vmatprep.mubr.bf16.mxu0 0
      %2292 = vmatmul.mubr.bf16.gmra.mxu0 %v2165
      %v2293 = vpop.f32.mrf.mxu0
      %v2294 = vadd.f32 0.0, %v2293
      %v2295 = vpop.f32.mrf.mxu0
      %v2296 = vpop.f32.mrf.mxu0
      %v2297 = vadd.f32 0.0, %v2296
      %v2298 = vpop.f32.mrf.mxu0
      %2299 = vmatprep.mubr.bf16.mxu0 0
      %2300 = vmatmul.mubr.bf16.gmra.mxu0 %v2166
      %v2301 = vpop.f32.mrf.mxu0
      %v2302 = vadd.f32 0.0, %v2301
      %v2303 = vpop.f32.mrf.mxu0
      %v2304 = vpop.f32.mrf.mxu0
      %v2305 = vadd.f32 0.0, %v2304
      %v2306 = vpop.f32.mrf.mxu0
      %2307 = vmatprep.mubr.bf16.mxu0 0
      %2308 = vmatmul.mubr.bf16.gmra.mxu0 %v2167
      %v2309 = vpop.f32.mrf.mxu0
      %v2310 = vadd.f32 0.0, %v2309
      %v2311 = vpop.f32.mrf.mxu0
      %v2312 = vpop.f32.mrf.mxu0
      %v2313 = vadd.f32 0.0, %v2312
      %v2314 = vpop.f32.mrf.mxu0
      %2315 = vmatprep.mubr.bf16.mxu0 0
      %2316 = vmatmul.mubr.bf16.gmra.mxu0 %v2168
      %v2317 = vpop.f32.mrf.mxu0
      %v2318 = vadd.f32 0.0, %v2317
      %v2319 = vpop.f32.mrf.mxu0
      %v2320 = vpop.f32.mrf.mxu0
      %v2321 = vadd.f32 0.0, %v2320
      %v2322 = vpop.f32.mrf.mxu0
      %2323 = vmatprep.mubr.bf16.mxu0 0
      %2324 = vmatmul.mubr.bf16.gmra.mxu0 %v2169
      %v2325 = vpop.f32.mrf.mxu0
      %v2326 = vadd.f32 0.0, %v2325
      %v2327 = vpop.f32.mrf.mxu0
      %v2328 = vpop.f32.mrf.mxu0
      %v2329 = vadd.f32 0.0, %v2328
      %v2330 = vpop.f32.mrf.mxu0
      %2331 = vmatprep.mubr.bf16.mxu0 0
      %2332 = vmatmul.mubr.bf16.gmra.mxu0 %v2170
      %v2333 = vpop.f32.mrf.mxu0
      %v2334 = vadd.f32 0.0, %v2333
      %v2335 = vpop.f32.mrf.mxu0
      %v2336 = vpop.f32.mrf.mxu0
      %v2337 = vadd.f32 0.0, %v2336
      %v2338 = vpop.f32.mrf.mxu0
      %2339 = vmatprep.mubr.bf16.mxu0 0
      %2340 = vmatmul.mubr.bf16.gmra.mxu0 %v2171
      %v2341 = vpop.f32.mrf.mxu0
      %v2342 = vadd.f32 0.0, %v2341
      %v2343 = vpop.f32.mrf.mxu0
      %v2344 = vpop.f32.mrf.mxu0
      %v2345 = vadd.f32 0.0, %v2344
      %v2346 = vpop.f32.mrf.mxu0
      %2347 = vmatprep.mubr.bf16.mxu0 0
      %2348 = vmatmul.mubr.bf16.gmra.mxu0 %v2172
      %v2349 = vpop.f32.mrf.mxu0
      %v2350 = vadd.f32 0.0, %v2349
      %v2351 = vpop.f32.mrf.mxu0
      %v2352 = vpop.f32.mrf.mxu0
      %v2353 = vadd.f32 0.0, %v2352
      %v2354 = vpop.f32.mrf.mxu0
      %2355 = vmatprep.mubr.bf16.mxu0 0
      %2356 = vmatmul.mubr.bf16.gmra.mxu0 %v2173
      %v2357 = vpop.f32.mrf.mxu0
      %v2358 = vadd.f32 0.0, %v2357
      %v2359 = vpop.f32.mrf.mxu0
      %v2360 = vpop.f32.mrf.mxu0
      %v2361 = vadd.f32 0.0, %v2360
      %v2362 = vpop.f32.mrf.mxu0
      %2363 = vmatprep.mubr.bf16.mxu0 0
      %2364 = vmatmul.mubr.bf16.gmra.mxu0 %v2174
      %v2365 = vpop.f32.mrf.mxu0
      %v2366 = vadd.f32 0.0, %v2365
      %v2367 = vpop.f32.mrf.mxu0
      %v2368 = vpop.f32.mrf.mxu0
      %v2369 = vadd.f32 0.0, %v2368
      %v2370 = vpop.f32.mrf.mxu0
      %2371 = vmatprep.mubr.bf16.mxu0 0
      %2372 = vmatmul.mubr.bf16.gmra.mxu0 %v2175
      %v2373 = vpop.f32.mrf.mxu0
      %v2374 = vadd.f32 0.0, %v2373
      %v2375 = vpop.f32.mrf.mxu0
      %v2376 = vpop.f32.mrf.mxu0
      %v2377 = vadd.f32 0.0, %v2376
      %v2378 = vpop.f32.mrf.mxu0
      %2379 = vmatprep.mubr.bf16.mxu0 0
      %2380 = vmatmul.mubr.bf16.gmra.mxu0 %v2176
      %v2381 = vpop.f32.mrf.mxu0
      %v2382 = vadd.f32 0.0, %v2381
      %v2383 = vpop.f32.mrf.mxu0
      %v2384 = vpop.f32.mrf.mxu0
      %v2385 = vadd.f32 0.0, %v2384
      %v2386 = vpop.f32.mrf.mxu0
      %2387 = vmatprep.mubr.bf16.mxu0 0
      %2388 = vmatmul.mubr.bf16.gmra.mxu0 %v2177
      %v2389 = vpop.f32.mrf.mxu0
      %v2390 = vadd.f32 0.0, %v2389
      %v2391 = vpop.f32.mrf.mxu0
      %v2392 = vpop.f32.mrf.mxu0
      %v2393 = vadd.f32 0.0, %v2392
      %v2394 = vpop.f32.mrf.mxu0
      %2395 = vmatprep.mubr.bf16.mxu0 0
      %2396 = vmatmul.mubr.bf16.gmra.mxu0 %v2178
      %v2397 = vpop.f32.mrf.mxu0
      %v2398 = vadd.f32 0.0, %v2397
      %v2399 = vpop.f32.mrf.mxu0
      %v2400 = vpop.f32.mrf.mxu0
      %v2401 = vadd.f32 0.0, %v2400
      %v2402 = vpop.f32.mrf.mxu0
      %2403 = vdwg.mxu0
      %v2404 = vadd.f32 %v2018, %v2278
      %v2405 = vadd.f32 %v2019, %v2281
      %v2406 = vadd.f32 %v2020, %v2286
      %v2407 = vadd.f32 %v2021, %v2289
      %v2408 = vadd.f32 %v2022, %v2294
      %v2409 = vadd.f32 %v2023, %v2297
      %v2410 = vadd.f32 %v2024, %v2302
      %v2411 = vadd.f32 %v2025, %v2305
      %v2412 = vadd.f32 %v2026, %v2310
      %v2413 = vadd.f32 %v2027, %v2313
      %v2414 = vadd.f32 %v2028, %v2318
      %v2415 = vadd.f32 %v2029, %v2321
      %v2416 = vadd.f32 %v2030, %v2326
      %v2417 = vadd.f32 %v2031, %v2329
      %v2418 = vadd.f32 %v2032, %v2334
      %v2419 = vadd.f32 %v2033, %v2337
      %v2420 = vadd.f32 %v2034, %v2342
      %v2421 = vadd.f32 %v2035, %v2345
      %v2422 = vadd.f32 %v2036, %v2350
      %v2423 = vadd.f32 %v2037, %v2353
      %v2424 = vadd.f32 %v2038, %v2358
      %v2425 = vadd.f32 %v2039, %v2361
      %v2426 = vadd.f32 %v2040, %v2366
      %v2427 = vadd.f32 %v2041, %v2369
      %v2428 = vadd.f32 %v2042, %v2374
      %v2429 = vadd.f32 %v2043, %v2377
      %v2430 = vadd.f32 %v2044, %v2382
      %v2431 = vadd.f32 %v2045, %v2385
      %v2432 = vadd.f32 %v2046, %v2390
      %v2433 = vadd.f32 %v2047, %v2393
      %v2434 = vadd.f32 %v2048, %v2398
      %v2435 = vadd.f32 %v2049, %v2401
      %v2436 = vld [vmem:[%s172 + $0x10] sm:$0xf]
      %v2437 = vld [vmem:[%s172 + $0x14] sm:$0xf]
      %v2438 = vld [vmem:[%s172 + $0x18] sm:$0xf]
      %v2439 = vld [vmem:[%s172 + $0x1c] sm:$0xf]
      %v2440 = vld [vmem:[%s172 + $0x20] sm:$0xf]
      %v2441 = vld [vmem:[%s172 + $0x24] sm:$0xf]
      %v2442 = vld [vmem:[%s172 + $0x28] sm:$0xf]
      %v2443 = vld [vmem:[%s172 + $0x2c] sm:$0xf]
      %v2444 = vld [vmem:[%s172 + $0x30] sm:$0xf]
      %v2445 = vld [vmem:[%s172 + $0x34] sm:$0xf]
      %v2446 = vld [vmem:[%s172 + $0x38] sm:$0xf]
      %v2447 = vld [vmem:[%s172 + $0x3c] sm:$0xf]
      %v2448 = vld [vmem:[%s172 + $0x40] sm:$0xf]
      %v2449 = vld [vmem:[%s172 + $0x44] sm:$0xf]
      %v2450 = vld [vmem:[%s172 + $0x48] sm:$0xf]
      %v2451 = vld [vmem:[%s172 + $0x4c] sm:$0xf]
      %v2452 = vld [vmem:[%s172 + $0x50] sm:$0xf]
      %v2453 = vld [vmem:[%s172 + $0x54] sm:$0xf]
      %v2454 = vld [vmem:[%s172 + $0x58] sm:$0xf]
      %v2455 = vld [vmem:[%s172 + $0x5c] sm:$0xf]
      %v2456 = vld [vmem:[%s172 + $0x60] sm:$0xf]
      %v2457 = vld [vmem:[%s172 + $0x64] sm:$0xf]
      %v2458 = vld [vmem:[%s172 + $0x68] sm:$0xf]
      %v2459 = vld [vmem:[%s172 + $0x6c] sm:$0xf]
      %v2460 = vld [vmem:[%s172 + $0x70] sm:$0xf]
      %v2461 = vld [vmem:[%s172 + $0x74] sm:$0xf]
      %v2462 = vld [vmem:[%s172 + $0x78] sm:$0xf]
      %v2463 = vld [vmem:[%s172 + $0x7c] sm:$0xf]
      %v2464 = vld [vmem:[%s172 + $0x80] sm:$0xf]
      %v2465 = vld [vmem:[%s172 + $0x84] sm:$0xf]
      %v2466 = vld [vmem:[%s172 + $0x88] sm:$0xf]
      %v2467 = vld [vmem:[%s172 + $0x8c] sm:$0xf]
      %s2468 = scalar_lea.vmem %s1, 384
      %v2469 = vld [vmem:[%s2468] sm:$0xf]
      %v2470 = vld [vmem:[%s2468 + $0x4] sm:$0xf]
      %v2471 = vld [vmem:[%s2468 + $0x8] sm:$0xf]
      %v2472 = vld [vmem:[%s2468 + $0xc] sm:$0xf]
      %v2473 = vld [vmem:[%s2468 + $0x10] sm:$0xf]
      %v2474 = vld [vmem:[%s2468 + $0x14] sm:$0xf]
      %v2475 = vld [vmem:[%s2468 + $0x18] sm:$0xf]
      %v2476 = vld [vmem:[%s2468 + $0x1c] sm:$0xf]
      %v2477 = vld [vmem:[%s2468 + $0x20] sm:$0xf]
      %v2478 = vld [vmem:[%s2468 + $0x24] sm:$0xf]
      %v2479 = vld [vmem:[%s2468 + $0x28] sm:$0xf]
      %v2480 = vld [vmem:[%s2468 + $0x2c] sm:$0xf]
      %v2481 = vld [vmem:[%s2468 + $0x30] sm:$0xf]
      %v2482 = vld [vmem:[%s2468 + $0x34] sm:$0xf]
      %v2483 = vld [vmem:[%s2468 + $0x38] sm:$0xf]
      %v2484 = vld [vmem:[%s2468 + $0x3c] sm:$0xf]
      %v2517 = vunpack.c.l.b16 %v2436
      %v2518 = vunpack.c.l.b16 %v2437
      %v2519 = vunpack.c.l.b16 %v2438
      %v2520 = vunpack.c.l.b16 %v2439
      %v2521 = vunpack.c.l.b16 %v2440
      %v2522 = vunpack.c.l.b16 %v2441
      %v2523 = vunpack.c.l.b16 %v2442
      %v2524 = vunpack.c.l.b16 %v2443
      %v2525 = vunpack.c.l.b16 %v2444
      %v2526 = vunpack.c.l.b16 %v2445
      %v2527 = vunpack.c.l.b16 %v2446
      %v2528 = vunpack.c.l.b16 %v2447
      %v2529 = vunpack.c.l.b16 %v2448
      %v2530 = vunpack.c.l.b16 %v2449
      %v2531 = vunpack.c.l.b16 %v2450
      %v2532 = vunpack.c.l.b16 %v2451
      %v2533 = vunpack.c.l.b16 %v2452
      %v2534 = vunpack.c.l.b16 %v2453
      %v2535 = vunpack.c.l.b16 %v2454
      %v2536 = vunpack.c.l.b16 %v2455
      %v2537 = vunpack.c.l.b16 %v2456
      %v2538 = vunpack.c.l.b16 %v2457
      %v2539 = vunpack.c.l.b16 %v2458
      %v2540 = vunpack.c.l.b16 %v2459
      %v2541 = vunpack.c.l.b16 %v2460
      %v2542 = vunpack.c.l.b16 %v2461
      %v2543 = vunpack.c.l.b16 %v2462
      %v2544 = vunpack.c.l.b16 %v2463
      %v2545 = vunpack.c.l.b16 %v2464
      %v2546 = vunpack.c.l.b16 %v2465
      %v2547 = vunpack.c.l.b16 %v2466
      %v2548 = vunpack.c.l.b16 %v2467
      %v2549 = vpack.c.b16 %v2518, %v2517
      %v2550 = vpack.c.b16 %v2520, %v2519
      %v2551 = vpack.c.b16 %v2522, %v2521
      %v2552 = vpack.c.b16 %v2524, %v2523
      %v2553 = vpack.c.b16 %v2526, %v2525
      %v2554 = vpack.c.b16 %v2528, %v2527
      %v2555 = vpack.c.b16 %v2530, %v2529
      %v2556 = vpack.c.b16 %v2532, %v2531
      %v2557 = vpack.c.b16 %v2534, %v2533
      %v2558 = vpack.c.b16 %v2536, %v2535
      %v2559 = vpack.c.b16 %v2538, %v2537
      %v2560 = vpack.c.b16 %v2540, %v2539
      %v2561 = vpack.c.b16 %v2542, %v2541
      %v2562 = vpack.c.b16 %v2544, %v2543
      %v2563 = vpack.c.b16 %v2546, %v2545
      %v2564 = vpack.c.b16 %v2548, %v2547
      %v2597 = vunpack.c.l.b16 %v2469
      %v2598 = vunpack.c.l.b16 %v2470
      %v2599 = vunpack.c.l.b16 %v2471
      %v2600 = vunpack.c.l.b16 %v2472
      %v2601 = vunpack.c.l.b16 %v2473
      %v2602 = vunpack.c.l.b16 %v2474
      %v2603 = vunpack.c.l.b16 %v2475
      %v2604 = vunpack.c.l.b16 %v2476
      %v2605 = vunpack.c.l.b16 %v2477
      %v2606 = vunpack.c.l.b16 %v2478
      %v2607 = vunpack.c.l.b16 %v2479
      %v2608 = vunpack.c.l.b16 %v2480
      %v2609 = vunpack.c.l.b16 %v2481
      %v2610 = vunpack.c.l.b16 %v2482
      %v2611 = vunpack.c.l.b16 %v2483
      %v2612 = vunpack.c.l.b16 %v2484
      %v2613 = vpack.c.b16 %v2598, %v2597
      %v2614 = vpack.c.b16 %v2600, %v2599
      %v2615 = vpack.c.b16 %v2602, %v2601
      %v2616 = vpack.c.b16 %v2604, %v2603
      %v2617 = vpack.c.b16 %v2606, %v2605
      %v2618 = vpack.c.b16 %v2608, %v2607
      %v2619 = vpack.c.b16 %v2610, %v2609
      %v2620 = vpack.c.b16 %v2612, %v2611
      %2629 = vmatprep.subr.bf16.mxu0 0
      %2630 = vmatpush1.bf16.msra.mxu0 %v2620
      %2631 = vmatprep.subr.bf16.mxu0 0
      %2632 = vmatpush1.bf16.msra.mxu0 %v2619
      %2633 = vmatprep.subr.bf16.mxu0 0
      %2634 = vmatpush1.bf16.msra.mxu0 %v2618
      %2635 = vmatprep.subr.bf16.mxu0 0
      %2636 = vmatpush1.bf16.msra.mxu0 %v2617
      %2637 = vmatprep.subr.bf16.mxu0 0
      %2638 = vmatpush1.bf16.msra.mxu0 %v2616
      %2639 = vmatprep.subr.bf16.mxu0 0
      %2640 = vmatpush1.bf16.msra.mxu0 %v2615
      %2641 = vmatprep.subr.bf16.mxu0 0
      %2642 = vmatpush1.bf16.msra.mxu0 %v2614
      %2643 = vmatprep.subr.bf16.mxu0 0
      %2644 = vmatpush1.bf16.msra.mxu0 %v2613
      %2645 = vmatprep.subr.bf16.mxu0 0
      %2646 = vmatpush2.bf16.msra.mxu0 0
      %2647 = vmatprep.subr.bf16.mxu0 0
      %2648 = vmatpush2.bf16.msra.mxu0 0
      %2649 = vmatprep.subr.bf16.mxu0 0
      %2650 = vmatpush2.bf16.msra.mxu0 0
      %2651 = vmatprep.subr.bf16.mxu0 0
      %2652 = vmatpush2.bf16.msra.mxu0 0
      %2653 = vmatprep.subr.bf16.mxu0 0
      %2654 = vmatpush2.bf16.msra.mxu0 0
      %2655 = vmatprep.subr.bf16.mxu0 0
      %2656 = vmatpush2.bf16.msra.mxu0 0
      %2657 = vmatprep.subr.bf16.mxu0 0
      %2658 = vmatpush2.bf16.msra.mxu0 0
      %2659 = vmatprep.subr.bf16.mxu0 0
      %2660 = vmatpush2.bf16.msra.mxu0 0
      %2661 = vmatprep.mubr.bf16.mxu0 0
      %2662 = vmatmul.mubr.bf16.gmra.mxu0 %v2549
      %v2663 = vpop.f32.mrf.mxu0
      %v2664 = vadd.f32 0.0, %v2663
      %v2665 = vpop.f32.mrf.mxu0
      %v2666 = vpop.f32.mrf.mxu0
      %v2667 = vadd.f32 0.0, %v2666
      %v2668 = vpop.f32.mrf.mxu0
      %2669 = vmatprep.mubr.bf16.mxu0 0
      %2670 = vmatmul.mubr.bf16.gmra.mxu0 %v2550
      %v2671 = vpop.f32.mrf.mxu0
      %v2672 = vadd.f32 0.0, %v2671
      %v2673 = vpop.f32.mrf.mxu0
      %v2674 = vpop.f32.mrf.mxu0
      %v2675 = vadd.f32 0.0, %v2674
      %v2676 = vpop.f32.mrf.mxu0
      %2677 = vmatprep.mubr.bf16.mxu0 0
      %2678 = vmatmul.mubr.bf16.gmra.mxu0 %v2551
      %v2679 = vpop.f32.mrf.mxu0
      %v2680 = vadd.f32 0.0, %v2679
      %v2681 = vpop.f32.mrf.mxu0
      %v2682 = vpop.f32.mrf.mxu0
      %v2683 = vadd.f32 0.0, %v2682
      %v2684 = vpop.f32.mrf.mxu0
      %2685 = vmatprep.mubr.bf16.mxu0 0
      %2686 = vmatmul.mubr.bf16.gmra.mxu0 %v2552
      %v2687 = vpop.f32.mrf.mxu0
      %v2688 = vadd.f32 0.0, %v2687
      %v2689 = vpop.f32.mrf.mxu0
      %v2690 = vpop.f32.mrf.mxu0
      %v2691 = vadd.f32 0.0, %v2690
      %v2692 = vpop.f32.mrf.mxu0
      %2693 = vmatprep.mubr.bf16.mxu0 0
      %2694 = vmatmul.mubr.bf16.gmra.mxu0 %v2553
      %v2695 = vpop.f32.mrf.mxu0
      %v2696 = vadd.f32 0.0, %v2695
      %v2697 = vpop.f32.mrf.mxu0
      %v2698 = vpop.f32.mrf.mxu0
      %v2699 = vadd.f32 0.0, %v2698
      %v2700 = vpop.f32.mrf.mxu0
      %2701 = vmatprep.mubr.bf16.mxu0 0
      %2702 = vmatmul.mubr.bf16.gmra.mxu0 %v2554
      %v2703 = vpop.f32.mrf.mxu0
      %v2704 = vadd.f32 0.0, %v2703
      %v2705 = vpop.f32.mrf.mxu0
      %v2706 = vpop.f32.mrf.mxu0
      %v2707 = vadd.f32 0.0, %v2706
      %v2708 = vpop.f32.mrf.mxu0
      %2709 = vmatprep.mubr.bf16.mxu0 0
      %2710 = vmatmul.mubr.bf16.gmra.mxu0 %v2555
      %v2711 = vpop.f32.mrf.mxu0
      %v2712 = vadd.f32 0.0, %v2711
      %v2713 = vpop.f32.mrf.mxu0
      %v2714 = vpop.f32.mrf.mxu0
      %v2715 = vadd.f32 0.0, %v2714
      %v2716 = vpop.f32.mrf.mxu0
      %2717 = vmatprep.mubr.bf16.mxu0 0
      %2718 = vmatmul.mubr.bf16.gmra.mxu0 %v2556
      %v2719 = vpop.f32.mrf.mxu0
      %v2720 = vadd.f32 0.0, %v2719
      %v2721 = vpop.f32.mrf.mxu0
      %v2722 = vpop.f32.mrf.mxu0
      %v2723 = vadd.f32 0.0, %v2722
      %v2724 = vpop.f32.mrf.mxu0
      %2725 = vmatprep.mubr.bf16.mxu0 0
      %2726 = vmatmul.mubr.bf16.gmra.mxu0 %v2557
      %v2727 = vpop.f32.mrf.mxu0
      %v2728 = vadd.f32 0.0, %v2727
      %v2729 = vpop.f32.mrf.mxu0
      %v2730 = vpop.f32.mrf.mxu0
      %v2731 = vadd.f32 0.0, %v2730
      %v2732 = vpop.f32.mrf.mxu0
      %2733 = vmatprep.mubr.bf16.mxu0 0
      %2734 = vmatmul.mubr.bf16.gmra.mxu0 %v2558
      %v2735 = vpop.f32.mrf.mxu0
      %v2736 = vadd.f32 0.0, %v2735
      %v2737 = vpop.f32.mrf.mxu0
      %v2738 = vpop.f32.mrf.mxu0
      %v2739 = vadd.f32 0.0, %v2738
      %v2740 = vpop.f32.mrf.mxu0
      %2741 = vmatprep.mubr.bf16.mxu0 0
      %2742 = vmatmul.mubr.bf16.gmra.mxu0 %v2559
      %v2743 = vpop.f32.mrf.mxu0
      %v2744 = vadd.f32 0.0, %v2743
      %v2745 = vpop.f32.mrf.mxu0
      %v2746 = vpop.f32.mrf.mxu0
      %v2747 = vadd.f32 0.0, %v2746
      %v2748 = vpop.f32.mrf.mxu0
      %2749 = vmatprep.mubr.bf16.mxu0 0
      %2750 = vmatmul.mubr.bf16.gmra.mxu0 %v2560
      %v2751 = vpop.f32.mrf.mxu0
      %v2752 = vadd.f32 0.0, %v2751
      %v2753 = vpop.f32.mrf.mxu0
      %v2754 = vpop.f32.mrf.mxu0
      %v2755 = vadd.f32 0.0, %v2754
      %v2756 = vpop.f32.mrf.mxu0
      %2757 = vmatprep.mubr.bf16.mxu0 0
      %2758 = vmatmul.mubr.bf16.gmra.mxu0 %v2561
      %v2759 = vpop.f32.mrf.mxu0
      %v2760 = vadd.f32 0.0, %v2759
      %v2761 = vpop.f32.mrf.mxu0
      %v2762 = vpop.f32.mrf.mxu0
      %v2763 = vadd.f32 0.0, %v2762
      %v2764 = vpop.f32.mrf.mxu0
      %2765 = vmatprep.mubr.bf16.mxu0 0
      %2766 = vmatmul.mubr.bf16.gmra.mxu0 %v2562
      %v2767 = vpop.f32.mrf.mxu0
      %v2768 = vadd.f32 0.0, %v2767
      %v2769 = vpop.f32.mrf.mxu0
      %v2770 = vpop.f32.mrf.mxu0
      %v2771 = vadd.f32 0.0, %v2770
      %v2772 = vpop.f32.mrf.mxu0
      %2773 = vmatprep.mubr.bf16.mxu0 0
      %2774 = vmatmul.mubr.bf16.gmra.mxu0 %v2563
      %v2775 = vpop.f32.mrf.mxu0
      %v2776 = vadd.f32 0.0, %v2775
      %v2777 = vpop.f32.mrf.mxu0
      %v2778 = vpop.f32.mrf.mxu0
      %v2779 = vadd.f32 0.0, %v2778
      %v2780 = vpop.f32.mrf.mxu0
      %2781 = vmatprep.mubr.bf16.mxu0 0
      %2782 = vmatmul.mubr.bf16.gmra.mxu0 %v2564
      %v2783 = vpop.f32.mrf.mxu0
      %v2784 = vadd.f32 0.0, %v2783
      %v2785 = vpop.f32.mrf.mxu0
      %v2786 = vpop.f32.mrf.mxu0
      %v2787 = vadd.f32 0.0, %v2786
      %v2788 = vpop.f32.mrf.mxu0
      %2789 = vdwg.mxu0
      %v2790 = vadd.f32 %v2404, %v2664
      %v2791 = vadd.f32 %v2405, %v2667
      %v2792 = vadd.f32 %v2406, %v2672
      %v2793 = vadd.f32 %v2407, %v2675
      %v2794 = vadd.f32 %v2408, %v2680
      %v2795 = vadd.f32 %v2409, %v2683
      %v2796 = vadd.f32 %v2410, %v2688
      %v2797 = vadd.f32 %v2411, %v2691
      %v2798 = vadd.f32 %v2412, %v2696
      %v2799 = vadd.f32 %v2413, %v2699
      %v2800 = vadd.f32 %v2414, %v2704
      %v2801 = vadd.f32 %v2415, %v2707
      %v2802 = vadd.f32 %v2416, %v2712
      %v2803 = vadd.f32 %v2417, %v2715
      %v2804 = vadd.f32 %v2418, %v2720
      %v2805 = vadd.f32 %v2419, %v2723
      %v2806 = vadd.f32 %v2420, %v2728
      %v2807 = vadd.f32 %v2421, %v2731
      %v2808 = vadd.f32 %v2422, %v2736
      %v2809 = vadd.f32 %v2423, %v2739
      %v2810 = vadd.f32 %v2424, %v2744
      %v2811 = vadd.f32 %v2425, %v2747
      %v2812 = vadd.f32 %v2426, %v2752
      %v2813 = vadd.f32 %v2427, %v2755
      %v2814 = vadd.f32 %v2428, %v2760
      %v2815 = vadd.f32 %v2429, %v2763
      %v2816 = vadd.f32 %v2430, %v2768
      %v2817 = vadd.f32 %v2431, %v2771
      %v2818 = vadd.f32 %v2432, %v2776
      %v2819 = vadd.f32 %v2433, %v2779
      %v2820 = vadd.f32 %v2434, %v2784
      %v2821 = vadd.f32 %v2435, %v2787
      %v2822 = vld [vmem:[%s231 + $0x10] sm:$0xf]
      %v2823 = vld [vmem:[%s231 + $0x14] sm:$0xf]
      %v2824 = vld [vmem:[%s231 + $0x18] sm:$0xf]
      %v2825 = vld [vmem:[%s231 + $0x1c] sm:$0xf]
      %v2826 = vld [vmem:[%s231 + $0x20] sm:$0xf]
      %v2827 = vld [vmem:[%s231 + $0x24] sm:$0xf]
      %v2828 = vld [vmem:[%s231 + $0x28] sm:$0xf]
      %v2829 = vld [vmem:[%s231 + $0x2c] sm:$0xf]
      %v2830 = vld [vmem:[%s231 + $0x30] sm:$0xf]
      %v2831 = vld [vmem:[%s231 + $0x34] sm:$0xf]
      %v2832 = vld [vmem:[%s231 + $0x38] sm:$0xf]
      %v2833 = vld [vmem:[%s231 + $0x3c] sm:$0xf]
      %v2834 = vld [vmem:[%s231 + $0x40] sm:$0xf]
      %v2835 = vld [vmem:[%s231 + $0x44] sm:$0xf]
      %v2836 = vld [vmem:[%s231 + $0x48] sm:$0xf]
      %v2837 = vld [vmem:[%s231 + $0x4c] sm:$0xf]
      %v2838 = vld [vmem:[%s231 + $0x50] sm:$0xf]
      %v2839 = vld [vmem:[%s231 + $0x54] sm:$0xf]
      %v2840 = vld [vmem:[%s231 + $0x58] sm:$0xf]
      %v2841 = vld [vmem:[%s231 + $0x5c] sm:$0xf]
      %v2842 = vld [vmem:[%s231 + $0x60] sm:$0xf]
      %v2843 = vld [vmem:[%s231 + $0x64] sm:$0xf]
      %v2844 = vld [vmem:[%s231 + $0x68] sm:$0xf]
      %v2845 = vld [vmem:[%s231 + $0x6c] sm:$0xf]
      %v2846 = vld [vmem:[%s231 + $0x70] sm:$0xf]
      %v2847 = vld [vmem:[%s231 + $0x74] sm:$0xf]
      %v2848 = vld [vmem:[%s231 + $0x78] sm:$0xf]
      %v2849 = vld [vmem:[%s231 + $0x7c] sm:$0xf]
      %v2850 = vld [vmem:[%s231 + $0x80] sm:$0xf]
      %v2851 = vld [vmem:[%s231 + $0x84] sm:$0xf]
      %v2852 = vld [vmem:[%s231 + $0x88] sm:$0xf]
      %v2853 = vld [vmem:[%s231 + $0x8c] sm:$0xf]
      %s2854 = scalar_lea.vmem %s1, 448
      %v2855 = vld [vmem:[%s2854] sm:$0xf]
      %v2856 = vld [vmem:[%s2854 + $0x4] sm:$0xf]
      %v2857 = vld [vmem:[%s2854 + $0x8] sm:$0xf]
      %v2858 = vld [vmem:[%s2854 + $0xc] sm:$0xf]
      %v2859 = vld [vmem:[%s2854 + $0x10] sm:$0xf]
      %v2860 = vld [vmem:[%s2854 + $0x14] sm:$0xf]
      %v2861 = vld [vmem:[%s2854 + $0x18] sm:$0xf]
      %v2862 = vld [vmem:[%s2854 + $0x1c] sm:$0xf]
      %v2863 = vld [vmem:[%s2854 + $0x20] sm:$0xf]
      %v2864 = vld [vmem:[%s2854 + $0x24] sm:$0xf]
      %v2865 = vld [vmem:[%s2854 + $0x28] sm:$0xf]
      %v2866 = vld [vmem:[%s2854 + $0x2c] sm:$0xf]
      %v2867 = vld [vmem:[%s2854 + $0x30] sm:$0xf]
      %v2868 = vld [vmem:[%s2854 + $0x34] sm:$0xf]
      %v2869 = vld [vmem:[%s2854 + $0x38] sm:$0xf]
      %v2870 = vld [vmem:[%s2854 + $0x3c] sm:$0xf]
      %v2903 = vunpack.c.l.b16 %v2822
      %v2904 = vunpack.c.l.b16 %v2823
      %v2905 = vunpack.c.l.b16 %v2824
      %v2906 = vunpack.c.l.b16 %v2825
      %v2907 = vunpack.c.l.b16 %v2826
      %v2908 = vunpack.c.l.b16 %v2827
      %v2909 = vunpack.c.l.b16 %v2828
      %v2910 = vunpack.c.l.b16 %v2829
      %v2911 = vunpack.c.l.b16 %v2830
      %v2912 = vunpack.c.l.b16 %v2831
      %v2913 = vunpack.c.l.b16 %v2832
      %v2914 = vunpack.c.l.b16 %v2833
      %v2915 = vunpack.c.l.b16 %v2834
      %v2916 = vunpack.c.l.b16 %v2835
      %v2917 = vunpack.c.l.b16 %v2836
      %v2918 = vunpack.c.l.b16 %v2837
      %v2919 = vunpack.c.l.b16 %v2838
      %v2920 = vunpack.c.l.b16 %v2839
      %v2921 = vunpack.c.l.b16 %v2840
      %v2922 = vunpack.c.l.b16 %v2841
      %v2923 = vunpack.c.l.b16 %v2842
      %v2924 = vunpack.c.l.b16 %v2843
      %v2925 = vunpack.c.l.b16 %v2844
      %v2926 = vunpack.c.l.b16 %v2845
      %v2927 = vunpack.c.l.b16 %v2846
      %v2928 = vunpack.c.l.b16 %v2847
      %v2929 = vunpack.c.l.b16 %v2848
      %v2930 = vunpack.c.l.b16 %v2849
      %v2931 = vunpack.c.l.b16 %v2850
      %v2932 = vunpack.c.l.b16 %v2851
      %v2933 = vunpack.c.l.b16 %v2852
      %v2934 = vunpack.c.l.b16 %v2853
      %v2935 = vpack.c.b16 %v2904, %v2903
      %v2936 = vpack.c.b16 %v2906, %v2905
      %v2937 = vpack.c.b16 %v2908, %v2907
      %v2938 = vpack.c.b16 %v2910, %v2909
      %v2939 = vpack.c.b16 %v2912, %v2911
      %v2940 = vpack.c.b16 %v2914, %v2913
      %v2941 = vpack.c.b16 %v2916, %v2915
      %v2942 = vpack.c.b16 %v2918, %v2917
      %v2943 = vpack.c.b16 %v2920, %v2919
      %v2944 = vpack.c.b16 %v2922, %v2921
      %v2945 = vpack.c.b16 %v2924, %v2923
      %v2946 = vpack.c.b16 %v2926, %v2925
      %v2947 = vpack.c.b16 %v2928, %v2927
      %v2948 = vpack.c.b16 %v2930, %v2929
      %v2949 = vpack.c.b16 %v2932, %v2931
      %v2950 = vpack.c.b16 %v2934, %v2933
      %v2983 = vunpack.c.l.b16 %v2855
      %v2984 = vunpack.c.l.b16 %v2856
      %v2985 = vunpack.c.l.b16 %v2857
      %v2986 = vunpack.c.l.b16 %v2858
      %v2987 = vunpack.c.l.b16 %v2859
      %v2988 = vunpack.c.l.b16 %v2860
      %v2989 = vunpack.c.l.b16 %v2861
      %v2990 = vunpack.c.l.b16 %v2862
      %v2991 = vunpack.c.l.b16 %v2863
      %v2992 = vunpack.c.l.b16 %v2864
      %v2993 = vunpack.c.l.b16 %v2865
      %v2994 = vunpack.c.l.b16 %v2866
      %v2995 = vunpack.c.l.b16 %v2867
      %v2996 = vunpack.c.l.b16 %v2868
      %v2997 = vunpack.c.l.b16 %v2869
      %v2998 = vunpack.c.l.b16 %v2870
      %v2999 = vpack.c.b16 %v2984, %v2983
      %v3000 = vpack.c.b16 %v2986, %v2985
      %v3001 = vpack.c.b16 %v2988, %v2987
      %v3002 = vpack.c.b16 %v2990, %v2989
      %v3003 = vpack.c.b16 %v2992, %v2991
      %v3004 = vpack.c.b16 %v2994, %v2993
      %v3005 = vpack.c.b16 %v2996, %v2995
      %v3006 = vpack.c.b16 %v2998, %v2997
      %3015 = vmatprep.subr.bf16.mxu0 0
      %3016 = vmatpush1.bf16.msra.mxu0 %v3006
      %3017 = vmatprep.subr.bf16.mxu0 0
      %3018 = vmatpush1.bf16.msra.mxu0 %v3005
      %3019 = vmatprep.subr.bf16.mxu0 0
      %3020 = vmatpush1.bf16.msra.mxu0 %v3004
      %3021 = vmatprep.subr.bf16.mxu0 0
      %3022 = vmatpush1.bf16.msra.mxu0 %v3003
      %3023 = vmatprep.subr.bf16.mxu0 0
      %3024 = vmatpush1.bf16.msra.mxu0 %v3002
      %3025 = vmatprep.subr.bf16.mxu0 0
      %3026 = vmatpush1.bf16.msra.mxu0 %v3001
      %3027 = vmatprep.subr.bf16.mxu0 0
      %3028 = vmatpush1.bf16.msra.mxu0 %v3000
      %3029 = vmatprep.subr.bf16.mxu0 0
      %3030 = vmatpush1.bf16.msra.mxu0 %v2999
      %3031 = vmatprep.subr.bf16.mxu0 0
      %3032 = vmatpush2.bf16.msra.mxu0 0
      %3033 = vmatprep.subr.bf16.mxu0 0
      %3034 = vmatpush2.bf16.msra.mxu0 0
      %3035 = vmatprep.subr.bf16.mxu0 0
      %3036 = vmatpush2.bf16.msra.mxu0 0
      %3037 = vmatprep.subr.bf16.mxu0 0
      %3038 = vmatpush2.bf16.msra.mxu0 0
      %3039 = vmatprep.subr.bf16.mxu0 0
      %3040 = vmatpush2.bf16.msra.mxu0 0
      %3041 = vmatprep.subr.bf16.mxu0 0
      %3042 = vmatpush2.bf16.msra.mxu0 0
      %3043 = vmatprep.subr.bf16.mxu0 0
      %3044 = vmatpush2.bf16.msra.mxu0 0
      %3045 = vmatprep.subr.bf16.mxu0 0
      %3046 = vmatpush2.bf16.msra.mxu0 0
      %3047 = vmatprep.mubr.bf16.mxu0 0
      %3048 = vmatmul.mubr.bf16.gmra.mxu0 %v2935
      %v3049 = vpop.f32.mrf.mxu0
      %v3050 = vadd.f32 0.0, %v3049
      %v3051 = vpop.f32.mrf.mxu0
      %v3052 = vpop.f32.mrf.mxu0
      %v3053 = vadd.f32 0.0, %v3052
      %v3054 = vpop.f32.mrf.mxu0
      %3055 = vmatprep.mubr.bf16.mxu0 0
      %3056 = vmatmul.mubr.bf16.gmra.mxu0 %v2936
      %v3057 = vpop.f32.mrf.mxu0
      %v3058 = vadd.f32 0.0, %v3057
      %v3059 = vpop.f32.mrf.mxu0
      %v3060 = vpop.f32.mrf.mxu0
      %v3061 = vadd.f32 0.0, %v3060
      %v3062 = vpop.f32.mrf.mxu0
      %3063 = vmatprep.mubr.bf16.mxu0 0
      %3064 = vmatmul.mubr.bf16.gmra.mxu0 %v2937
      %v3065 = vpop.f32.mrf.mxu0
      %v3066 = vadd.f32 0.0, %v3065
      %v3067 = vpop.f32.mrf.mxu0
      %v3068 = vpop.f32.mrf.mxu0
      %v3069 = vadd.f32 0.0, %v3068
      %v3070 = vpop.f32.mrf.mxu0
      %3071 = vmatprep.mubr.bf16.mxu0 0
      %3072 = vmatmul.mubr.bf16.gmra.mxu0 %v2938
      %v3073 = vpop.f32.mrf.mxu0
      %v3074 = vadd.f32 0.0, %v3073
      %v3075 = vpop.f32.mrf.mxu0
      %v3076 = vpop.f32.mrf.mxu0
      %v3077 = vadd.f32 0.0, %v3076
      %v3078 = vpop.f32.mrf.mxu0
      %3079 = vmatprep.mubr.bf16.mxu0 0
      %3080 = vmatmul.mubr.bf16.gmra.mxu0 %v2939
      %v3081 = vpop.f32.mrf.mxu0
      %v3082 = vadd.f32 0.0, %v3081
      %v3083 = vpop.f32.mrf.mxu0
      %v3084 = vpop.f32.mrf.mxu0
      %v3085 = vadd.f32 0.0, %v3084
      %v3086 = vpop.f32.mrf.mxu0
      %3087 = vmatprep.mubr.bf16.mxu0 0
      %3088 = vmatmul.mubr.bf16.gmra.mxu0 %v2940
      %v3089 = vpop.f32.mrf.mxu0
      %v3090 = vadd.f32 0.0, %v3089
      %v3091 = vpop.f32.mrf.mxu0
      %v3092 = vpop.f32.mrf.mxu0
      %v3093 = vadd.f32 0.0, %v3092
      %v3094 = vpop.f32.mrf.mxu0
      %3095 = vmatprep.mubr.bf16.mxu0 0
      %3096 = vmatmul.mubr.bf16.gmra.mxu0 %v2941
      %v3097 = vpop.f32.mrf.mxu0
      %v3098 = vadd.f32 0.0, %v3097
      %v3099 = vpop.f32.mrf.mxu0
      %v3100 = vpop.f32.mrf.mxu0
      %v3101 = vadd.f32 0.0, %v3100
      %v3102 = vpop.f32.mrf.mxu0
      %3103 = vmatprep.mubr.bf16.mxu0 0
      %3104 = vmatmul.mubr.bf16.gmra.mxu0 %v2942
      %v3105 = vpop.f32.mrf.mxu0
      %v3106 = vadd.f32 0.0, %v3105
      %v3107 = vpop.f32.mrf.mxu0
      %v3108 = vpop.f32.mrf.mxu0
      %v3109 = vadd.f32 0.0, %v3108
      %v3110 = vpop.f32.mrf.mxu0
      %3111 = vmatprep.mubr.bf16.mxu0 0
      %3112 = vmatmul.mubr.bf16.gmra.mxu0 %v2943
      %v3113 = vpop.f32.mrf.mxu0
      %v3114 = vadd.f32 0.0, %v3113
      %v3115 = vpop.f32.mrf.mxu0
      %v3116 = vpop.f32.mrf.mxu0
      %v3117 = vadd.f32 0.0, %v3116
      %v3118 = vpop.f32.mrf.mxu0
      %3119 = vmatprep.mubr.bf16.mxu0 0
      %3120 = vmatmul.mubr.bf16.gmra.mxu0 %v2944
      %v3121 = vpop.f32.mrf.mxu0
      %v3122 = vadd.f32 0.0, %v3121
      %v3123 = vpop.f32.mrf.mxu0
      %v3124 = vpop.f32.mrf.mxu0
      %v3125 = vadd.f32 0.0, %v3124
      %v3126 = vpop.f32.mrf.mxu0
      %3127 = vmatprep.mubr.bf16.mxu0 0
      %3128 = vmatmul.mubr.bf16.gmra.mxu0 %v2945
      %v3129 = vpop.f32.mrf.mxu0
      %v3130 = vadd.f32 0.0, %v3129
      %v3131 = vpop.f32.mrf.mxu0
      %v3132 = vpop.f32.mrf.mxu0
      %v3133 = vadd.f32 0.0, %v3132
      %v3134 = vpop.f32.mrf.mxu0
      %3135 = vmatprep.mubr.bf16.mxu0 0
      %3136 = vmatmul.mubr.bf16.gmra.mxu0 %v2946
      %v3137 = vpop.f32.mrf.mxu0
      %v3138 = vadd.f32 0.0, %v3137
      %v3139 = vpop.f32.mrf.mxu0
      %v3140 = vpop.f32.mrf.mxu0
      %v3141 = vadd.f32 0.0, %v3140
      %v3142 = vpop.f32.mrf.mxu0
      %3143 = vmatprep.mubr.bf16.mxu0 0
      %3144 = vmatmul.mubr.bf16.gmra.mxu0 %v2947
      %v3145 = vpop.f32.mrf.mxu0
      %v3146 = vadd.f32 0.0, %v3145
      %v3147 = vpop.f32.mrf.mxu0
      %v3148 = vpop.f32.mrf.mxu0
      %v3149 = vadd.f32 0.0, %v3148
      %v3150 = vpop.f32.mrf.mxu0
      %3151 = vmatprep.mubr.bf16.mxu0 0
      %3152 = vmatmul.mubr.bf16.gmra.mxu0 %v2948
      %v3153 = vpop.f32.mrf.mxu0
      %v3154 = vadd.f32 0.0, %v3153
      %v3155 = vpop.f32.mrf.mxu0
      %v3156 = vpop.f32.mrf.mxu0
      %v3157 = vadd.f32 0.0, %v3156
      %v3158 = vpop.f32.mrf.mxu0
      %3159 = vmatprep.mubr.bf16.mxu0 0
      %3160 = vmatmul.mubr.bf16.gmra.mxu0 %v2949
      %v3161 = vpop.f32.mrf.mxu0
      %v3162 = vadd.f32 0.0, %v3161
      %v3163 = vpop.f32.mrf.mxu0
      %v3164 = vpop.f32.mrf.mxu0
      %v3165 = vadd.f32 0.0, %v3164
      %v3166 = vpop.f32.mrf.mxu0
      %3167 = vmatprep.mubr.bf16.mxu0 0
      %3168 = vmatmul.mubr.bf16.gmra.mxu0 %v2950
      %v3169 = vpop.f32.mrf.mxu0
      %v3170 = vadd.f32 0.0, %v3169
      %v3171 = vpop.f32.mrf.mxu0
      %v3172 = vpop.f32.mrf.mxu0
      %v3173 = vadd.f32 0.0, %v3172
      %v3174 = vpop.f32.mrf.mxu0
      %3175 = vdwg.mxu0
      %v3176 = vadd.f32 %v2790, %v3050
      %v3177 = vadd.f32 %v2791, %v3053
      %v3178 = vadd.f32 %v2792, %v3058
      %v3179 = vadd.f32 %v2793, %v3061
      %v3180 = vadd.f32 %v2794, %v3066
      %v3181 = vadd.f32 %v2795, %v3069
      %v3182 = vadd.f32 %v2796, %v3074
      %v3183 = vadd.f32 %v2797, %v3077
      %v3184 = vadd.f32 %v2798, %v3082
      %v3185 = vadd.f32 %v2799, %v3085
      %v3186 = vadd.f32 %v2800, %v3090
      %v3187 = vadd.f32 %v2801, %v3093
      %v3188 = vadd.f32 %v2802, %v3098
      %v3189 = vadd.f32 %v2803, %v3101
      %v3190 = vadd.f32 %v2804, %v3106
      %v3191 = vadd.f32 %v2805, %v3109
      %v3192 = vadd.f32 %v2806, %v3114
      %v3193 = vadd.f32 %v2807, %v3117
      %v3194 = vadd.f32 %v2808, %v3122
      %v3195 = vadd.f32 %v2809, %v3125
      %v3196 = vadd.f32 %v2810, %v3130
      %v3197 = vadd.f32 %v2811, %v3133
      %v3198 = vadd.f32 %v2812, %v3138
      %v3199 = vadd.f32 %v2813, %v3141
      %v3200 = vadd.f32 %v2814, %v3146
      %v3201 = vadd.f32 %v2815, %v3149
      %v3202 = vadd.f32 %v2816, %v3154
      %v3203 = vadd.f32 %v2817, %v3157
      %v3204 = vadd.f32 %v2818, %v3162
      %v3205 = vadd.f32 %v2819, %v3165
      %v3206 = vadd.f32 %v2820, %v3170
      %v3207 = vadd.f32 %v2821, %v3173
      %v3208 = vld [vmem:[%s891 + $0x10] sm:$0xf]
      %v3209 = vld [vmem:[%s891 + $0x14] sm:$0xf]
      %v3210 = vld [vmem:[%s891 + $0x18] sm:$0xf]
      %v3211 = vld [vmem:[%s891 + $0x1c] sm:$0xf]
      %v3212 = vld [vmem:[%s891 + $0x20] sm:$0xf]
      %v3213 = vld [vmem:[%s891 + $0x24] sm:$0xf]
      %v3214 = vld [vmem:[%s891 + $0x28] sm:$0xf]
      %v3215 = vld [vmem:[%s891 + $0x2c] sm:$0xf]
      %v3216 = vld [vmem:[%s891 + $0x30] sm:$0xf]
      %v3217 = vld [vmem:[%s891 + $0x34] sm:$0xf]
      %v3218 = vld [vmem:[%s891 + $0x38] sm:$0xf]
      %v3219 = vld [vmem:[%s891 + $0x3c] sm:$0xf]
      %v3220 = vld [vmem:[%s891 + $0x40] sm:$0xf]
      %v3221 = vld [vmem:[%s891 + $0x44] sm:$0xf]
      %v3222 = vld [vmem:[%s891 + $0x48] sm:$0xf]
      %v3223 = vld [vmem:[%s891 + $0x4c] sm:$0xf]
      %v3224 = vld [vmem:[%s891 + $0x50] sm:$0xf]
      %v3225 = vld [vmem:[%s891 + $0x54] sm:$0xf]
      %v3226 = vld [vmem:[%s891 + $0x58] sm:$0xf]
      %v3227 = vld [vmem:[%s891 + $0x5c] sm:$0xf]
      %v3228 = vld [vmem:[%s891 + $0x60] sm:$0xf]
      %v3229 = vld [vmem:[%s891 + $0x64] sm:$0xf]
      %v3230 = vld [vmem:[%s891 + $0x68] sm:$0xf]
      %v3231 = vld [vmem:[%s891 + $0x6c] sm:$0xf]
      %v3232 = vld [vmem:[%s891 + $0x70] sm:$0xf]
      %v3233 = vld [vmem:[%s891 + $0x74] sm:$0xf]
      %v3234 = vld [vmem:[%s891 + $0x78] sm:$0xf]
      %v3235 = vld [vmem:[%s891 + $0x7c] sm:$0xf]
      %v3236 = vld [vmem:[%s891 + $0x80] sm:$0xf]
      %v3237 = vld [vmem:[%s891 + $0x84] sm:$0xf]
      %v3238 = vld [vmem:[%s891 + $0x88] sm:$0xf]
      %v3239 = vld [vmem:[%s891 + $0x8c] sm:$0xf]
      %s3240 = scalar_lea.vmem %s1, 512
      %v3241 = vld [vmem:[%s3240] sm:$0xf]
      %v3242 = vld [vmem:[%s3240 + $0x4] sm:$0xf]
      %v3243 = vld [vmem:[%s3240 + $0x8] sm:$0xf]
      %v3244 = vld [vmem:[%s3240 + $0xc] sm:$0xf]
      %v3245 = vld [vmem:[%s3240 + $0x10] sm:$0xf]
      %v3246 = vld [vmem:[%s3240 + $0x14] sm:$0xf]
      %v3247 = vld [vmem:[%s3240 + $0x18] sm:$0xf]
      %v3248 = vld [vmem:[%s3240 + $0x1c] sm:$0xf]
      %v3249 = vld [vmem:[%s3240 + $0x20] sm:$0xf]
      %v3250 = vld [vmem:[%s3240 + $0x24] sm:$0xf]
      %v3251 = vld [vmem:[%s3240 + $0x28] sm:$0xf]
      %v3252 = vld [vmem:[%s3240 + $0x2c] sm:$0xf]
      %v3253 = vld [vmem:[%s3240 + $0x30] sm:$0xf]
      %v3254 = vld [vmem:[%s3240 + $0x34] sm:$0xf]
      %v3255 = vld [vmem:[%s3240 + $0x38] sm:$0xf]
      %v3256 = vld [vmem:[%s3240 + $0x3c] sm:$0xf]
      %v3289 = vunpack.c.l.b16 %v3208
      %v3290 = vunpack.c.l.b16 %v3209
      %v3291 = vunpack.c.l.b16 %v3210
      %v3292 = vunpack.c.l.b16 %v3211
      %v3293 = vunpack.c.l.b16 %v3212
      %v3294 = vunpack.c.l.b16 %v3213
      %v3295 = vunpack.c.l.b16 %v3214
      %v3296 = vunpack.c.l.b16 %v3215
      %v3297 = vunpack.c.l.b16 %v3216
      %v3298 = vunpack.c.l.b16 %v3217
      %v3299 = vunpack.c.l.b16 %v3218
      %v3300 = vunpack.c.l.b16 %v3219
      %v3301 = vunpack.c.l.b16 %v3220
      %v3302 = vunpack.c.l.b16 %v3221
      %v3303 = vunpack.c.l.b16 %v3222
      %v3304 = vunpack.c.l.b16 %v3223
      %v3305 = vunpack.c.l.b16 %v3224
      %v3306 = vunpack.c.l.b16 %v3225
      %v3307 = vunpack.c.l.b16 %v3226
      %v3308 = vunpack.c.l.b16 %v3227
      %v3309 = vunpack.c.l.b16 %v3228
      %v3310 = vunpack.c.l.b16 %v3229
      %v3311 = vunpack.c.l.b16 %v3230
      %v3312 = vunpack.c.l.b16 %v3231
      %v3313 = vunpack.c.l.b16 %v3232
      %v3314 = vunpack.c.l.b16 %v3233
      %v3315 = vunpack.c.l.b16 %v3234
      %v3316 = vunpack.c.l.b16 %v3235
      %v3317 = vunpack.c.l.b16 %v3236
      %v3318 = vunpack.c.l.b16 %v3237
      %v3319 = vunpack.c.l.b16 %v3238
      %v3320 = vunpack.c.l.b16 %v3239
      %v3321 = vpack.c.b16 %v3290, %v3289
      %v3322 = vpack.c.b16 %v3292, %v3291
      %v3323 = vpack.c.b16 %v3294, %v3293
      %v3324 = vpack.c.b16 %v3296, %v3295
      %v3325 = vpack.c.b16 %v3298, %v3297
      %v3326 = vpack.c.b16 %v3300, %v3299
      %v3327 = vpack.c.b16 %v3302, %v3301
      %v3328 = vpack.c.b16 %v3304, %v3303
      %v3329 = vpack.c.b16 %v3306, %v3305
      %v3330 = vpack.c.b16 %v3308, %v3307
      %v3331 = vpack.c.b16 %v3310, %v3309
      %v3332 = vpack.c.b16 %v3312, %v3311
      %v3333 = vpack.c.b16 %v3314, %v3313
      %v3334 = vpack.c.b16 %v3316, %v3315
      %v3335 = vpack.c.b16 %v3318, %v3317
      %v3336 = vpack.c.b16 %v3320, %v3319
      %v3369 = vunpack.c.l.b16 %v3241
      %v3370 = vunpack.c.l.b16 %v3242
      %v3371 = vunpack.c.l.b16 %v3243
      %v3372 = vunpack.c.l.b16 %v3244
      %v3373 = vunpack.c.l.b16 %v3245
      %v3374 = vunpack.c.l.b16 %v3246
      %v3375 = vunpack.c.l.b16 %v3247
      %v3376 = vunpack.c.l.b16 %v3248
      %v3377 = vunpack.c.l.b16 %v3249
      %v3378 = vunpack.c.l.b16 %v3250
      %v3379 = vunpack.c.l.b16 %v3251
      %v3380 = vunpack.c.l.b16 %v3252
      %v3381 = vunpack.c.l.b16 %v3253
      %v3382 = vunpack.c.l.b16 %v3254
      %v3383 = vunpack.c.l.b16 %v3255
      %v3384 = vunpack.c.l.b16 %v3256
      %v3385 = vpack.c.b16 %v3370, %v3369
      %v3386 = vpack.c.b16 %v3372, %v3371
      %v3387 = vpack.c.b16 %v3374, %v3373
      %v3388 = vpack.c.b16 %v3376, %v3375
      %v3389 = vpack.c.b16 %v3378, %v3377
      %v3390 = vpack.c.b16 %v3380, %v3379
      %v3391 = vpack.c.b16 %v3382, %v3381
      %v3392 = vpack.c.b16 %v3384, %v3383
      %3401 = vmatprep.subr.bf16.mxu0 0
      %3402 = vmatpush1.bf16.msra.mxu0 %v3392
      %3403 = vmatprep.subr.bf16.mxu0 0
      %3404 = vmatpush1.bf16.msra.mxu0 %v3391
      %3405 = vmatprep.subr.bf16.mxu0 0
      %3406 = vmatpush1.bf16.msra.mxu0 %v3390
      %3407 = vmatprep.subr.bf16.mxu0 0
      %3408 = vmatpush1.bf16.msra.mxu0 %v3389
      %3409 = vmatprep.subr.bf16.mxu0 0
      %3410 = vmatpush1.bf16.msra.mxu0 %v3388
      %3411 = vmatprep.subr.bf16.mxu0 0
      %3412 = vmatpush1.bf16.msra.mxu0 %v3387
      %3413 = vmatprep.subr.bf16.mxu0 0
      %3414 = vmatpush1.bf16.msra.mxu0 %v3386
      %3415 = vmatprep.subr.bf16.mxu0 0
      %3416 = vmatpush1.bf16.msra.mxu0 %v3385
      %3417 = vmatprep.subr.bf16.mxu0 0
      %3418 = vmatpush2.bf16.msra.mxu0 0
      %3419 = vmatprep.subr.bf16.mxu0 0
      %3420 = vmatpush2.bf16.msra.mxu0 0
      %3421 = vmatprep.subr.bf16.mxu0 0
      %3422 = vmatpush2.bf16.msra.mxu0 0
      %3423 = vmatprep.subr.bf16.mxu0 0
      %3424 = vmatpush2.bf16.msra.mxu0 0
      %3425 = vmatprep.subr.bf16.mxu0 0
      %3426 = vmatpush2.bf16.msra.mxu0 0
      %3427 = vmatprep.subr.bf16.mxu0 0
      %3428 = vmatpush2.bf16.msra.mxu0 0
      %3429 = vmatprep.subr.bf16.mxu0 0
      %3430 = vmatpush2.bf16.msra.mxu0 0
      %3431 = vmatprep.subr.bf16.mxu0 0
      %3432 = vmatpush2.bf16.msra.mxu0 0
      %3433 = vmatprep.mubr.bf16.mxu0 0
      %3434 = vmatmul.mubr.bf16.gmra.mxu0 %v3321
      %v3435 = vpop.f32.mrf.mxu0
      %v3436 = vadd.f32 0.0, %v3435
      %v3437 = vpop.f32.mrf.mxu0
      %v3438 = vpop.f32.mrf.mxu0
      %v3439 = vadd.f32 0.0, %v3438
      %v3440 = vpop.f32.mrf.mxu0
      %3441 = vmatprep.mubr.bf16.mxu0 0
      %3442 = vmatmul.mubr.bf16.gmra.mxu0 %v3322
      %v3443 = vpop.f32.mrf.mxu0
      %v3444 = vadd.f32 0.0, %v3443
      %v3445 = vpop.f32.mrf.mxu0
      %v3446 = vpop.f32.mrf.mxu0
      %v3447 = vadd.f32 0.0, %v3446
      %v3448 = vpop.f32.mrf.mxu0
      %3449 = vmatprep.mubr.bf16.mxu0 0
      %3450 = vmatmul.mubr.bf16.gmra.mxu0 %v3323
      %v3451 = vpop.f32.mrf.mxu0
      %v3452 = vadd.f32 0.0, %v3451
      %v3453 = vpop.f32.mrf.mxu0
      %v3454 = vpop.f32.mrf.mxu0
      %v3455 = vadd.f32 0.0, %v3454
      %v3456 = vpop.f32.mrf.mxu0
      %3457 = vmatprep.mubr.bf16.mxu0 0
      %3458 = vmatmul.mubr.bf16.gmra.mxu0 %v3324
      %v3459 = vpop.f32.mrf.mxu0
      %v3460 = vadd.f32 0.0, %v3459
      %v3461 = vpop.f32.mrf.mxu0
      %v3462 = vpop.f32.mrf.mxu0
      %v3463 = vadd.f32 0.0, %v3462
      %v3464 = vpop.f32.mrf.mxu0
      %3465 = vmatprep.mubr.bf16.mxu0 0
      %3466 = vmatmul.mubr.bf16.gmra.mxu0 %v3325
      %v3467 = vpop.f32.mrf.mxu0
      %v3468 = vadd.f32 0.0, %v3467
      %v3469 = vpop.f32.mrf.mxu0
      %v3470 = vpop.f32.mrf.mxu0
      %v3471 = vadd.f32 0.0, %v3470
      %v3472 = vpop.f32.mrf.mxu0
      %3473 = vmatprep.mubr.bf16.mxu0 0
      %3474 = vmatmul.mubr.bf16.gmra.mxu0 %v3326
      %v3475 = vpop.f32.mrf.mxu0
      %v3476 = vadd.f32 0.0, %v3475
      %v3477 = vpop.f32.mrf.mxu0
      %v3478 = vpop.f32.mrf.mxu0
      %v3479 = vadd.f32 0.0, %v3478
      %v3480 = vpop.f32.mrf.mxu0
      %3481 = vmatprep.mubr.bf16.mxu0 0
      %3482 = vmatmul.mubr.bf16.gmra.mxu0 %v3327
      %v3483 = vpop.f32.mrf.mxu0
      %v3484 = vadd.f32 0.0, %v3483
      %v3485 = vpop.f32.mrf.mxu0
      %v3486 = vpop.f32.mrf.mxu0
      %v3487 = vadd.f32 0.0, %v3486
      %v3488 = vpop.f32.mrf.mxu0
      %3489 = vmatprep.mubr.bf16.mxu0 0
      %3490 = vmatmul.mubr.bf16.gmra.mxu0 %v3328
      %v3491 = vpop.f32.mrf.mxu0
      %v3492 = vadd.f32 0.0, %v3491
      %v3493 = vpop.f32.mrf.mxu0
      %v3494 = vpop.f32.mrf.mxu0
      %v3495 = vadd.f32 0.0, %v3494
      %v3496 = vpop.f32.mrf.mxu0
      %3497 = vmatprep.mubr.bf16.mxu0 0
      %3498 = vmatmul.mubr.bf16.gmra.mxu0 %v3329
      %v3499 = vpop.f32.mrf.mxu0
      %v3500 = vadd.f32 0.0, %v3499
      %v3501 = vpop.f32.mrf.mxu0
      %v3502 = vpop.f32.mrf.mxu0
      %v3503 = vadd.f32 0.0, %v3502
      %v3504 = vpop.f32.mrf.mxu0
      %3505 = vmatprep.mubr.bf16.mxu0 0
      %3506 = vmatmul.mubr.bf16.gmra.mxu0 %v3330
      %v3507 = vpop.f32.mrf.mxu0
      %v3508 = vadd.f32 0.0, %v3507
      %v3509 = vpop.f32.mrf.mxu0
      %v3510 = vpop.f32.mrf.mxu0
      %v3511 = vadd.f32 0.0, %v3510
      %v3512 = vpop.f32.mrf.mxu0
      %3513 = vmatprep.mubr.bf16.mxu0 0
      %3514 = vmatmul.mubr.bf16.gmra.mxu0 %v3331
      %v3515 = vpop.f32.mrf.mxu0
      %v3516 = vadd.f32 0.0, %v3515
      %v3517 = vpop.f32.mrf.mxu0
      %v3518 = vpop.f32.mrf.mxu0
      %v3519 = vadd.f32 0.0, %v3518
      %v3520 = vpop.f32.mrf.mxu0
      %3521 = vmatprep.mubr.bf16.mxu0 0
      %3522 = vmatmul.mubr.bf16.gmra.mxu0 %v3332
      %v3523 = vpop.f32.mrf.mxu0
      %v3524 = vadd.f32 0.0, %v3523
      %v3525 = vpop.f32.mrf.mxu0
      %v3526 = vpop.f32.mrf.mxu0
      %v3527 = vadd.f32 0.0, %v3526
      %v3528 = vpop.f32.mrf.mxu0
      %3529 = vmatprep.mubr.bf16.mxu0 0
      %3530 = vmatmul.mubr.bf16.gmra.mxu0 %v3333
      %v3531 = vpop.f32.mrf.mxu0
      %v3532 = vadd.f32 0.0, %v3531
      %v3533 = vpop.f32.mrf.mxu0
      %v3534 = vpop.f32.mrf.mxu0
      %v3535 = vadd.f32 0.0, %v3534
      %v3536 = vpop.f32.mrf.mxu0
      %3537 = vmatprep.mubr.bf16.mxu0 0
      %3538 = vmatmul.mubr.bf16.gmra.mxu0 %v3334
      %v3539 = vpop.f32.mrf.mxu0
      %v3540 = vadd.f32 0.0, %v3539
      %v3541 = vpop.f32.mrf.mxu0
      %v3542 = vpop.f32.mrf.mxu0
      %v3543 = vadd.f32 0.0, %v3542
      %v3544 = vpop.f32.mrf.mxu0
      %3545 = vmatprep.mubr.bf16.mxu0 0
      %3546 = vmatmul.mubr.bf16.gmra.mxu0 %v3335
      %v3547 = vpop.f32.mrf.mxu0
      %v3548 = vadd.f32 0.0, %v3547
      %v3549 = vpop.f32.mrf.mxu0
      %v3550 = vpop.f32.mrf.mxu0
      %v3551 = vadd.f32 0.0, %v3550
      %v3552 = vpop.f32.mrf.mxu0
      %3553 = vmatprep.mubr.bf16.mxu0 0
      %3554 = vmatmul.mubr.bf16.gmra.mxu0 %v3336
      %v3555 = vpop.f32.mrf.mxu0
      %v3556 = vadd.f32 0.0, %v3555
      %v3557 = vpop.f32.mrf.mxu0
      %v3558 = vpop.f32.mrf.mxu0
      %v3559 = vadd.f32 0.0, %v3558
      %v3560 = vpop.f32.mrf.mxu0
      %3561 = vdwg.mxu0
      %v3562 = vadd.f32 %v3176, %v3436
      %v3563 = vadd.f32 %v3177, %v3439
      %v3564 = vadd.f32 %v3178, %v3444
      %v3565 = vadd.f32 %v3179, %v3447
      %v3566 = vadd.f32 %v3180, %v3452
      %v3567 = vadd.f32 %v3181, %v3455
      %v3568 = vadd.f32 %v3182, %v3460
      %v3569 = vadd.f32 %v3183, %v3463
      %v3570 = vadd.f32 %v3184, %v3468
      %v3571 = vadd.f32 %v3185, %v3471
      %v3572 = vadd.f32 %v3186, %v3476
      %v3573 = vadd.f32 %v3187, %v3479
      %v3574 = vadd.f32 %v3188, %v3484
      %v3575 = vadd.f32 %v3189, %v3487
      %v3576 = vadd.f32 %v3190, %v3492
      %v3577 = vadd.f32 %v3191, %v3495
      %v3578 = vadd.f32 %v3192, %v3500
      %v3579 = vadd.f32 %v3193, %v3503
      %v3580 = vadd.f32 %v3194, %v3508
      %v3581 = vadd.f32 %v3195, %v3511
      %v3582 = vadd.f32 %v3196, %v3516
      %v3583 = vadd.f32 %v3197, %v3519
      %v3584 = vadd.f32 %v3198, %v3524
      %v3585 = vadd.f32 %v3199, %v3527
      %v3586 = vadd.f32 %v3200, %v3532
      %v3587 = vadd.f32 %v3201, %v3535
      %v3588 = vadd.f32 %v3202, %v3540
      %v3589 = vadd.f32 %v3203, %v3543
      %v3590 = vadd.f32 %v3204, %v3548
      %v3591 = vadd.f32 %v3205, %v3551
      %v3592 = vadd.f32 %v3206, %v3556
      %v3593 = vadd.f32 %v3207, %v3559
      %3594 = vst [vmem:[%s177] sm:$0xff] %v3562
      %3595 = vst [vmem:[%s177 + $0x8] sm:$0xff] %v3563
      %3596 = vst [vmem:[%s177 + $0x10] sm:$0xff] %v3564
      %3597 = vst [vmem:[%s177 + $0x18] sm:$0xff] %v3565
      %3598 = vst [vmem:[%s177 + $0x20] sm:$0xff] %v3566
      %3599 = vst [vmem:[%s177 + $0x28] sm:$0xff] %v3567
      %3600 = vst [vmem:[%s177 + $0x30] sm:$0xff] %v3568
      %3601 = vst [vmem:[%s177 + $0x38] sm:$0xff] %v3569
      %3602 = vst [vmem:[%s177 + $0x40] sm:$0xff] %v3570
      %3603 = vst [vmem:[%s177 + $0x48] sm:$0xff] %v3571
      %3604 = vst [vmem:[%s177 + $0x50] sm:$0xff] %v3572
      %3605 = vst [vmem:[%s177 + $0x58] sm:$0xff] %v3573
      %3606 = vst [vmem:[%s177 + $0x60] sm:$0xff] %v3574
      %3607 = vst [vmem:[%s177 + $0x68] sm:$0xff] %v3575
      %3608 = vst [vmem:[%s177 + $0x70] sm:$0xff] %v3576
      %3609 = vst [vmem:[%s177 + $0x78] sm:$0xff] %v3577
      %3610 = vst [vmem:[%s177 + $0x80] sm:$0xff] %v3578
      %3611 = vst [vmem:[%s177 + $0x88] sm:$0xff] %v3579
      %3612 = vst [vmem:[%s177 + $0x90] sm:$0xff] %v3580
      %3613 = vst [vmem:[%s177 + $0x98] sm:$0xff] %v3581
      %3614 = vst [vmem:[%s177 + $0xa0] sm:$0xff] %v3582
      %3615 = vst [vmem:[%s177 + $0xa8] sm:$0xff] %v3583
      %3616 = vst [vmem:[%s177 + $0xb0] sm:$0xff] %v3584
      %3617 = vst [vmem:[%s177 + $0xb8] sm:$0xff] %v3585
      %3618 = vst [vmem:[%s177 + $0xc0] sm:$0xff] %v3586
      %3619 = vst [vmem:[%s177 + $0xc8] sm:$0xff] %v3587
      %3620 = vst [vmem:[%s177 + $0xd0] sm:$0xff] %v3588
      %3621 = vst [vmem:[%s177 + $0xd8] sm:$0xff] %v3589
      %3622 = vst [vmem:[%s177 + $0xe0] sm:$0xff] %v3590
      %3623 = vst [vmem:[%s177 + $0xe8] sm:$0xff] %v3591
      %3624 = vst [vmem:[%s177 + $0xf0] sm:$0xff] %v3592
      %3625 = vst [vmem:[%s177 + $0xf8] sm:$0xff] %v3593
      %v3626 = vadd.f32 %v3562, %v3563
      %v3627 = vadd.f32 %v3626, %v3564
      %v3628 = vadd.f32 %v3627, %v3565
      %v3629 = vadd.f32 %v3628, %v3566
      %v3630 = vadd.f32 %v3629, %v3567
      %v3631 = vadd.f32 %v3630, %v3568
      %v3632 = vadd.f32 %v3631, %v3569
      %v3633 = vadd.f32 %v3632, %v3570
      %v3634 = vadd.f32 %v3633, %v3571
      %v3635 = vadd.f32 %v3634, %v3572
      %v3636 = vadd.f32 %v3635, %v3573
      %v3637 = vadd.f32 %v3636, %v3574
      %v3638 = vadd.f32 %v3637, %v3575
      %v3639 = vadd.f32 %v3638, %v3576
      %v3640 = vadd.f32 %v3639, %v3577
      %v3641 = vadd.f32 %v3640, %v3578
      %v3642 = vadd.f32 %v3641, %v3579
      %v3643 = vadd.f32 %v3642, %v3580
      %v3644 = vadd.f32 %v3643, %v3581
      %v3645 = vadd.f32 %v3644, %v3582
      %v3646 = vadd.f32 %v3645, %v3583
      %v3647 = vadd.f32 %v3646, %v3584
      %v3648 = vadd.f32 %v3647, %v3585
      %v3649 = vadd.f32 %v3648, %v3586
      %v3650 = vadd.f32 %v3649, %v3587
      %v3651 = vadd.f32 %v3650, %v3588
      %v3652 = vadd.f32 %v3651, %v3589
      %v3653 = vadd.f32 %v3652, %v3590
      %v3654 = vadd.f32 %v3653, %v3591
      %v3655 = vadd.f32 %v3654, %v3592
      %v3656 = vadd.f32 %v3655, %v3593
      %v3657 = vrot.slane %v3656, 4
      %v3658 = vadd.f32 %v3656, %v3657
      %v3659 = vrot.slane %v3658, 2
      %v3660 = vadd.f32 %v3658, %v3659
      %v3661 = vrot.slane %v3660, 1
      %v3662 = vadd.f32 %v3660, %v3661
      %3663 = vst [vmem:[%s181] sm:$0x1] %v3662
      %v3664 = vmul.f32 %v3562, %v3562
      %v3665 = vmul.f32 %v3563, %v3563
      %v3666 = vmul.f32 %v3564, %v3564
      %v3667 = vmul.f32 %v3565, %v3565
      %v3668 = vmul.f32 %v3566, %v3566
      %v3669 = vmul.f32 %v3567, %v3567
      %v3670 = vmul.f32 %v3568, %v3568
      %v3671 = vmul.f32 %v3569, %v3569
      %v3672 = vmul.f32 %v3570, %v3570
      %v3673 = vmul.f32 %v3571, %v3571
      %v3674 = vmul.f32 %v3572, %v3572
      %v3675 = vmul.f32 %v3573, %v3573
      %v3676 = vmul.f32 %v3574, %v3574
      %v3677 = vmul.f32 %v3575, %v3575
      %v3678 = vmul.f32 %v3576, %v3576
      %v3679 = vmul.f32 %v3577, %v3577
      %v3680 = vmul.f32 %v3578, %v3578
      %v3681 = vmul.f32 %v3579, %v3579
      %v3682 = vmul.f32 %v3580, %v3580
      %v3683 = vmul.f32 %v3581, %v3581
      %v3684 = vmul.f32 %v3582, %v3582
      %v3685 = vmul.f32 %v3583, %v3583
      %v3686 = vmul.f32 %v3584, %v3584
      %v3687 = vmul.f32 %v3585, %v3585
      %v3688 = vmul.f32 %v3586, %v3586
      %v3689 = vmul.f32 %v3587, %v3587
      %v3690 = vmul.f32 %v3588, %v3588
      %v3691 = vmul.f32 %v3589, %v3589
      %v3692 = vmul.f32 %v3590, %v3590
      %v3693 = vmul.f32 %v3591, %v3591
      %v3694 = vmul.f32 %v3592, %v3592
      %v3695 = vmul.f32 %v3593, %v3593
      %v3696 = vadd.f32 %v3664, %v3665
      %v3697 = vadd.f32 %v3696, %v3666
      %v3698 = vadd.f32 %v3697, %v3667
      %v3699 = vadd.f32 %v3698, %v3668
      %v3700 = vadd.f32 %v3699, %v3669
      %v3701 = vadd.f32 %v3700, %v3670
      %v3702 = vadd.f32 %v3701, %v3671
      %v3703 = vadd.f32 %v3702, %v3672
      %v3704 = vadd.f32 %v3703, %v3673
      %v3705 = vadd.f32 %v3704, %v3674
      %v3706 = vadd.f32 %v3705, %v3675
      %v3707 = vadd.f32 %v3706, %v3676
      %v3708 = vadd.f32 %v3707, %v3677
      %v3709 = vadd.f32 %v3708, %v3678
      %v3710 = vadd.f32 %v3709, %v3679
      %v3711 = vadd.f32 %v3710, %v3680
      %v3712 = vadd.f32 %v3711, %v3681
      %v3713 = vadd.f32 %v3712, %v3682
      %v3714 = vadd.f32 %v3713, %v3683
      %v3715 = vadd.f32 %v3714, %v3684
      %v3716 = vadd.f32 %v3715, %v3685
      %v3717 = vadd.f32 %v3716, %v3686
      %v3718 = vadd.f32 %v3717, %v3687
      %v3719 = vadd.f32 %v3718, %v3688
      %v3720 = vadd.f32 %v3719, %v3689
      %v3721 = vadd.f32 %v3720, %v3690
      %v3722 = vadd.f32 %v3721, %v3691
      %v3723 = vadd.f32 %v3722, %v3692
      %v3724 = vadd.f32 %v3723, %v3693
      %v3725 = vadd.f32 %v3724, %v3694
      %v3726 = vadd.f32 %v3725, %v3695
      %v3727 = vrot.slane %v3726, 4
      %v3728 = vadd.f32 %v3726, %v3727
      %v3729 = vrot.slane %v3728, 2
      %v3730 = vadd.f32 %v3728, %v3729
      %v3731 = vrot.slane %v3730, 1
      %v3732 = vadd.f32 %v3730, %v3731
      %3733 = vst [vmem:[%s181 + $0x1] sm:$0x1] %v3732
      %p3734 = scmp.lt.s32.totalorder %s15, 1
      %s3735 = scalar_select %p3734, %s15, 1
      %s3736 = smul.addr %s3735, 32
      %s3737 = smul.addr %s3736, 8
      %s3738 = scalar_lea.vmem %s2, %s3737
      %p3739 = scmp.lt.s32.totalorder %s15, 1
      %s3740 = scalar_select %p3739, %s15, 1
      %s3741 = smul.addr %s3740, 2
      %s3742 = scalar_lea.vmem %s3, %s3741
      // Predicated region
      $region29: #{conv_block_forward.4} parent=27 // pred_check
        %p3743 = pneg %p80
      $region30: #{conv_block_forward.4} parent=27 // pred_check_branch
        %3745 = sbr.rel (%p3743) target = $region32
      $region31: #{conv_block_forward.4} parent=27 // pred_region
        _
      $region32: #{conv_block_forward.4} parent=27 // pred_fallthru
        _
      // Predicated region
      $region33: #{conv_block_forward.4} parent=27 // pred_check
        %p3746 = pneg %p106
      $region34: #{conv_block_forward.4} parent=27 // pred_check_branch
        %3748 = sbr.rel (%p3746) target = $region36
      $region35: #{conv_block_forward.4} parent=27 // pred_region
        _
      $region36: #{conv_block_forward.4} parent=27 // pred_fallthru
        _
    $region28: #{conv_block_forward.4} parent=5 // pred_fallthru
      _
    %p3749 = scmp.le.s32.totalorder 2, %s10
    // Predicated region
    $region37: #{conv_block_forward.4} parent=5 // pred_check
      %p3750 = pneg %p3749
    $region38: #{conv_block_forward.4} parent=5 // pred_check_branch
      %3752 = sbr.rel (%p3750) target = $region40
    $region39: #{conv_block_forward.4} parent=5 // pred_region
      %s3753 = ssub.s32 %s10, 2
      // Predicated region
      $region41: #{conv_block_forward.4} parent=39 // pred_check
        %p3754 = pneg %p86
      $region42: #{conv_block_forward.4} parent=39 // pred_check_branch
        %3756 = sbr.rel (%p3754) target = $region44
      $region43: #{conv_block_forward.4} parent=39 // pred_region
        %p3757 = scmp.lt.s32.totalorder %s16, 1
        %s3758 = scalar_select %p3757, %s16, 1
        %s3759 = smul.addr %s3758, 32
        %s3760 = smul.addr %s3759, 8
        %s3761 = scalar_lea.vmem %s2, %s3760
      $region44: #{conv_block_forward.4} parent=39 // pred_fallthru
        _
      // Predicated region
      $region45: #{conv_block_forward.4} parent=39 // pred_check
        %p3762 = pneg %p112
      $region46: #{conv_block_forward.4} parent=39 // pred_check_branch
        %3764 = sbr.rel (%p3762) target = $region48
      $region47: #{conv_block_forward.4} parent=39 // pred_region
        %p3765 = scmp.lt.s32.totalorder %s16, 1
        %s3766 = scalar_select %p3765, %s16, 1
        %s3767 = smul.addr %s3766, 2
        %s3768 = scalar_lea.vmem %s3, %s3767
      $region48: #{conv_block_forward.4} parent=39 // pred_fallthru
        _
    $region40: #{conv_block_forward.4} parent=5 // pred_fallthru
      _
  $region6: #{conv_block_forward.4} parent=0 // loop_footer
    %s14 = sadd.s32 1, %s10
  $region7: #{conv_block_forward.4} parent=0 // loop_footer_branch
    %9 = sbr.rel target = $region3
  $region8: #{conv_block_forward.4} parent=0 // loop_exit
    _

// kernel: conv_block_forward.7
$region0: #{conv_block_forward.7}
  #allocation0 [shape = 'u32[]', space=smem, size = 0x4, offset = 0x4, fixed_abs, tag = 'smem constant byte address 0x4 - core index']
  #allocation1 [shape = 'u32[144,128]{1,0:T(1,128)}', space=vmem, size = 0x12000, scoped, tag = 'internal scratch']
  %s0 = inlined_call_operand.vmem [shape: f32[2,256,128], index: 0, kind: input, shape index: {}]
  %s1 = inlined_call_operand.vmem [shape: f32[1,128], index: 1, kind: input, shape index: {}]
  %s2 = inlined_call_operand.vmem [shape: f32[1,128], index: 2, kind: input, shape index: {}]
  %s3 = inlined_call_operand.vmem [shape: f32[2,256,128], index: 3, kind: output, shape index: {}]
  %s4 = sld [smem:[#allocation0]]
  $region45: #{conv_block_forward.7} parent=0
    _
  %s6 = ssub.s32 1, %s4
  %s7 = scalar_select 0, %s6, %s4
  loop: start=0, step=1, limit=4
  $region2: #{conv_block_forward.7} parent=0 // loop_pre_header
    _
  $region3: #{conv_block_forward.7} parent=0 // loop_header
    %s9 = sphi 0, %s13
    %p10 = scmp.ge.s32.totalorder %s9, 4
    %s19 = sphi 0, %s21
    %s22 = sphi 0, %s19
    %s23 = sphi 0, %s22
    %s39 = sphi 0, %s23
    %s43 = sphi 0, %s43
    %s45 = sphi 0, %s43
    %s46 = sphi 0, %s45
    %s60 = sphi 0, %s46
    %s64 = sphi 0, %s64
    %s66 = sphi 0, %s64
    %s67 = sphi 0, %s66
    %s81 = sphi 0, %s67
    %s87 = sphi 0, %s89
    %s90 = sphi 0, %s87
    %s91 = sphi 0, %s90
    %s107 = sphi 0, %s91
  $region4: #{conv_block_forward.7} parent=0 // loop_header_branch
    %12 = sbr.rel (%p10) target = $region8
  $region5: #{conv_block_forward.7} parent=0 // loop_body
    %s14 = ssub.s32 %s9, 1
    %s15 = ssub.s32 %s9, 2
    %s16 = sadd.s32 %s9, 1
    %s17 = ssub.s32 %s9, %s16
    %p18 = scmp.eq.s32.totalorder %s17, 0
    %s20 = sadd.s32 %s19, 1
    %s21 = scalar_select %p18, %s19, %s20
    %p24 = pneg %p18
    %p25 = scmp.eq.s32.totalorder %s9, 1
    %p26 = por %p24, %p25
    %p27 = scmp.ne.s32.totalorder %s19, %s22
    %p28 = scmp.eq.s32.totalorder %s9, 0
    %p29 = por %p27, %p28
    %p30 = scmp.ne.s32.totalorder %s19, %s22
    %p31 = scmp.eq.s32.totalorder %s14, 1
    %p32 = por %p30, %p31
    %p33 = scmp.ne.s32.totalorder %s22, %s23
    %p34 = scmp.eq.s32.totalorder %s14, 0
    %p35 = por %p33, %p34
    %p36 = scmp.ne.s32.totalorder %s22, %s23
    %p37 = scmp.eq.s32.totalorder %s15, 1
    %p38 = por %p36, %p37
    %p40 = scmp.ne.s32.totalorder %s23, %s39
    %p41 = scmp.eq.s32.totalorder %s15, 0
    %p42 = por %p40, %p41
    %s44 = sadd.s32 %s43, 1
    %p47 = scmp.eq.s32.totalorder %s9, 1
    %p48 = scmp.ne.s32.totalorder %s43, %s45
    %p49 = scmp.eq.s32.totalorder %s9, 0
    %p50 = por %p48, %p49
    %p51 = scmp.ne.s32.totalorder %s43, %s45
    %p52 = scmp.eq.s32.totalorder %s14, 1
    %p53 = por %p51, %p52
    %p54 = scmp.ne.s32.totalorder %s45, %s46
    %p55 = scmp.eq.s32.totalorder %s14, 0
    %p56 = por %p54, %p55
    %p57 = scmp.ne.s32.totalorder %s45, %s46
    %p58 = scmp.eq.s32.totalorder %s15, 1
    %p59 = por %p57, %p58
    %p61 = scmp.ne.s32.totalorder %s46, %s60
    %p62 = scmp.eq.s32.totalorder %s15, 0
    %p63 = por %p61, %p62
    %s65 = sadd.s32 %s64, 1
    %p68 = scmp.eq.s32.totalorder %s9, 1
    %p69 = scmp.ne.s32.totalorder %s64, %s66
    %p70 = scmp.eq.s32.totalorder %s9, 0
    %p71 = por %p69, %p70
    %p72 = scmp.ne.s32.totalorder %s64, %s66
    %p73 = scmp.eq.s32.totalorder %s14, 1
    %p74 = por %p72, %p73
    %p75 = scmp.ne.s32.totalorder %s66, %s67
    %p76 = scmp.eq.s32.totalorder %s14, 0
    %p77 = por %p75, %p76
    %p78 = scmp.ne.s32.totalorder %s66, %s67
    %p79 = scmp.eq.s32.totalorder %s15, 1
    %p80 = por %p78, %p79
    %p82 = scmp.ne.s32.totalorder %s67, %s81
    %p83 = scmp.eq.s32.totalorder %s15, 0
    %p84 = por %p82, %p83
    %s85 = ssub.s32 %s9, %s16
    %p86 = scmp.eq.s32.totalorder %s85, 0
    %s88 = sadd.s32 %s87, 1
    %s89 = scalar_select %p86, %s87, %s88
    %p92 = pneg %p86
    %p93 = scmp.eq.s32.totalorder %s9, 1
    %p94 = por %p92, %p93
    %p95 = scmp.ne.s32.totalorder %s87, %s90
    %p96 = scmp.eq.s32.totalorder %s9, 0
    %p97 = por %p95, %p96
    %p98 = scmp.ne.s32.totalorder %s87, %s90
    %p99 = scmp.eq.s32.totalorder %s14, 1
    %p100 = por %p98, %p99
    %p101 = scmp.ne.s32.totalorder %s90, %s91
    %p102 = scmp.eq.s32.totalorder %s14, 0
    %p103 = por %p101, %p102
    %p104 = scmp.ne.s32.totalorder %s90, %s91
    %p105 = scmp.eq.s32.totalorder %s15, 1
    %p106 = por %p104, %p105
    %p108 = scmp.ne.s32.totalorder %s91, %s107
    %p109 = scmp.eq.s32.totalorder %s15, 0
    %p110 = por %p108, %p109
    %p111 = scmp.le.s32.totalorder 1, %s9
    %p112 = scmp.lt.s32.totalorder %s9, 3
    %p113 = pnand %p111, %p112
    %p114 = pneg %p113
    // Predicated region
    $region9: #{conv_block_forward.7} parent=5 // pred_check
      _
    $region10: #{conv_block_forward.7} parent=5 // pred_check_branch
      %116 = sbr.rel (%p113) target = $region12
    $region11: #{conv_block_forward.7} parent=5 // pred_region
      %s117 = ssub.s32 %s9, 1
      // Predicated region
      $region13: #{conv_block_forward.7} parent=11 // pred_check
        %p118 = pneg %p56
      $region14: #{conv_block_forward.7} parent=11 // pred_check_branch
        %120 = sbr.rel (%p118) target = $region16
      $region15: #{conv_block_forward.7} parent=11 // pred_region
        _
      $region16: #{conv_block_forward.7} parent=11 // pred_fallthru
        _
      // Predicated region
      $region17: #{conv_block_forward.7} parent=11 // pred_check
        %p121 = pneg %p77
      $region18: #{conv_block_forward.7} parent=11 // pred_check_branch
        %123 = sbr.rel (%p121) target = $region20
      $region19: #{conv_block_forward.7} parent=11 // pred_region
        _
      $region20: #{conv_block_forward.7} parent=11 // pred_fallthru
        _
    $region12: #{conv_block_forward.7} parent=5 // pred_fallthru
      _
    %p124 = scmp.lt.s32.totalorder %s9, 2
    // Predicated region
    $region21: #{conv_block_forward.7} parent=5 // pred_check
      %p125 = pneg %p124
    $region22: #{conv_block_forward.7} parent=5 // pred_check_branch
      %127 = sbr.rel (%p125) target = $region24
    $region23: #{conv_block_forward.7} parent=5 // pred_region
      // Predicated region
      $region25: #{conv_block_forward.7} parent=23 // pred_check
        %p128 = pneg %p29
      $region26: #{conv_block_forward.7} parent=23 // pred_check_branch
        %130 = sbr.rel (%p128) target = $region28
      $region27: #{conv_block_forward.7} parent=23 // pred_region
        %p131 = scmp.lt.s32.totalorder %s9, 1
        %s132 = scalar_select %p131, %s9, 1
        %s133 = smul.addr %s132, 32
        %s134 = smul.addr %s133, 8
        %s135 = scalar_lea.vmem %s0, %s134
      $region28: #{conv_block_forward.7} parent=23 // pred_fallthru
        _
    $region24: #{conv_block_forward.7} parent=5 // pred_fallthru
      _
    %p136 = scmp.le.s32.totalorder 1, %s9
    %p137 = scmp.lt.s32.totalorder %s9, 3
    %p138 = pnand %p136, %p137
    %p139 = pneg %p138
    // Predicated region
    $region29: #{conv_block_forward.7} parent=5 // pred_check
      _
    $region30: #{conv_block_forward.7} parent=5 // pred_check_branch
      %141 = sbr.rel (%p138) target = $region32
    $region31: #{conv_block_forward.7} parent=5 // pred_region
      %s142 = ssub.s32 %s9, 1
      %p143 = scmp.lt.s32.totalorder %s14, 1
      %s144 = scalar_select %p143, %s14, 1
      %s145 = smul.addr %s144, 32
      %s146 = smul.addr %s145, 8
      %s147 = scalar_lea.vmem %s0, %s146
      %p148 = pneg %p35
      %p149 = pneg %p32
      %p150 = pneg %p56
      %p151 = pneg %p53
      %p152 = pneg %p77
      %p153 = pneg %p74
      %p154 = pneg %p103
      %p155 = pneg %p100
      %p156 = scmp.lt.s32.totalorder %s14, 1
      %s157 = scalar_select %p156, %s14, 1
      %s158 = smul.addr %s157, 32
      %s159 = smul.addr %s158, 8
      %s160 = scalar_lea.vmem %s3, %s159
      %p161 = scmp.lt.s32.totalorder %s14, 1
      %s162 = scalar_select %p161, %s14, 1
      %s163 = smul.addr %s162, 32
      %s164 = smul.addr %s163, 8
      %s165 = scalar_lea.vmem %s0, %s164
      %p166 = scmp.lt.s32.totalorder %s14, 1
      %s167 = scalar_select %p166, %s14, 1
      %s168 = smul.addr %s167, 32
      %s169 = smul.addr %s168, 8
      %s170 = scalar_lea.vmem %s3, %s169
      %v171 = vld [vmem:[%s165] sm:$0xff]
      %v172 = vld [vmem:[%s165 + $0x8] sm:$0xff]
      %v173 = vld [vmem:[%s165 + $0x10] sm:$0xff]
      %v174 = vld [vmem:[%s165 + $0x18] sm:$0xff]
      %v175 = vld [vmem:[%s165 + $0x20] sm:$0xff]
      %v176 = vld [vmem:[%s165 + $0x28] sm:$0xff]
      %v177 = vld [vmem:[%s165 + $0x30] sm:$0xff]
      %v178 = vld [vmem:[%s165 + $0x38] sm:$0xff]
      %v179 = vld [vmem:[%s165 + $0x40] sm:$0xff]
      %v180 = vld [vmem:[%s165 + $0x48] sm:$0xff]
      %v181 = vld [vmem:[%s165 + $0x50] sm:$0xff]
      %v182 = vld [vmem:[%s165 + $0x58] sm:$0xff]
      %v183 = vld [vmem:[%s165 + $0x60] sm:$0xff]
      %v184 = vld [vmem:[%s165 + $0x68] sm:$0xff]
      %v185 = vld [vmem:[%s165 + $0x70] sm:$0xff]
      %v186 = vld [vmem:[%s165 + $0x78] sm:$0xff]
      %v187 = vld [vmem:[%s165 + $0x80] sm:$0xff]
      %v188 = vld [vmem:[%s165 + $0x88] sm:$0xff]
      %v189 = vld [vmem:[%s165 + $0x90] sm:$0xff]
      %v190 = vld [vmem:[%s165 + $0x98] sm:$0xff]
      %v191 = vld [vmem:[%s165 + $0xa0] sm:$0xff]
      %v192 = vld [vmem:[%s165 + $0xa8] sm:$0xff]
      %v193 = vld [vmem:[%s165 + $0xb0] sm:$0xff]
      %v194 = vld [vmem:[%s165 + $0xb8] sm:$0xff]
      %v195 = vld [vmem:[%s165 + $0xc0] sm:$0xff]
      %v196 = vld [vmem:[%s165 + $0xc8] sm:$0xff]
      %v197 = vld [vmem:[%s165 + $0xd0] sm:$0xff]
      %v198 = vld [vmem:[%s165 + $0xd8] sm:$0xff]
      %v199 = vld [vmem:[%s165 + $0xe0] sm:$0xff]
      %v200 = vld [vmem:[%s165 + $0xe8] sm:$0xff]
      %v201 = vld [vmem:[%s165 + $0xf0] sm:$0xff]
      %v202 = vld [vmem:[%s165 + $0xf8] sm:$0xff]
      %v203 = vld [vmem:[%s1] sm:$0x1]
      %v205 = vlaneseq
      %v206 = vshrl.u32 %v205, 7
      %v207 = vsub.s32 0, %v206
      %v208 = vrot.slane %v203, %v207
      %v210 = vmul.f32 %v171, %v208
      %v211 = vmul.f32 %v172, %v208
      %v212 = vmul.f32 %v173, %v208
      %v213 = vmul.f32 %v174, %v208
      %v214 = vmul.f32 %v175, %v208
      %v215 = vmul.f32 %v176, %v208
      %v216 = vmul.f32 %v177, %v208
      %v217 = vmul.f32 %v178, %v208
      %v218 = vmul.f32 %v179, %v208
      %v219 = vmul.f32 %v180, %v208
      %v220 = vmul.f32 %v181, %v208
      %v221 = vmul.f32 %v182, %v208
      %v222 = vmul.f32 %v183, %v208
      %v223 = vmul.f32 %v184, %v208
      %v224 = vmul.f32 %v185, %v208
      %v225 = vmul.f32 %v186, %v208
      %v226 = vmul.f32 %v187, %v208
      %v227 = vmul.f32 %v188, %v208
      %v228 = vmul.f32 %v189, %v208
      %v229 = vmul.f32 %v190, %v208
      %v230 = vmul.f32 %v191, %v208
      %v231 = vmul.f32 %v192, %v208
      %v232 = vmul.f32 %v193, %v208
      %v233 = vmul.f32 %v194, %v208
      %v234 = vmul.f32 %v195, %v208
      %v235 = vmul.f32 %v196, %v208
      %v236 = vmul.f32 %v197, %v208
      %v237 = vmul.f32 %v198, %v208
      %v238 = vmul.f32 %v199, %v208
      %v239 = vmul.f32 %v200, %v208
      %v240 = vmul.f32 %v201, %v208
      %v241 = vmul.f32 %v202, %v208
      %v242 = vld [vmem:[%s2] sm:$0x1]
      %v244 = vlaneseq
      %v245 = vshrl.u32 %v244, 7
      %v246 = vsub.s32 0, %v245
      %v247 = vrot.slane %v242, %v246
      %v249 = vadd.f32 %v210, %v247
      %v250 = vadd.f32 %v211, %v247
      %v251 = vadd.f32 %v212, %v247
      %v252 = vadd.f32 %v213, %v247
      %v253 = vadd.f32 %v214, %v247
      %v254 = vadd.f32 %v215, %v247
      %v255 = vadd.f32 %v216, %v247
      %v256 = vadd.f32 %v217, %v247
      %v257 = vadd.f32 %v218, %v247
      %v258 = vadd.f32 %v219, %v247
      %v259 = vadd.f32 %v220, %v247
      %v260 = vadd.f32 %v221, %v247
      %v261 = vadd.f32 %v222, %v247
      %v262 = vadd.f32 %v223, %v247
      %v263 = vadd.f32 %v224, %v247
      %v264 = vadd.f32 %v225, %v247
      %v265 = vadd.f32 %v226, %v247
      %v266 = vadd.f32 %v227, %v247
      %v267 = vadd.f32 %v228, %v247
      %v268 = vadd.f32 %v229, %v247
      %v269 = vadd.f32 %v230, %v247
      %v270 = vadd.f32 %v231, %v247
      %v271 = vadd.f32 %v232, %v247
      %v272 = vadd.f32 %v233, %v247
      %v273 = vadd.f32 %v234, %v247
      %v274 = vadd.f32 %v235, %v247
      %v275 = vadd.f32 %v236, %v247
      %v276 = vadd.f32 %v237, %v247
      %v277 = vadd.f32 %v238, %v247
      %v278 = vadd.f32 %v239, %v247
      %v279 = vadd.f32 %v240, %v247
      %v280 = vadd.f32 %v241, %v247
      %v281 = vmax.f32 %v249, 0.0
      %v282 = vmax.f32 %v250, 0.0
      %v283 = vmax.f32 %v251, 0.0
      %v284 = vmax.f32 %v252, 0.0
      %v285 = vmax.f32 %v253, 0.0
      %v286 = vmax.f32 %v254, 0.0
      %v287 = vmax.f32 %v255, 0.0
      %v288 = vmax.f32 %v256, 0.0
      %v289 = vmax.f32 %v257, 0.0
      %v290 = vmax.f32 %v258, 0.0
      %v291 = vmax.f32 %v259, 0.0
      %v292 = vmax.f32 %v260, 0.0
      %v293 = vmax.f32 %v261, 0.0
      %v294 = vmax.f32 %v262, 0.0
      %v295 = vmax.f32 %v263, 0.0
      %v296 = vmax.f32 %v264, 0.0
      %v297 = vmax.f32 %v265, 0.0
      %v298 = vmax.f32 %v266, 0.0
      %v299 = vmax.f32 %v267, 0.0
      %v300 = vmax.f32 %v268, 0.0
      %v301 = vmax.f32 %v269, 0.0
      %v302 = vmax.f32 %v270, 0.0
      %v303 = vmax.f32 %v271, 0.0
      %v304 = vmax.f32 %v272, 0.0
      %v305 = vmax.f32 %v273, 0.0
      %v306 = vmax.f32 %v274, 0.0
      %v307 = vmax.f32 %v275, 0.0
      %v308 = vmax.f32 %v276, 0.0
      %v309 = vmax.f32 %v277, 0.0
      %v310 = vmax.f32 %v278, 0.0
      %v311 = vmax.f32 %v279, 0.0
      %v312 = vmax.f32 %v280, 0.0
      %313 = vst [vmem:[%s170] sm:$0xff] %v281
      %314 = vst [vmem:[%s170 + $0x8] sm:$0xff] %v282
      %315 = vst [vmem:[%s170 + $0x10] sm:$0xff] %v283
      %316 = vst [vmem:[%s170 + $0x18] sm:$0xff] %v284
      %317 = vst [vmem:[%s170 + $0x20] sm:$0xff] %v285
      %318 = vst [vmem:[%s170 + $0x28] sm:$0xff] %v286
      %319 = vst [vmem:[%s170 + $0x30] sm:$0xff] %v287
      %320 = vst [vmem:[%s170 + $0x38] sm:$0xff] %v288
      %321 = vst [vmem:[%s170 + $0x40] sm:$0xff] %v289
      %322 = vst [vmem:[%s170 + $0x48] sm:$0xff] %v290
      %323 = vst [vmem:[%s170 + $0x50] sm:$0xff] %v291
      %324 = vst [vmem:[%s170 + $0x58] sm:$0xff] %v292
      %325 = vst [vmem:[%s170 + $0x60] sm:$0xff] %v293
      %326 = vst [vmem:[%s170 + $0x68] sm:$0xff] %v294
      %327 = vst [vmem:[%s170 + $0x70] sm:$0xff] %v295
      %328 = vst [vmem:[%s170 + $0x78] sm:$0xff] %v296
      %329 = vst [vmem:[%s170 + $0x80] sm:$0xff] %v297
      %330 = vst [vmem:[%s170 + $0x88] sm:$0xff] %v298
      %331 = vst [vmem:[%s170 + $0x90] sm:$0xff] %v299
      %332 = vst [vmem:[%s170 + $0x98] sm:$0xff] %v300
      %333 = vst [vmem:[%s170 + $0xa0] sm:$0xff] %v301
      %334 = vst [vmem:[%s170 + $0xa8] sm:$0xff] %v302
      %335 = vst [vmem:[%s170 + $0xb0] sm:$0xff] %v303
      %336 = vst [vmem:[%s170 + $0xb8] sm:$0xff] %v304
      %337 = vst [vmem:[%s170 + $0xc0] sm:$0xff] %v305
      %338 = vst [vmem:[%s170 + $0xc8] sm:$0xff] %v306
      %339 = vst [vmem:[%s170 + $0xd0] sm:$0xff] %v307
      %340 = vst [vmem:[%s170 + $0xd8] sm:$0xff] %v308
      %341 = vst [vmem:[%s170 + $0xe0] sm:$0xff] %v309
      %342 = vst [vmem:[%s170 + $0xe8] sm:$0xff] %v310
      %343 = vst [vmem:[%s170 + $0xf0] sm:$0xff] %v311
      %344 = vst [vmem:[%s170 + $0xf8] sm:$0xff] %v312
      %p345 = scmp.lt.s32.totalorder %s14, 1
      %s346 = scalar_select %p345, %s14, 1
      %s347 = smul.addr %s346, 32
      %s348 = smul.addr %s347, 8
      %s349 = scalar_lea.vmem %s3, %s348
      // Predicated region
      $region33: #{conv_block_forward.7} parent=31 // pred_check
        %p350 = pneg %p100
      $region34: #{conv_block_forward.7} parent=31 // pred_check_branch
        %352 = sbr.rel (%p350) target = $region36
      $region35: #{conv_block_forward.7} parent=31 // pred_region
        _
      $region36: #{conv_block_forward.7} parent=31 // pred_fallthru
        _
    $region32: #{conv_block_forward.7} parent=5 // pred_fallthru
      _
    %p353 = scmp.le.s32.totalorder 2, %s9
    // Predicated region
    $region37: #{conv_block_forward.7} parent=5 // pred_check
      %p354 = pneg %p353
    $region38: #{conv_block_forward.7} parent=5 // pred_check_branch
      %356 = sbr.rel (%p354) target = $region40
    $region39: #{conv_block_forward.7} parent=5 // pred_region
      %s357 = ssub.s32 %s9, 2
      // Predicated region
      $region41: #{conv_block_forward.7} parent=39 // pred_check
        %p358 = pneg %p106
      $region42: #{conv_block_forward.7} parent=39 // pred_check_branch
        %360 = sbr.rel (%p358) target = $region44
      $region43: #{conv_block_forward.7} parent=39 // pred_region
        %p361 = scmp.lt.s32.totalorder %s15, 1
        %s362 = scalar_select %p361, %s15, 1
        %s363 = smul.addr %s362, 32
        %s364 = smul.addr %s363, 8
        %s365 = scalar_lea.vmem %s3, %s364
      $region44: #{conv_block_forward.7} parent=39 // pred_fallthru
        _
    $region40: #{conv_block_forward.7} parent=5 // pred_fallthru
      _
  $region6: #{conv_block_forward.7} parent=0 // loop_footer
    %s13 = sadd.s32 1, %s9
  $region7: #{conv_block_forward.7} parent=0 // loop_footer_branch
    %8 = sbr.rel target = $region3
  $region8: #{conv_block_forward.7} parent=0 // loop_exit
    _

</llo_original>
